<compile_context>
chip_gen: v5e
topology: v5e:2x2
jax: 0.10.0
libtpu: 0.0.40
codegen_flags: <defaults>
</compile_context>

<pallas_src>
import functools
import math

import jax
import jax.numpy as jnp
from jax.experimental import pallas as pl
from jax.experimental.pallas import tpu as pltpu


def attention_block_kernel(
    x_ref,
    wqkv_ref, bqkv_ref,
    wo_ref, bo_ref,
    ln1w_ref, ln1b_ref,
    w1_ref, b1_ref, w2_ref, b2_ref,
    ln2w_ref, ln2b_ref,
    o_ref,
    *, num_heads, eps=1e-5,
):
    bt, S, E = x_ref.shape
    H = num_heads
    D = E // H
    R = bt * S

    # ---- hoisted parameter loads (once per grid step) -------------------------------
    wqkv = wqkv_ref[...]                       # (E, 3E) bf16, 1/sqrt(D) folded into Q
    bqkv = bqkv_ref[...]                       # (1, 3E) f32 (Q part pre-scaled)
    wo = wo_ref[...]                           # (E, E)  bf16
    bo = bo_ref[...]                           # (1, E)  f32
    g1, be1 = ln1w_ref[...], ln1b_ref[...]     # (1, E)
    w1, b1 = w1_ref[...], b1_ref[...]          # (E, 4E) bf16, (1, 4E) f32
    w2, b2 = w2_ref[...], b2_ref[...]          # (4E, E) bf16, (1, E)  f32
    g2, be2 = ln2w_ref[...], ln2b_ref[...]     # (1, E)

    def mm(a, b):
        return jnp.dot(a, b, preferred_element_type=jnp.float32)

    def layer_norm(y, g, b):
        mu = jnp.mean(y, axis=-1, keepdims=True)
        var = jnp.mean((y - mu) ** 2, axis=-1, keepdims=True)
        return (y - mu) * jax.lax.rsqrt(var + eps) * g + b

    x = x_ref[...]                             # (bt, S, E) f32
    xr = x.reshape(R, E)                       # batch tile folded into matmul rows

    # ---- fused QKV projection: ONE lane-dense (R,E)x(E,3E) MXU matmul ---------------
    qkv = mm(xr.astype(jnp.bfloat16), wqkv) + bqkv            # (R, 3E) f32
    qkv_b = qkv.astype(jnp.bfloat16)                          # single bf16 cast

    # ---- relayout heads onto a leading batch dim: (R, 3E) -> (H*bt, S, D) -----------
    # static lane slices + leading-axis stack; all reshapes are leading-dim only.
    def gather_heads(col0):
        parts = [qkv_b[:, col0 + h * D: col0 + (h + 1) * D].reshape(1, bt, S, D)
                 for h in range(H)]
        return jnp.concatenate(parts, axis=0).reshape(H * bt, S, D)

    qh = gather_heads(0)                       # (H*bt, S, D) bf16
    kh = gather_heads(E)
    vh = gather_heads(2 * E)

    # ---- attention core: all heads & batch rows in ONE batched dot_general each -----
    dn_scores = (((2,), (2,)), ((0,), (0,)))   # (HB,S,D) x (HB,S,D) -> (HB,S,S)
    dn_ctx    = (((2,), (1,)), ((0,), (0,)))   # (HB,S,S) x (HB,S,D) -> (HB,S,D)

    s = jax.lax.dot_general(qh, kh, dn_scores, preferred_element_type=jnp.float32)
    s = s - jnp.max(s, axis=-1, keepdims=True)
    p = jnp.exp(s)
    p = p * pl.reciprocal(jnp.sum(p, axis=-1, keepdims=True), approx=True)
    ctx = jax.lax.dot_general(p.astype(jnp.bfloat16), vh, dn_ctx,
                              preferred_element_type=jnp.float32)   # (HB, S, D) f32
    ctx_b = ctx.astype(jnp.bfloat16).reshape(H, bt, S, D)

    # ---- heads back onto lanes -> single (R,E)x(E,E) output projection --------------
    ctx_r = jnp.concatenate([ctx_b[h].reshape(R, D) for h in range(H)], axis=-1)
    attended = mm(ctx_r, wo) + bo                               # (R, E) f32

    # ---- residual + LayerNorm 1 ------------------------------------------------------
    x1 = layer_norm(xr + attended, g1, be1)

    # ---- feed forward: Linear -> ReLU -> Linear (bf16 MXU inputs, f32 accumulate) ----
    # TODO(synk): add FFN hidden-dim tiling (extra "arbitrary" grid axis + f32
    # accumulator) once 2*(w1+w2) bf16 no longer fits the VMEM budget (embed_dim ~>1-2k).
    h1 = jnp.maximum(mm(x1.astype(jnp.bfloat16), w1) + b1, 0.0)
    ff = mm(h1.astype(jnp.bfloat16), w2) + b2

    # ---- residual + LayerNorm 2, single full-block store ------------------------------
    x2 = layer_norm(x1 + ff, g2, be2)
    o_ref[...] = x2.reshape(bt, S, E).astype(o_ref.dtype)


def attention_block(x_sbe, params, *, num_heads):
    """x_sbe: (S, B, E) float32, PyTorch nn.MultiheadAttention (seq-first) layout."""
    S, B, E = x_sbe.shape
    H = num_heads
    D = E // H
    scale = 1.0 / math.sqrt(D)

    # ---- one-time weight prep (XLA side): pack Q|K|V on lanes, fold 1/sqrt(D) --------
    w_in, b_in = params["w_in"], params["b_in"]                # (3E, E), (3E,)
    wqkv = jnp.concatenate(
        [w_in[:E].T * scale, w_in[E:2 * E].T, w_in[2 * E:].T], axis=1
    ).astype(jnp.bfloat16)                                     # (E, 3E)
    bqkv = jnp.concatenate(
        [b_in[:E] * scale, b_in[E:2 * E], b_in[2 * E:]]
    ).reshape(1, 3 * E).astype(jnp.float32)

    wo = params["w_out"].T.astype(jnp.bfloat16)                # (E, E)
    bo = params["b_out"].reshape(1, E).astype(jnp.float32)

    # TODO(synk): on v7x the FFN/out-proj weights could be pre-quantized to fp8 with
    # per-output-channel scales for ~2x MXU throughput; skipped here (numerics change).
    w1 = params["w_ff1"].T.astype(jnp.bfloat16)                # (E, 4E)
    b1 = params["b_ff1"].reshape(1, 4 * E).astype(jnp.float32)
    w2 = params["w_ff2"].T.astype(jnp.bfloat16)                # (4E, E)
    b2 = params["b_ff2"].reshape(1, E).astype(jnp.float32)
    ln1w = params["ln1_w"].reshape(1, E); ln1b = params["ln1_b"].reshape(1, E)
    ln2w = params["ln2_w"].reshape(1, E); ln2b = params["ln2_b"].reshape(1, E)

    weights = (wqkv, bqkv, wo, bo, ln1w, ln1b, w1, b1, w2, b2, ln2w, ln2b)

    # ---- VMEM budget: derive limit from hardware, leave compiler headroom ------------
    try:
        vmem_cap = int(pltpu.get_tpu_info().vmem_capacity_bytes)
    except Exception:
        vmem_cap = 64 * 1024 * 1024            # v7x per-TensorCore floor
    vmem_limit = int(vmem_cap * 0.85)

    # ---- size the batch tile from the VMEM budget ------------------------------------
    weight_bytes = 2 * sum(int(a.size) * a.dtype.itemsize for a in weights)  # worst case
    act_budget = max(vmem_limit - weight_bytes, 4 * 1024 * 1024)
    per_b = 88 * S * E + 10 * H * S * S        # ~f32/bf16 intermediates per batch elem
    bt = max(1, min(B, act_budget // max(per_b, 1)))
    while bt > 1 and pl.cdiv(B, bt) < 2:       # >= 2 parallel steps -> both v7x TCs busy
        bt -= 1
    while B % bt:                              # avoid padded partial blocks
        bt -= 1
    bt = int(bt)
    grid = (B // bt,)

    # (S, B, E) -> (B, S, E): keeps all in-kernel reshapes leading-dim/layout-preserving
    # and the (bt, S, E) block lane/sublane aligned.
    x_bse = jnp.transpose(x_sbe, (1, 0, 2))

    kernel = functools.partial(attention_block_kernel, num_heads=num_heads)

    def run(single_buffer_weights):
        def const_spec(a):
            n = a.ndim
            idx = lambda i, _n=n: (0,) * _n
            if single_buffer_weights:
                # grid-invariant weights: single-buffer to halve resident weight VMEM
                return pl.BlockSpec(a.shape, idx, pipeline_mode=pl.Buffered(1))
            return pl.BlockSpec(a.shape, idx)

        return pl.pallas_call(
            kernel,
            out_shape=jax.ShapeDtypeStruct((B, S, E), jnp.float32),
            grid=grid,
            in_specs=[pl.BlockSpec((bt, S, E), lambda i: (i, 0, 0))]
                     + [const_spec(a) for a in weights],
            out_specs=pl.BlockSpec((bt, S, E), lambda i: (i, 0, 0)),
            compiler_params=pltpu.CompilerParams(
                dimension_semantics=("parallel",),
                vmem_limit_bytes=vmem_limit,
            ),
        )(x_bse, *weights)

    try:
        out_bse = run(single_buffer_weights=True)
    except Exception:
        # fall back to default (double-buffered) weight specs if Buffered(1) is rejected
        out_bse = run(single_buffer_weights=False)

    return jnp.transpose(out_bse, (1, 0, 2))                   # back to (S, B, E)


def init_params(key, embed_dim):
    """Parameters in PyTorch layouts: in_proj (3E,E), out_proj (E,E), Linear (out,in)."""
    E = embed_dim
    ks = jax.random.split(key, 8)
    s = 0.02
    return {
        "w_in":  s * jax.random.normal(ks[0], (3 * E, E), jnp.float32),
        "b_in":  s * jax.random.normal(ks[1], (3 * E,), jnp.float32),
        "w_out": s * jax.random.normal(ks[2], (E, E), jnp.float32),
        "b_out": s * jax.random.normal(ks[3], (E,), jnp.float32),
        "ln1_w": jnp.ones((E,), jnp.float32),
        "ln1_b": jnp.zeros((E,), jnp.float32),
        "w_ff1": s * jax.random.normal(ks[4], (4 * E, E), jnp.float32),
        "b_ff1": s * jax.random.normal(ks[5], (4 * E,), jnp.float32),
        "w_ff2": s * jax.random.normal(ks[6], (E, 4 * E), jnp.float32),
        "b_ff2": s * jax.random.normal(ks[7], (E,), jnp.float32),
        "ln2_w": jnp.ones((E,), jnp.float32),
        "ln2_b": jnp.zeros((E,), jnp.float32),
    }


def reference(x_sbe, p, *, num_heads, eps=1e-5):
    """Pure-JAX f32 reference matching nn.MultiheadAttention + LayerNorm + FFN."""
    S, B, E = x_sbe.shape
    H = num_heads
    D = E // H
    x = jnp.transpose(x_sbe, (1, 0, 2))                        # (B, S, E)
    qkv = x @ p["w_in"].T + p["b_in"]                          # (B, S, 3E)
    q, k, v = qkv[..., :E], qkv[..., E:2 * E], qkv[..., 2 * E:]

    def split(t):                                              # (B,S,E) -> (B,H,S,D)
        return jnp.transpose(t.reshape(B, S, H, D), (0, 2, 1, 3))

    qh, kh, vh = split(q), split(k), split(v)
    scores = jnp.einsum("bhsd,bhtd->bhst", qh, kh) / math.sqrt(D)
    w = jax.nn.softmax(scores, axis=-1)
    o = jnp.einsum("bhst,bhtd->bhsd", w, vh)
    o = jnp.transpose(o, (0, 2, 1, 3)).reshape(B, S, E)
    attended = o @ p["w_out"].T + p["b_out"]

    def ln(y, g, b):
        mu = jnp.mean(y, axis=-1, keepdims=True)
        var = jnp.mean((y - mu) ** 2, axis=-1, keepdims=True)
        return (y - mu) * jax.lax.rsqrt(var + eps) * g + b

    x1 = ln(x + attended, p["ln1_w"], p["ln1_b"])
    ff = jnp.maximum(x1 @ p["w_ff1"].T + p["b_ff1"], 0.0) @ p["w_ff2"].T + p["b_ff2"]
    x2 = ln(x1 + ff, p["ln2_w"], p["ln2_b"])
    return jnp.transpose(x2, (1, 0, 2))                        # (S, B, E)


if __name__ == "__main__":
    S, B, E, H = 8, 2, 32, 8        # seq=8, batch=2, embed_dim=32, num_heads=8
    key = jax.random.PRNGKey(0)
    kx, kp = jax.random.split(key)
    x = jax.random.normal(kx, (S, B, E), jnp.float32)
    params = init_params(kp, E)

    out = attention_block(x, params, num_heads=H)
    out = jax.block_until_ready(out)

    ref = reference(x, params, num_heads=H)
    assert out.shape == (S, B, E)
    max_err = float(jnp.max(jnp.abs(out - ref)))
    # bf16 MXU inputs with f32 accumulation + approx reciprocal -> small numeric delta
    assert jnp.allclose(out, ref, atol=2e-2, rtol=2e-2), f"mismatch vs reference: {max_err}"
    print("KERNEL_OK")
</pallas_src>

<mosaic_0001>
module attributes {stable_mosaic.version = 11 : i64} {
  func.func @attention_block_kernel(%arg0: i32, %arg1: memref<1x8x32xf32, #tpu.memory_space<vmem>>, %arg2: memref<32x96xbf16, #tpu.memory_space<vmem>>, %arg3: memref<1x96xf32, #tpu.memory_space<vmem>>, %arg4: memref<32x32xbf16, #tpu.memory_space<vmem>>, %arg5: memref<1x32xf32, #tpu.memory_space<vmem>>, %arg6: memref<1x32xf32, #tpu.memory_space<vmem>>, %arg7: memref<1x32xf32, #tpu.memory_space<vmem>>, %arg8: memref<32x128xbf16, #tpu.memory_space<vmem>>, %arg9: memref<1x128xf32, #tpu.memory_space<vmem>>, %arg10: memref<128x32xbf16, #tpu.memory_space<vmem>>, %arg11: memref<1x32xf32, #tpu.memory_space<vmem>>, %arg12: memref<1x32xf32, #tpu.memory_space<vmem>>, %arg13: memref<1x32xf32, #tpu.memory_space<vmem>>, %arg14: memref<1x8x32xf32, #tpu.memory_space<vmem>>) attributes {dimension_semantics = [#tpu.dimension_semantics<parallel>], iteration_bounds = array<i64: 2>, scalar_prefetch = 0 : i64, scratch_operands = 0 : i64, tpu.core_type = #tpu.core_type<tc>, window_params = [{transform_indices = @transform_0, window_bounds = array<i64: 1, 8, 32>}, {pipeline_mode = #tpu.pipeline_mode<synchronous>, transform_indices = @transform_1, window_bounds = array<i64: 32, 96>}, {pipeline_mode = #tpu.pipeline_mode<synchronous>, transform_indices = @transform_2, window_bounds = array<i64: 1, 96>}, {pipeline_mode = #tpu.pipeline_mode<synchronous>, transform_indices = @transform_3, window_bounds = array<i64: 32, 32>}, {pipeline_mode = #tpu.pipeline_mode<synchronous>, transform_indices = @transform_4, window_bounds = array<i64: 1, 32>}, {pipeline_mode = #tpu.pipeline_mode<synchronous>, transform_indices = @transform_5, window_bounds = array<i64: 1, 32>}, {pipeline_mode = #tpu.pipeline_mode<synchronous>, transform_indices = @transform_6, window_bounds = array<i64: 1, 32>}, {pipeline_mode = #tpu.pipeline_mode<synchronous>, transform_indices = @transform_7, window_bounds = array<i64: 32, 128>}, {pipeline_mode = #tpu.pipeline_mode<synchronous>, transform_indices = @transform_8, window_bounds = array<i64: 1, 128>}, {pipeline_mode = #tpu.pipeline_mode<synchronous>, transform_indices = @transform_9, window_bounds = array<i64: 128, 32>}, {pipeline_mode = #tpu.pipeline_mode<synchronous>, transform_indices = @transform_10, window_bounds = array<i64: 1, 32>}, {pipeline_mode = #tpu.pipeline_mode<synchronous>, transform_indices = @transform_11, window_bounds = array<i64: 1, 32>}, {pipeline_mode = #tpu.pipeline_mode<synchronous>, transform_indices = @transform_12, window_bounds = array<i64: 1, 32>}, {transform_indices = @transform_13, window_bounds = array<i64: 1, 8, 32>}]} {
    %c0 = arith.constant 0 : index
    %c0_0 = arith.constant 0 : index
    %0 = vector.load %arg2[%c0, %c0_0] : memref<32x96xbf16, #tpu.memory_space<vmem>>, vector<32x96xbf16>
    %c0_1 = arith.constant 0 : index
    %c0_2 = arith.constant 0 : index
    %1 = vector.load %arg3[%c0_1, %c0_2] : memref<1x96xf32, #tpu.memory_space<vmem>>, vector<1x96xf32>
    %c0_3 = arith.constant 0 : index
    %c0_4 = arith.constant 0 : index
    %2 = vector.load %arg4[%c0_3, %c0_4] : memref<32x32xbf16, #tpu.memory_space<vmem>>, vector<32x32xbf16>
    %c0_5 = arith.constant 0 : index
    %c0_6 = arith.constant 0 : index
    %3 = vector.load %arg5[%c0_5, %c0_6] : memref<1x32xf32, #tpu.memory_space<vmem>>, vector<1x32xf32>
    %c0_7 = arith.constant 0 : index
    %c0_8 = arith.constant 0 : index
    %4 = vector.load %arg6[%c0_7, %c0_8] : memref<1x32xf32, #tpu.memory_space<vmem>>, vector<1x32xf32>
    %c0_9 = arith.constant 0 : index
    %c0_10 = arith.constant 0 : index
    %5 = vector.load %arg7[%c0_9, %c0_10] : memref<1x32xf32, #tpu.memory_space<vmem>>, vector<1x32xf32>
    %c0_11 = arith.constant 0 : index
    %c0_12 = arith.constant 0 : index
    %6 = vector.load %arg8[%c0_11, %c0_12] : memref<32x128xbf16, #tpu.memory_space<vmem>>, vector<32x128xbf16>
    %c0_13 = arith.constant 0 : index
    %c0_14 = arith.constant 0 : index
    %7 = vector.load %arg9[%c0_13, %c0_14] : memref<1x128xf32, #tpu.memory_space<vmem>>, vector<1x128xf32>
    %c0_15 = arith.constant 0 : index
    %c0_16 = arith.constant 0 : index
    %8 = vector.load %arg10[%c0_15, %c0_16] : memref<128x32xbf16, #tpu.memory_space<vmem>>, vector<128x32xbf16>
    %c0_17 = arith.constant 0 : index
    %c0_18 = arith.constant 0 : index
    %9 = vector.load %arg11[%c0_17, %c0_18] : memref<1x32xf32, #tpu.memory_space<vmem>>, vector<1x32xf32>
    %c0_19 = arith.constant 0 : index
    %c0_20 = arith.constant 0 : index
    %10 = vector.load %arg12[%c0_19, %c0_20] : memref<1x32xf32, #tpu.memory_space<vmem>>, vector<1x32xf32>
    %c0_21 = arith.constant 0 : index
    %c0_22 = arith.constant 0 : index
    %11 = vector.load %arg13[%c0_21, %c0_22] : memref<1x32xf32, #tpu.memory_space<vmem>>, vector<1x32xf32>
    %c0_23 = arith.constant 0 : index
    %c0_24 = arith.constant 0 : index
    %c0_25 = arith.constant 0 : index
    %12 = vector.load %arg1[%c0_23, %c0_24, %c0_25] : memref<1x8x32xf32, #tpu.memory_space<vmem>>, vector<1x8x32xf32>
    %13 = vector.shape_cast %12 : vector<1x8x32xf32> to vector<8x32xf32>
    %14 = arith.truncf %13 : vector<8x32xf32> to vector<8x32xbf16>
    %cst = arith.constant dense<0.000000e+00> : vector<8x96xf32>
    %15 = tpu.matmul %14, %0, %cst {dimension_numbers = #tpu.dot_dimension_numbers<[1], [0], [0], [1], [0, 0, 1, 1], [], []>} : vector<8x32xbf16>, vector<32x96xbf16>, vector<8x96xf32> -> vector<8x96xf32>
    %16 = vector.broadcast %1 : vector<1x96xf32> to vector<8x96xf32>
    %17 = arith.addf %15, %16 : vector<8x96xf32>
    %18 = arith.truncf %17 : vector<8x96xf32> to vector<8x96xbf16>
    %19 = vector.extract_strided_slice %18 {offsets = [0, 0], sizes = [8, 4], strides = [1, 1]} : vector<8x96xbf16> to vector<8x4xbf16>
    %20 = vector.shape_cast %19 : vector<8x4xbf16> to vector<1x1x8x4xbf16>
    %21 = vector.extract_strided_slice %18 {offsets = [0, 4], sizes = [8, 4], strides = [1, 1]} : vector<8x96xbf16> to vector<8x4xbf16>
    %22 = vector.shape_cast %21 : vector<8x4xbf16> to vector<1x1x8x4xbf16>
    %23 = vector.extract_strided_slice %18 {offsets = [0, 8], sizes = [8, 4], strides = [1, 1]} : vector<8x96xbf16> to vector<8x4xbf16>
    %24 = vector.shape_cast %23 : vector<8x4xbf16> to vector<1x1x8x4xbf16>
    %25 = vector.extract_strided_slice %18 {offsets = [0, 12], sizes = [8, 4], strides = [1, 1]} : vector<8x96xbf16> to vector<8x4xbf16>
    %26 = vector.shape_cast %25 : vector<8x4xbf16> to vector<1x1x8x4xbf16>
    %27 = vector.extract_strided_slice %18 {offsets = [0, 16], sizes = [8, 4], strides = [1, 1]} : vector<8x96xbf16> to vector<8x4xbf16>
    %28 = vector.shape_cast %27 : vector<8x4xbf16> to vector<1x1x8x4xbf16>
    %29 = vector.extract_strided_slice %18 {offsets = [0, 20], sizes = [8, 4], strides = [1, 1]} : vector<8x96xbf16> to vector<8x4xbf16>
    %30 = vector.shape_cast %29 : vector<8x4xbf16> to vector<1x1x8x4xbf16>
    %31 = vector.extract_strided_slice %18 {offsets = [0, 24], sizes = [8, 4], strides = [1, 1]} : vector<8x96xbf16> to vector<8x4xbf16>
    %32 = vector.shape_cast %31 : vector<8x4xbf16> to vector<1x1x8x4xbf16>
    %33 = vector.extract_strided_slice %18 {offsets = [0, 28], sizes = [8, 4], strides = [1, 1]} : vector<8x96xbf16> to vector<8x4xbf16>
    %34 = vector.shape_cast %33 : vector<8x4xbf16> to vector<1x1x8x4xbf16>
    %35 = tpu.concatenate %20, %22, %24, %26, %28, %30, %32, %34 in 0 : vector<1x1x8x4xbf16>, vector<1x1x8x4xbf16>, vector<1x1x8x4xbf16>, vector<1x1x8x4xbf16>, vector<1x1x8x4xbf16>, vector<1x1x8x4xbf16>, vector<1x1x8x4xbf16>, vector<1x1x8x4xbf16> -> vector<8x1x8x4xbf16>
    %36 = vector.shape_cast %35 : vector<8x1x8x4xbf16> to vector<8x8x4xbf16>
    %37 = vector.extract_strided_slice %18 {offsets = [0, 32], sizes = [8, 4], strides = [1, 1]} : vector<8x96xbf16> to vector<8x4xbf16>
    %38 = vector.shape_cast %37 : vector<8x4xbf16> to vector<1x1x8x4xbf16>
    %39 = vector.extract_strided_slice %18 {offsets = [0, 36], sizes = [8, 4], strides = [1, 1]} : vector<8x96xbf16> to vector<8x4xbf16>
    %40 = vector.shape_cast %39 : vector<8x4xbf16> to vector<1x1x8x4xbf16>
    %41 = vector.extract_strided_slice %18 {offsets = [0, 40], sizes = [8, 4], strides = [1, 1]} : vector<8x96xbf16> to vector<8x4xbf16>
    %42 = vector.shape_cast %41 : vector<8x4xbf16> to vector<1x1x8x4xbf16>
    %43 = vector.extract_strided_slice %18 {offsets = [0, 44], sizes = [8, 4], strides = [1, 1]} : vector<8x96xbf16> to vector<8x4xbf16>
    %44 = vector.shape_cast %43 : vector<8x4xbf16> to vector<1x1x8x4xbf16>
    %45 = vector.extract_strided_slice %18 {offsets = [0, 48], sizes = [8, 4], strides = [1, 1]} : vector<8x96xbf16> to vector<8x4xbf16>
    %46 = vector.shape_cast %45 : vector<8x4xbf16> to vector<1x1x8x4xbf16>
    %47 = vector.extract_strided_slice %18 {offsets = [0, 52], sizes = [8, 4], strides = [1, 1]} : vector<8x96xbf16> to vector<8x4xbf16>
    %48 = vector.shape_cast %47 : vector<8x4xbf16> to vector<1x1x8x4xbf16>
    %49 = vector.extract_strided_slice %18 {offsets = [0, 56], sizes = [8, 4], strides = [1, 1]} : vector<8x96xbf16> to vector<8x4xbf16>
    %50 = vector.shape_cast %49 : vector<8x4xbf16> to vector<1x1x8x4xbf16>
    %51 = vector.extract_strided_slice %18 {offsets = [0, 60], sizes = [8, 4], strides = [1, 1]} : vector<8x96xbf16> to vector<8x4xbf16>
    %52 = vector.shape_cast %51 : vector<8x4xbf16> to vector<1x1x8x4xbf16>
    %53 = tpu.concatenate %38, %40, %42, %44, %46, %48, %50, %52 in 0 : vector<1x1x8x4xbf16>, vector<1x1x8x4xbf16>, vector<1x1x8x4xbf16>, vector<1x1x8x4xbf16>, vector<1x1x8x4xbf16>, vector<1x1x8x4xbf16>, vector<1x1x8x4xbf16>, vector<1x1x8x4xbf16> -> vector<8x1x8x4xbf16>
    %54 = vector.shape_cast %53 : vector<8x1x8x4xbf16> to vector<8x8x4xbf16>
    %55 = vector.extract_strided_slice %18 {offsets = [0, 64], sizes = [8, 4], strides = [1, 1]} : vector<8x96xbf16> to vector<8x4xbf16>
    %56 = vector.shape_cast %55 : vector<8x4xbf16> to vector<1x1x8x4xbf16>
    %57 = vector.extract_strided_slice %18 {offsets = [0, 68], sizes = [8, 4], strides = [1, 1]} : vector<8x96xbf16> to vector<8x4xbf16>
    %58 = vector.shape_cast %57 : vector<8x4xbf16> to vector<1x1x8x4xbf16>
    %59 = vector.extract_strided_slice %18 {offsets = [0, 72], sizes = [8, 4], strides = [1, 1]} : vector<8x96xbf16> to vector<8x4xbf16>
    %60 = vector.shape_cast %59 : vector<8x4xbf16> to vector<1x1x8x4xbf16>
    %61 = vector.extract_strided_slice %18 {offsets = [0, 76], sizes = [8, 4], strides = [1, 1]} : vector<8x96xbf16> to vector<8x4xbf16>
    %62 = vector.shape_cast %61 : vector<8x4xbf16> to vector<1x1x8x4xbf16>
    %63 = vector.extract_strided_slice %18 {offsets = [0, 80], sizes = [8, 4], strides = [1, 1]} : vector<8x96xbf16> to vector<8x4xbf16>
    %64 = vector.shape_cast %63 : vector<8x4xbf16> to vector<1x1x8x4xbf16>
    %65 = vector.extract_strided_slice %18 {offsets = [0, 84], sizes = [8, 4], strides = [1, 1]} : vector<8x96xbf16> to vector<8x4xbf16>
    %66 = vector.shape_cast %65 : vector<8x4xbf16> to vector<1x1x8x4xbf16>
    %67 = vector.extract_strided_slice %18 {offsets = [0, 88], sizes = [8, 4], strides = [1, 1]} : vector<8x96xbf16> to vector<8x4xbf16>
    %68 = vector.shape_cast %67 : vector<8x4xbf16> to vector<1x1x8x4xbf16>
    %69 = vector.extract_strided_slice %18 {offsets = [0, 92], sizes = [8, 4], strides = [1, 1]} : vector<8x96xbf16> to vector<8x4xbf16>
    %70 = vector.shape_cast %69 : vector<8x4xbf16> to vector<1x1x8x4xbf16>
    %71 = tpu.concatenate %56, %58, %60, %62, %64, %66, %68, %70 in 0 : vector<1x1x8x4xbf16>, vector<1x1x8x4xbf16>, vector<1x1x8x4xbf16>, vector<1x1x8x4xbf16>, vector<1x1x8x4xbf16>, vector<1x1x8x4xbf16>, vector<1x1x8x4xbf16>, vector<1x1x8x4xbf16> -> vector<8x1x8x4xbf16>
    %72 = vector.shape_cast %71 : vector<8x1x8x4xbf16> to vector<8x8x4xbf16>
    %cst_26 = arith.constant dense<0.000000e+00> : vector<8x8x8xf32>
    %73 = tpu.matmul %36, %54, %cst_26 {dimension_numbers = #tpu.dot_dimension_numbers<[2], [2], [1], [1], [0, 0, 0, 1, 1, 1], [0], [0]>} : vector<8x8x4xbf16>, vector<8x8x4xbf16>, vector<8x8x8xf32> -> vector<8x8x8xf32>
    %cst_27 = arith.constant dense<0xFF800000> : vector<8x8xf32>
    %74 = vector.multi_reduction <maximumf>, %73, %cst_27 [2] : vector<8x8x8xf32> to vector<8x8xf32>
    %75 = vector.shape_cast %74 : vector<8x8xf32> to vector<8x8x1xf32>
    %76 = vector.broadcast %75 : vector<8x8x1xf32> to vector<8x8x8xf32>
    %77 = arith.subf %73, %76 : vector<8x8x8xf32>
    %78 = math.exp %77 : vector<8x8x8xf32>
    %cst_28 = arith.constant dense<0.000000e+00> : vector<8x8xf32>
    %79 = vector.multi_reduction <add>, %78, %cst_28 [2] : vector<8x8x8xf32> to vector<8x8xf32>
    %80 = vector.shape_cast %79 : vector<8x8xf32> to vector<8x8x1xf32>
    %81 = tpu.reciprocal %80 {approx = true} : vector<8x8x1xf32> -> vector<8x8x1xf32>
    %82 = vector.broadcast %81 : vector<8x8x1xf32> to vector<8x8x8xf32>
    %83 = arith.mulf %78, %82 : vector<8x8x8xf32>
    %84 = arith.truncf %83 : vector<8x8x8xf32> to vector<8x8x8xbf16>
    %cst_29 = arith.constant dense<0.000000e+00> : vector<8x8x4xf32>
    %85 = tpu.matmul %84, %72, %cst_29 {dimension_numbers = #tpu.dot_dimension_numbers<[2], [1], [1], [2], [0, 0, 0, 1, 1, 2], [0], [0]>} : vector<8x8x8xbf16>, vector<8x8x4xbf16>, vector<8x8x4xf32> -> vector<8x8x4xf32>
    %86 = arith.truncf %85 : vector<8x8x4xf32> to vector<8x8x4xbf16>
    %87 = vector.shape_cast %86 : vector<8x8x4xbf16> to vector<8x1x8x4xbf16>
    %88 = vector.extract_strided_slice %87 {offsets = [0, 0, 0, 0], sizes = [1, 1, 8, 4], strides = [1, 1, 1, 1]} : vector<8x1x8x4xbf16> to vector<1x1x8x4xbf16>
    %89 = vector.shape_cast %88 : vector<1x1x8x4xbf16> to vector<1x8x4xbf16>
    %90 = vector.shape_cast %89 : vector<1x8x4xbf16> to vector<8x4xbf16>
    %91 = vector.extract_strided_slice %87 {offsets = [1, 0, 0, 0], sizes = [1, 1, 8, 4], strides = [1, 1, 1, 1]} : vector<8x1x8x4xbf16> to vector<1x1x8x4xbf16>
    %92 = vector.shape_cast %91 : vector<1x1x8x4xbf16> to vector<1x8x4xbf16>
    %93 = vector.shape_cast %92 : vector<1x8x4xbf16> to vector<8x4xbf16>
    %94 = vector.extract_strided_slice %87 {offsets = [2, 0, 0, 0], sizes = [1, 1, 8, 4], strides = [1, 1, 1, 1]} : vector<8x1x8x4xbf16> to vector<1x1x8x4xbf16>
    %95 = vector.shape_cast %94 : vector<1x1x8x4xbf16> to vector<1x8x4xbf16>
    %96 = vector.shape_cast %95 : vector<1x8x4xbf16> to vector<8x4xbf16>
    %97 = vector.extract_strided_slice %87 {offsets = [3, 0, 0, 0], sizes = [1, 1, 8, 4], strides = [1, 1, 1, 1]} : vector<8x1x8x4xbf16> to vector<1x1x8x4xbf16>
    %98 = vector.shape_cast %97 : vector<1x1x8x4xbf16> to vector<1x8x4xbf16>
    %99 = vector.shape_cast %98 : vector<1x8x4xbf16> to vector<8x4xbf16>
    %100 = vector.extract_strided_slice %87 {offsets = [4, 0, 0, 0], sizes = [1, 1, 8, 4], strides = [1, 1, 1, 1]} : vector<8x1x8x4xbf16> to vector<1x1x8x4xbf16>
    %101 = vector.shape_cast %100 : vector<1x1x8x4xbf16> to vector<1x8x4xbf16>
    %102 = vector.shape_cast %101 : vector<1x8x4xbf16> to vector<8x4xbf16>
    %103 = vector.extract_strided_slice %87 {offsets = [5, 0, 0, 0], sizes = [1, 1, 8, 4], strides = [1, 1, 1, 1]} : vector<8x1x8x4xbf16> to vector<1x1x8x4xbf16>
    %104 = vector.shape_cast %103 : vector<1x1x8x4xbf16> to vector<1x8x4xbf16>
    %105 = vector.shape_cast %104 : vector<1x8x4xbf16> to vector<8x4xbf16>
    %106 = vector.extract_strided_slice %87 {offsets = [6, 0, 0, 0], sizes = [1, 1, 8, 4], strides = [1, 1, 1, 1]} : vector<8x1x8x4xbf16> to vector<1x1x8x4xbf16>
    %107 = vector.shape_cast %106 : vector<1x1x8x4xbf16> to vector<1x8x4xbf16>
    %108 = vector.shape_cast %107 : vector<1x8x4xbf16> to vector<8x4xbf16>
    %109 = vector.extract_strided_slice %87 {offsets = [7, 0, 0, 0], sizes = [1, 1, 8, 4], strides = [1, 1, 1, 1]} : vector<8x1x8x4xbf16> to vector<1x1x8x4xbf16>
    %110 = vector.shape_cast %109 : vector<1x1x8x4xbf16> to vector<1x8x4xbf16>
    %111 = vector.shape_cast %110 : vector<1x8x4xbf16> to vector<8x4xbf16>
    %112 = tpu.concatenate %90, %93, %96, %99, %102, %105, %108, %111 in 1 : vector<8x4xbf16>, vector<8x4xbf16>, vector<8x4xbf16>, vector<8x4xbf16>, vector<8x4xbf16>, vector<8x4xbf16>, vector<8x4xbf16>, vector<8x4xbf16> -> vector<8x32xbf16>
    %cst_30 = arith.constant dense<0.000000e+00> : vector<8x32xf32>
    %113 = tpu.matmul %112, %2, %cst_30 {dimension_numbers = #tpu.dot_dimension_numbers<[1], [0], [0], [1], [0, 0, 1, 1], [], []>} : vector<8x32xbf16>, vector<32x32xbf16>, vector<8x32xf32> -> vector<8x32xf32>
    %114 = vector.broadcast %3 : vector<1x32xf32> to vector<8x32xf32>
    %115 = arith.addf %113, %114 : vector<8x32xf32>
    %116 = arith.addf %13, %115 : vector<8x32xf32>
    %cst_31 = arith.constant dense<0.000000e+00> : vector<8xf32>
    %117 = vector.multi_reduction <add>, %116, %cst_31 [1] : vector<8x32xf32> to vector<8xf32>
    %118 = vector.shape_cast %117 : vector<8xf32> to vector<8x1xf32>
    %cst_32 = arith.constant 3.200000e+01 : f32
    %119 = vector.broadcast %cst_32 : f32 to vector<8x1xf32>
    %120 = arith.divf %118, %119 : vector<8x1xf32>
    %121 = vector.broadcast %120 : vector<8x1xf32> to vector<8x32xf32>
    %122 = arith.subf %116, %121 : vector<8x32xf32>
    %123 = arith.mulf %122, %122 : vector<8x32xf32>
    %cst_33 = arith.constant dense<0.000000e+00> : vector<8xf32>
    %124 = vector.multi_reduction <add>, %123, %cst_33 [1] : vector<8x32xf32> to vector<8xf32>
    %125 = vector.shape_cast %124 : vector<8xf32> to vector<8x1xf32>
    %cst_34 = arith.constant 3.200000e+01 : f32
    %126 = vector.broadcast %cst_34 : f32 to vector<8x1xf32>
    %127 = arith.divf %125, %126 : vector<8x1xf32>
    %128 = vector.broadcast %120 : vector<8x1xf32> to vector<8x32xf32>
    %129 = arith.subf %116, %128 : vector<8x32xf32>
    %cst_35 = arith.constant 9.99999974E-6 : f32
    %130 = vector.broadcast %cst_35 : f32 to vector<8x1xf32>
    %131 = arith.addf %127, %130 : vector<8x1xf32>
    %132 = math.rsqrt %131 : vector<8x1xf32>
    %133 = vector.broadcast %132 : vector<8x1xf32> to vector<8x32xf32>
    %134 = arith.mulf %129, %133 : vector<8x32xf32>
    %135 = vector.broadcast %4 : vector<1x32xf32> to vector<8x32xf32>
    %136 = arith.mulf %134, %135 : vector<8x32xf32>
    %137 = vector.broadcast %5 : vector<1x32xf32> to vector<8x32xf32>
    %138 = arith.addf %136, %137 : vector<8x32xf32>
    %139 = arith.truncf %138 : vector<8x32xf32> to vector<8x32xbf16>
    %cst_36 = arith.constant dense<0.000000e+00> : vector<8x128xf32>
    %140 = tpu.matmul %139, %6, %cst_36 {dimension_numbers = #tpu.dot_dimension_numbers<[1], [0], [0], [1], [0, 0, 1, 1], [], []>} : vector<8x32xbf16>, vector<32x128xbf16>, vector<8x128xf32> -> vector<8x128xf32>
    %141 = vector.broadcast %7 : vector<1x128xf32> to vector<8x128xf32>
    %142 = arith.addf %140, %141 : vector<8x128xf32>
    %cst_37 = arith.constant 0.000000e+00 : f32
    %143 = vector.broadcast %cst_37 : f32 to vector<8x128xf32>
    %144 = arith.maximumf %142, %143 : vector<8x128xf32>
    %145 = arith.truncf %144 : vector<8x128xf32> to vector<8x128xbf16>
    %cst_38 = arith.constant dense<0.000000e+00> : vector<8x32xf32>
    %146 = tpu.matmul %145, %8, %cst_38 {dimension_numbers = #tpu.dot_dimension_numbers<[1], [0], [0], [1], [0, 0, 1, 1], [], []>} : vector<8x128xbf16>, vector<128x32xbf16>, vector<8x32xf32> -> vector<8x32xf32>
    %147 = vector.broadcast %9 : vector<1x32xf32> to vector<8x32xf32>
    %148 = arith.addf %146, %147 : vector<8x32xf32>
    %149 = arith.addf %138, %148 : vector<8x32xf32>
    %cst_39 = arith.constant dense<0.000000e+00> : vector<8xf32>
    %150 = vector.multi_reduction <add>, %149, %cst_39 [1] : vector<8x32xf32> to vector<8xf32>
    %151 = vector.shape_cast %150 : vector<8xf32> to vector<8x1xf32>
    %cst_40 = arith.constant 3.200000e+01 : f32
    %152 = vector.broadcast %cst_40 : f32 to vector<8x1xf32>
    %153 = arith.divf %151, %152 : vector<8x1xf32>
    %154 = vector.broadcast %153 : vector<8x1xf32> to vector<8x32xf32>
    %155 = arith.subf %149, %154 : vector<8x32xf32>
    %156 = arith.mulf %155, %155 : vector<8x32xf32>
    %cst_41 = arith.constant dense<0.000000e+00> : vector<8xf32>
    %157 = vector.multi_reduction <add>, %156, %cst_41 [1] : vector<8x32xf32> to vector<8xf32>
    %158 = vector.shape_cast %157 : vector<8xf32> to vector<8x1xf32>
    %cst_42 = arith.constant 3.200000e+01 : f32
    %159 = vector.broadcast %cst_42 : f32 to vector<8x1xf32>
    %160 = arith.divf %158, %159 : vector<8x1xf32>
    %161 = vector.broadcast %153 : vector<8x1xf32> to vector<8x32xf32>
    %162 = arith.subf %149, %161 : vector<8x32xf32>
    %cst_43 = arith.constant 9.99999974E-6 : f32
    %163 = vector.broadcast %cst_43 : f32 to vector<8x1xf32>
    %164 = arith.addf %160, %163 : vector<8x1xf32>
    %165 = math.rsqrt %164 : vector<8x1xf32>
    %166 = vector.broadcast %165 : vector<8x1xf32> to vector<8x32xf32>
    %167 = arith.mulf %162, %166 : vector<8x32xf32>
    %168 = vector.broadcast %10 : vector<1x32xf32> to vector<8x32xf32>
    %169 = arith.mulf %167, %168 : vector<8x32xf32>
    %170 = vector.broadcast %11 : vector<1x32xf32> to vector<8x32xf32>
    %171 = arith.addf %169, %170 : vector<8x32xf32>
    %172 = vector.shape_cast %171 : vector<8x32xf32> to vector<1x8x32xf32>
    %c0_44 = arith.constant 0 : index
    %c0_45 = arith.constant 0 : index
    %c0_46 = arith.constant 0 : index
    %173 = vector.load %arg14[%c0_44, %c0_45, %c0_46] : memref<1x8x32xf32, #tpu.memory_space<vmem>>, vector<1x8x32xf32>
    tpu.vector_store %arg14[%c0_44, %c0_45, %c0_46], %172 {strides = array<i32>} : memref<1x8x32xf32, #tpu.memory_space<vmem>>, vector<1x8x32xf32>,
    return
  }
  func.func @transform_0(%arg0: i32) -> (i32, i32, i32) {
    %c0_i32 = arith.constant 0 : i32
    %c0_i32_0 = arith.constant 0 : i32
    %c0_i32_1 = arith.constant 0 : i32
    return %arg0, %c0_i32, %c0_i32_0 : i32, i32, i32
  }
  func.func @transform_1(%arg0: i32) -> (i32, i32) {
    %c0_i32 = arith.constant 0 : i32
    %c0_i32_0 = arith.constant 0 : i32
    %c0_i32_1 = arith.constant 0 : i32
    return %c0_i32, %c0_i32_0 : i32, i32
  }
  func.func @transform_2(%arg0: i32) -> (i32, i32) {
    %c0_i32 = arith.constant 0 : i32
    %c0_i32_0 = arith.constant 0 : i32
    %c0_i32_1 = arith.constant 0 : i32
    return %c0_i32, %c0_i32_0 : i32, i32
  }
  func.func @transform_3(%arg0: i32) -> (i32, i32) {
    %c0_i32 = arith.constant 0 : i32
    %c0_i32_0 = arith.constant 0 : i32
    %c0_i32_1 = arith.constant 0 : i32
    return %c0_i32, %c0_i32_0 : i32, i32
  }
  func.func @transform_4(%arg0: i32) -> (i32, i32) {
    %c0_i32 = arith.constant 0 : i32
    %c0_i32_0 = arith.constant 0 : i32
    %c0_i32_1 = arith.constant 0 : i32
    return %c0_i32, %c0_i32_0 : i32, i32
  }
  func.func @transform_5(%arg0: i32) -> (i32, i32) {
    %c0_i32 = arith.constant 0 : i32
    %c0_i32_0 = arith.constant 0 : i32
    %c0_i32_1 = arith.constant 0 : i32
    return %c0_i32, %c0_i32_0 : i32, i32
  }
  func.func @transform_6(%arg0: i32) -> (i32, i32) {
    %c0_i32 = arith.constant 0 : i32
    %c0_i32_0 = arith.constant 0 : i32
    %c0_i32_1 = arith.constant 0 : i32
    return %c0_i32, %c0_i32_0 : i32, i32
  }
  func.func @transform_7(%arg0: i32) -> (i32, i32) {
    %c0_i32 = arith.constant 0 : i32
    %c0_i32_0 = arith.constant 0 : i32
    %c0_i32_1 = arith.constant 0 : i32
    return %c0_i32, %c0_i32_0 : i32, i32
  }
  func.func @transform_8(%arg0: i32) -> (i32, i32) {
    %c0_i32 = arith.constant 0 : i32
    %c0_i32_0 = arith.constant 0 : i32
    %c0_i32_1 = arith.constant 0 : i32
    return %c0_i32, %c0_i32_0 : i32, i32
  }
  func.func @transform_9(%arg0: i32) -> (i32, i32) {
    %c0_i32 = arith.constant 0 : i32
    %c0_i32_0 = arith.constant 0 : i32
    %c0_i32_1 = arith.constant 0 : i32
    return %c0_i32, %c0_i32_0 : i32, i32
  }
  func.func @transform_10(%arg0: i32) -> (i32, i32) {
    %c0_i32 = arith.constant 0 : i32
    %c0_i32_0 = arith.constant 0 : i32
    %c0_i32_1 = arith.constant 0 : i32
    return %c0_i32, %c0_i32_0 : i32, i32
  }
  func.func @transform_11(%arg0: i32) -> (i32, i32) {
    %c0_i32 = arith.constant 0 : i32
    %c0_i32_0 = arith.constant 0 : i32
    %c0_i32_1 = arith.constant 0 : i32
    return %c0_i32, %c0_i32_0 : i32, i32
  }
  func.func @transform_12(%arg0: i32) -> (i32, i32) {
    %c0_i32 = arith.constant 0 : i32
    %c0_i32_0 = arith.constant 0 : i32
    %c0_i32_1 = arith.constant 0 : i32
    return %c0_i32, %c0_i32_0 : i32, i32
  }
  func.func @transform_13(%arg0: i32) -> (i32, i32, i32) {
    %c0_i32 = arith.constant 0 : i32
    %c0_i32_0 = arith.constant 0 : i32
    %c0_i32_1 = arith.constant 0 : i32
    return %arg0, %c0_i32, %c0_i32_0 : i32, i32, i32
  }
}

module attributes {stable_mosaic.version = 11 : i64} {
  func.func @attention_block_kernel(%arg0: i32, %arg1: memref<1x8x32xf32, #tpu.memory_space<vmem>>, %arg2: memref<32x96xbf16, #tpu.memory_space<vmem>>, %arg3: memref<1x96xf32, #tpu.memory_space<vmem>>, %arg4: memref<32x32xbf16, #tpu.memory_space<vmem>>, %arg5: memref<1x32xf32, #tpu.memory_space<vmem>>, %arg6: memref<1x32xf32, #tpu.memory_space<vmem>>, %arg7: memref<1x32xf32, #tpu.memory_space<vmem>>, %arg8: memref<32x128xbf16, #tpu.memory_space<vmem>>, %arg9: memref<1x128xf32, #tpu.memory_space<vmem>>, %arg10: memref<128x32xbf16, #tpu.memory_space<vmem>>, %arg11: memref<1x32xf32, #tpu.memory_space<vmem>>, %arg12: memref<1x32xf32, #tpu.memory_space<vmem>>, %arg13: memref<1x32xf32, #tpu.memory_space<vmem>>, %arg14: memref<1x8x32xf32, #tpu.memory_space<vmem>>) attributes {dimension_semantics = [#tpu.dimension_semantics<parallel>], iteration_bounds = array<i64: 2>, scalar_prefetch = 0 : i64, scratch_operands = 0 : i64, tpu.core_type = #tpu.core_type<tc>, window_params = [{transform_indices = @transform_0, window_bounds = array<i64: 1, 8, 32>}, {pipeline_mode = #tpu.pipeline_mode<synchronous>, transform_indices = @transform_1, window_bounds = array<i64: 32, 96>}, {pipeline_mode = #tpu.pipeline_mode<synchronous>, transform_indices = @transform_2, window_bounds = array<i64: 1, 96>}, {pipeline_mode = #tpu.pipeline_mode<synchronous>, transform_indices = @transform_3, window_bounds = array<i64: 32, 32>}, {pipeline_mode = #tpu.pipeline_mode<synchronous>, transform_indices = @transform_4, window_bounds = array<i64: 1, 32>}, {pipeline_mode = #tpu.pipeline_mode<synchronous>, transform_indices = @transform_5, window_bounds = array<i64: 1, 32>}, {pipeline_mode = #tpu.pipeline_mode<synchronous>, transform_indices = @transform_6, window_bounds = array<i64: 1, 32>}, {pipeline_mode = #tpu.pipeline_mode<synchronous>, transform_indices = @transform_7, window_bounds = array<i64: 32, 128>}, {pipeline_mode = #tpu.pipeline_mode<synchronous>, transform_indices = @transform_8, window_bounds = array<i64: 1, 128>}, {pipeline_mode = #tpu.pipeline_mode<synchronous>, transform_indices = @transform_9, window_bounds = array<i64: 128, 32>}, {pipeline_mode = #tpu.pipeline_mode<synchronous>, transform_indices = @transform_10, window_bounds = array<i64: 1, 32>}, {pipeline_mode = #tpu.pipeline_mode<synchronous>, transform_indices = @transform_11, window_bounds = array<i64: 1, 32>}, {pipeline_mode = #tpu.pipeline_mode<synchronous>, transform_indices = @transform_12, window_bounds = array<i64: 1, 32>}, {transform_indices = @transform_13, window_bounds = array<i64: 1, 8, 32>}]} {
    %c0 = arith.constant 0 : index
    %c0_0 = arith.constant 0 : index
    %0 = vector.load %arg2[%c0, %c0_0] : memref<32x96xbf16, #tpu.memory_space<vmem>>, vector<32x96xbf16>
    %c0_1 = arith.constant 0 : index
    %c0_2 = arith.constant 0 : index
    %1 = vector.load %arg3[%c0_1, %c0_2] : memref<1x96xf32, #tpu.memory_space<vmem>>, vector<1x96xf32>
    %c0_3 = arith.constant 0 : index
    %c0_4 = arith.constant 0 : index
    %2 = vector.load %arg4[%c0_3, %c0_4] : memref<32x32xbf16, #tpu.memory_space<vmem>>, vector<32x32xbf16>
    %c0_5 = arith.constant 0 : index
    %c0_6 = arith.constant 0 : index
    %3 = vector.load %arg5[%c0_5, %c0_6] : memref<1x32xf32, #tpu.memory_space<vmem>>, vector<1x32xf32>
    %c0_7 = arith.constant 0 : index
    %c0_8 = arith.constant 0 : index
    %4 = vector.load %arg6[%c0_7, %c0_8] : memref<1x32xf32, #tpu.memory_space<vmem>>, vector<1x32xf32>
    %c0_9 = arith.constant 0 : index
    %c0_10 = arith.constant 0 : index
    %5 = vector.load %arg7[%c0_9, %c0_10] : memref<1x32xf32, #tpu.memory_space<vmem>>, vector<1x32xf32>
    %c0_11 = arith.constant 0 : index
    %c0_12 = arith.constant 0 : index
    %6 = vector.load %arg8[%c0_11, %c0_12] : memref<32x128xbf16, #tpu.memory_space<vmem>>, vector<32x128xbf16>
    %c0_13 = arith.constant 0 : index
    %c0_14 = arith.constant 0 : index
    %7 = vector.load %arg9[%c0_13, %c0_14] : memref<1x128xf32, #tpu.memory_space<vmem>>, vector<1x128xf32>
    %c0_15 = arith.constant 0 : index
    %c0_16 = arith.constant 0 : index
    %8 = vector.load %arg10[%c0_15, %c0_16] : memref<128x32xbf16, #tpu.memory_space<vmem>>, vector<128x32xbf16>
    %c0_17 = arith.constant 0 : index
    %c0_18 = arith.constant 0 : index
    %9 = vector.load %arg11[%c0_17, %c0_18] : memref<1x32xf32, #tpu.memory_space<vmem>>, vector<1x32xf32>
    %c0_19 = arith.constant 0 : index
    %c0_20 = arith.constant 0 : index
    %10 = vector.load %arg12[%c0_19, %c0_20] : memref<1x32xf32, #tpu.memory_space<vmem>>, vector<1x32xf32>
    %c0_21 = arith.constant 0 : index
    %c0_22 = arith.constant 0 : index
    %11 = vector.load %arg13[%c0_21, %c0_22] : memref<1x32xf32, #tpu.memory_space<vmem>>, vector<1x32xf32>
    %c0_23 = arith.constant 0 : index
    %c0_24 = arith.constant 0 : index
    %c0_25 = arith.constant 0 : index
    %12 = vector.load %arg1[%c0_23, %c0_24, %c0_25] : memref<1x8x32xf32, #tpu.memory_space<vmem>>, vector<1x8x32xf32>
    %13 = vector.shape_cast %12 : vector<1x8x32xf32> to vector<8x32xf32>
    %14 = arith.truncf %13 : vector<8x32xf32> to vector<8x32xbf16>
    %cst = arith.constant dense<0.000000e+00> : vector<8x96xf32>
    %15 = tpu.matmul %14, %0, %cst {dimension_numbers = #tpu.dot_dimension_numbers<[1], [0], [0], [1], [0, 0, 1, 1], [], []>} : vector<8x32xbf16>, vector<32x96xbf16>, vector<8x96xf32> -> vector<8x96xf32>
    %16 = vector.broadcast %1 : vector<1x96xf32> to vector<8x96xf32>
    %17 = arith.addf %15, %16 : vector<8x96xf32>
    %18 = arith.truncf %17 : vector<8x96xf32> to vector<8x96xbf16>
    %19 = vector.extract_strided_slice %18 {offsets = [0, 0], sizes = [8, 4], strides = [1, 1]} : vector<8x96xbf16> to vector<8x4xbf16>
    %20 = vector.shape_cast %19 : vector<8x4xbf16> to vector<1x1x8x4xbf16>
    %21 = vector.extract_strided_slice %18 {offsets = [0, 4], sizes = [8, 4], strides = [1, 1]} : vector<8x96xbf16> to vector<8x4xbf16>
    %22 = vector.shape_cast %21 : vector<8x4xbf16> to vector<1x1x8x4xbf16>
    %23 = vector.extract_strided_slice %18 {offsets = [0, 8], sizes = [8, 4], strides = [1, 1]} : vector<8x96xbf16> to vector<8x4xbf16>
    %24 = vector.shape_cast %23 : vector<8x4xbf16> to vector<1x1x8x4xbf16>
    %25 = vector.extract_strided_slice %18 {offsets = [0, 12], sizes = [8, 4], strides = [1, 1]} : vector<8x96xbf16> to vector<8x4xbf16>
    %26 = vector.shape_cast %25 : vector<8x4xbf16> to vector<1x1x8x4xbf16>
    %27 = vector.extract_strided_slice %18 {offsets = [0, 16], sizes = [8, 4], strides = [1, 1]} : vector<8x96xbf16> to vector<8x4xbf16>
    %28 = vector.shape_cast %27 : vector<8x4xbf16> to vector<1x1x8x4xbf16>
    %29 = vector.extract_strided_slice %18 {offsets = [0, 20], sizes = [8, 4], strides = [1, 1]} : vector<8x96xbf16> to vector<8x4xbf16>
    %30 = vector.shape_cast %29 : vector<8x4xbf16> to vector<1x1x8x4xbf16>
    %31 = vector.extract_strided_slice %18 {offsets = [0, 24], sizes = [8, 4], strides = [1, 1]} : vector<8x96xbf16> to vector<8x4xbf16>
    %32 = vector.shape_cast %31 : vector<8x4xbf16> to vector<1x1x8x4xbf16>
    %33 = vector.extract_strided_slice %18 {offsets = [0, 28], sizes = [8, 4], strides = [1, 1]} : vector<8x96xbf16> to vector<8x4xbf16>
    %34 = vector.shape_cast %33 : vector<8x4xbf16> to vector<1x1x8x4xbf16>
    %35 = tpu.concatenate %20, %22, %24, %26, %28, %30, %32, %34 in 0 : vector<1x1x8x4xbf16>, vector<1x1x8x4xbf16>, vector<1x1x8x4xbf16>, vector<1x1x8x4xbf16>, vector<1x1x8x4xbf16>, vector<1x1x8x4xbf16>, vector<1x1x8x4xbf16>, vector<1x1x8x4xbf16> -> vector<8x1x8x4xbf16>
    %36 = vector.shape_cast %35 : vector<8x1x8x4xbf16> to vector<8x8x4xbf16>
    %37 = vector.extract_strided_slice %18 {offsets = [0, 32], sizes = [8, 4], strides = [1, 1]} : vector<8x96xbf16> to vector<8x4xbf16>
    %38 = vector.shape_cast %37 : vector<8x4xbf16> to vector<1x1x8x4xbf16>
    %39 = vector.extract_strided_slice %18 {offsets = [0, 36], sizes = [8, 4], strides = [1, 1]} : vector<8x96xbf16> to vector<8x4xbf16>
    %40 = vector.shape_cast %39 : vector<8x4xbf16> to vector<1x1x8x4xbf16>
    %41 = vector.extract_strided_slice %18 {offsets = [0, 40], sizes = [8, 4], strides = [1, 1]} : vector<8x96xbf16> to vector<8x4xbf16>
    %42 = vector.shape_cast %41 : vector<8x4xbf16> to vector<1x1x8x4xbf16>
    %43 = vector.extract_strided_slice %18 {offsets = [0, 44], sizes = [8, 4], strides = [1, 1]} : vector<8x96xbf16> to vector<8x4xbf16>
    %44 = vector.shape_cast %43 : vector<8x4xbf16> to vector<1x1x8x4xbf16>
    %45 = vector.extract_strided_slice %18 {offsets = [0, 48], sizes = [8, 4], strides = [1, 1]} : vector<8x96xbf16> to vector<8x4xbf16>
    %46 = vector.shape_cast %45 : vector<8x4xbf16> to vector<1x1x8x4xbf16>
    %47 = vector.extract_strided_slice %18 {offsets = [0, 52], sizes = [8, 4], strides = [1, 1]} : vector<8x96xbf16> to vector<8x4xbf16>
    %48 = vector.shape_cast %47 : vector<8x4xbf16> to vector<1x1x8x4xbf16>
    %49 = vector.extract_strided_slice %18 {offsets = [0, 56], sizes = [8, 4], strides = [1, 1]} : vector<8x96xbf16> to vector<8x4xbf16>
    %50 = vector.shape_cast %49 : vector<8x4xbf16> to vector<1x1x8x4xbf16>
    %51 = vector.extract_strided_slice %18 {offsets = [0, 60], sizes = [8, 4], strides = [1, 1]} : vector<8x96xbf16> to vector<8x4xbf16>
    %52 = vector.shape_cast %51 : vector<8x4xbf16> to vector<1x1x8x4xbf16>
    %53 = tpu.concatenate %38, %40, %42, %44, %46, %48, %50, %52 in 0 : vector<1x1x8x4xbf16>, vector<1x1x8x4xbf16>, vector<1x1x8x4xbf16>, vector<1x1x8x4xbf16>, vector<1x1x8x4xbf16>, vector<1x1x8x4xbf16>, vector<1x1x8x4xbf16>, vector<1x1x8x4xbf16> -> vector<8x1x8x4xbf16>
    %54 = vector.shape_cast %53 : vector<8x1x8x4xbf16> to vector<8x8x4xbf16>
    %55 = vector.extract_strided_slice %18 {offsets = [0, 64], sizes = [8, 4], strides = [1, 1]} : vector<8x96xbf16> to vector<8x4xbf16>
    %56 = vector.shape_cast %55 : vector<8x4xbf16> to vector<1x1x8x4xbf16>
    %57 = vector.extract_strided_slice %18 {offsets = [0, 68], sizes = [8, 4], strides = [1, 1]} : vector<8x96xbf16> to vector<8x4xbf16>
    %58 = vector.shape_cast %57 : vector<8x4xbf16> to vector<1x1x8x4xbf16>
    %59 = vector.extract_strided_slice %18 {offsets = [0, 72], sizes = [8, 4], strides = [1, 1]} : vector<8x96xbf16> to vector<8x4xbf16>
    %60 = vector.shape_cast %59 : vector<8x4xbf16> to vector<1x1x8x4xbf16>
    %61 = vector.extract_strided_slice %18 {offsets = [0, 76], sizes = [8, 4], strides = [1, 1]} : vector<8x96xbf16> to vector<8x4xbf16>
    %62 = vector.shape_cast %61 : vector<8x4xbf16> to vector<1x1x8x4xbf16>
    %63 = vector.extract_strided_slice %18 {offsets = [0, 80], sizes = [8, 4], strides = [1, 1]} : vector<8x96xbf16> to vector<8x4xbf16>
    %64 = vector.shape_cast %63 : vector<8x4xbf16> to vector<1x1x8x4xbf16>
    %65 = vector.extract_strided_slice %18 {offsets = [0, 84], sizes = [8, 4], strides = [1, 1]} : vector<8x96xbf16> to vector<8x4xbf16>
    %66 = vector.shape_cast %65 : vector<8x4xbf16> to vector<1x1x8x4xbf16>
    %67 = vector.extract_strided_slice %18 {offsets = [0, 88], sizes = [8, 4], strides = [1, 1]} : vector<8x96xbf16> to vector<8x4xbf16>
    %68 = vector.shape_cast %67 : vector<8x4xbf16> to vector<1x1x8x4xbf16>
    %69 = vector.extract_strided_slice %18 {offsets = [0, 92], sizes = [8, 4], strides = [1, 1]} : vector<8x96xbf16> to vector<8x4xbf16>
    %70 = vector.shape_cast %69 : vector<8x4xbf16> to vector<1x1x8x4xbf16>
    %71 = tpu.concatenate %56, %58, %60, %62, %64, %66, %68, %70 in 0 : vector<1x1x8x4xbf16>, vector<1x1x8x4xbf16>, vector<1x1x8x4xbf16>, vector<1x1x8x4xbf16>, vector<1x1x8x4xbf16>, vector<1x1x8x4xbf16>, vector<1x1x8x4xbf16>, vector<1x1x8x4xbf16> -> vector<8x1x8x4xbf16>
    %72 = vector.shape_cast %71 : vector<8x1x8x4xbf16> to vector<8x8x4xbf16>
    %cst_26 = arith.constant dense<0.000000e+00> : vector<8x8x8xf32>
    %73 = tpu.matmul %36, %54, %cst_26 {dimension_numbers = #tpu.dot_dimension_numbers<[2], [2], [1], [1], [0, 0, 0, 1, 1, 1], [0], [0]>} : vector<8x8x4xbf16>, vector<8x8x4xbf16>, vector<8x8x8xf32> -> vector<8x8x8xf32>
    %cst_27 = arith.constant dense<0xFF800000> : vector<8x8xf32>
    %74 = vector.multi_reduction <maximumf>, %73, %cst_27 [2] : vector<8x8x8xf32> to vector<8x8xf32>
    %75 = vector.shape_cast %74 : vector<8x8xf32> to vector<8x8x1xf32>
    %76 = vector.broadcast %75 : vector<8x8x1xf32> to vector<8x8x8xf32>
    %77 = arith.subf %73, %76 : vector<8x8x8xf32>
    %78 = math.exp %77 : vector<8x8x8xf32>
    %cst_28 = arith.constant dense<0.000000e+00> : vector<8x8xf32>
    %79 = vector.multi_reduction <add>, %78, %cst_28 [2] : vector<8x8x8xf32> to vector<8x8xf32>
    %80 = vector.shape_cast %79 : vector<8x8xf32> to vector<8x8x1xf32>
    %81 = tpu.reciprocal %80 {approx = true} : vector<8x8x1xf32> -> vector<8x8x1xf32>
    %82 = vector.broadcast %81 : vector<8x8x1xf32> to vector<8x8x8xf32>
    %83 = arith.mulf %78, %82 : vector<8x8x8xf32>
    %84 = arith.truncf %83 : vector<8x8x8xf32> to vector<8x8x8xbf16>
    %cst_29 = arith.constant dense<0.000000e+00> : vector<8x8x4xf32>
    %85 = tpu.matmul %84, %72, %cst_29 {dimension_numbers = #tpu.dot_dimension_numbers<[2], [1], [1], [2], [0, 0, 0, 1, 1, 2], [0], [0]>} : vector<8x8x8xbf16>, vector<8x8x4xbf16>, vector<8x8x4xf32> -> vector<8x8x4xf32>
    %86 = arith.truncf %85 : vector<8x8x4xf32> to vector<8x8x4xbf16>
    %87 = vector.shape_cast %86 : vector<8x8x4xbf16> to vector<8x1x8x4xbf16>
    %88 = vector.extract_strided_slice %87 {offsets = [0, 0, 0, 0], sizes = [1, 1, 8, 4], strides = [1, 1, 1, 1]} : vector<8x1x8x4xbf16> to vector<1x1x8x4xbf16>
    %89 = vector.shape_cast %88 : vector<1x1x8x4xbf16> to vector<1x8x4xbf16>
    %90 = vector.shape_cast %89 : vector<1x8x4xbf16> to vector<8x4xbf16>
    %91 = vector.extract_strided_slice %87 {offsets = [1, 0, 0, 0], sizes = [1, 1, 8, 4], strides = [1, 1, 1, 1]} : vector<8x1x8x4xbf16> to vector<1x1x8x4xbf16>
    %92 = vector.shape_cast %91 : vector<1x1x8x4xbf16> to vector<1x8x4xbf16>
    %93 = vector.shape_cast %92 : vector<1x8x4xbf16> to vector<8x4xbf16>
    %94 = vector.extract_strided_slice %87 {offsets = [2, 0, 0, 0], sizes = [1, 1, 8, 4], strides = [1, 1, 1, 1]} : vector<8x1x8x4xbf16> to vector<1x1x8x4xbf16>
    %95 = vector.shape_cast %94 : vector<1x1x8x4xbf16> to vector<1x8x4xbf16>
    %96 = vector.shape_cast %95 : vector<1x8x4xbf16> to vector<8x4xbf16>
    %97 = vector.extract_strided_slice %87 {offsets = [3, 0, 0, 0], sizes = [1, 1, 8, 4], strides = [1, 1, 1, 1]} : vector<8x1x8x4xbf16> to vector<1x1x8x4xbf16>
    %98 = vector.shape_cast %97 : vector<1x1x8x4xbf16> to vector<1x8x4xbf16>
    %99 = vector.shape_cast %98 : vector<1x8x4xbf16> to vector<8x4xbf16>
    %100 = vector.extract_strided_slice %87 {offsets = [4, 0, 0, 0], sizes = [1, 1, 8, 4], strides = [1, 1, 1, 1]} : vector<8x1x8x4xbf16> to vector<1x1x8x4xbf16>
    %101 = vector.shape_cast %100 : vector<1x1x8x4xbf16> to vector<1x8x4xbf16>
    %102 = vector.shape_cast %101 : vector<1x8x4xbf16> to vector<8x4xbf16>
    %103 = vector.extract_strided_slice %87 {offsets = [5, 0, 0, 0], sizes = [1, 1, 8, 4], strides = [1, 1, 1, 1]} : vector<8x1x8x4xbf16> to vector<1x1x8x4xbf16>
    %104 = vector.shape_cast %103 : vector<1x1x8x4xbf16> to vector<1x8x4xbf16>
    %105 = vector.shape_cast %104 : vector<1x8x4xbf16> to vector<8x4xbf16>
    %106 = vector.extract_strided_slice %87 {offsets = [6, 0, 0, 0], sizes = [1, 1, 8, 4], strides = [1, 1, 1, 1]} : vector<8x1x8x4xbf16> to vector<1x1x8x4xbf16>
    %107 = vector.shape_cast %106 : vector<1x1x8x4xbf16> to vector<1x8x4xbf16>
    %108 = vector.shape_cast %107 : vector<1x8x4xbf16> to vector<8x4xbf16>
    %109 = vector.extract_strided_slice %87 {offsets = [7, 0, 0, 0], sizes = [1, 1, 8, 4], strides = [1, 1, 1, 1]} : vector<8x1x8x4xbf16> to vector<1x1x8x4xbf16>
    %110 = vector.shape_cast %109 : vector<1x1x8x4xbf16> to vector<1x8x4xbf16>
    %111 = vector.shape_cast %110 : vector<1x8x4xbf16> to vector<8x4xbf16>
    %112 = tpu.concatenate %90, %93, %96, %99, %102, %105, %108, %111 in 1 : vector<8x4xbf16>, vector<8x4xbf16>, vector<8x4xbf16>, vector<8x4xbf16>, vector<8x4xbf16>, vector<8x4xbf16>, vector<8x4xbf16>, vector<8x4xbf16> -> vector<8x32xbf16>
    %cst_30 = arith.constant dense<0.000000e+00> : vector<8x32xf32>
    %113 = tpu.matmul %112, %2, %cst_30 {dimension_numbers = #tpu.dot_dimension_numbers<[1], [0], [0], [1], [0, 0, 1, 1], [], []>} : vector<8x32xbf16>, vector<32x32xbf16>, vector<8x32xf32> -> vector<8x32xf32>
    %114 = vector.broadcast %3 : vector<1x32xf32> to vector<8x32xf32>
    %115 = arith.addf %113, %114 : vector<8x32xf32>
    %116 = arith.addf %13, %115 : vector<8x32xf32>
    %cst_31 = arith.constant dense<0.000000e+00> : vector<8xf32>
    %117 = vector.multi_reduction <add>, %116, %cst_31 [1] : vector<8x32xf32> to vector<8xf32>
    %118 = vector.shape_cast %117 : vector<8xf32> to vector<8x1xf32>
    %cst_32 = arith.constant 3.200000e+01 : f32
    %119 = vector.broadcast %cst_32 : f32 to vector<8x1xf32>
    %120 = arith.divf %118, %119 : vector<8x1xf32>
    %121 = vector.broadcast %120 : vector<8x1xf32> to vector<8x32xf32>
    %122 = arith.subf %116, %121 : vector<8x32xf32>
    %123 = arith.mulf %122, %122 : vector<8x32xf32>
    %cst_33 = arith.constant dense<0.000000e+00> : vector<8xf32>
    %124 = vector.multi_reduction <add>, %123, %cst_33 [1] : vector<8x32xf32> to vector<8xf32>
    %125 = vector.shape_cast %124 : vector<8xf32> to vector<8x1xf32>
    %cst_34 = arith.constant 3.200000e+01 : f32
    %126 = vector.broadcast %cst_34 : f32 to vector<8x1xf32>
    %127 = arith.divf %125, %126 : vector<8x1xf32>
    %128 = vector.broadcast %120 : vector<8x1xf32> to vector<8x32xf32>
    %129 = arith.subf %116, %128 : vector<8x32xf32>
    %cst_35 = arith.constant 9.99999974E-6 : f32
    %130 = vector.broadcast %cst_35 : f32 to vector<8x1xf32>
    %131 = arith.addf %127, %130 : vector<8x1xf32>
    %132 = math.rsqrt %131 : vector<8x1xf32>
    %133 = vector.broadcast %132 : vector<8x1xf32> to vector<8x32xf32>
    %134 = arith.mulf %129, %133 : vector<8x32xf32>
    %135 = vector.broadcast %4 : vector<1x32xf32> to vector<8x32xf32>
    %136 = arith.mulf %134, %135 : vector<8x32xf32>
    %137 = vector.broadcast %5 : vector<1x32xf32> to vector<8x32xf32>
    %138 = arith.addf %136, %137 : vector<8x32xf32>
    %139 = arith.truncf %138 : vector<8x32xf32> to vector<8x32xbf16>
    %cst_36 = arith.constant dense<0.000000e+00> : vector<8x128xf32>
    %140 = tpu.matmul %139, %6, %cst_36 {dimension_numbers = #tpu.dot_dimension_numbers<[1], [0], [0], [1], [0, 0, 1, 1], [], []>} : vector<8x32xbf16>, vector<32x128xbf16>, vector<8x128xf32> -> vector<8x128xf32>
    %141 = vector.broadcast %7 : vector<1x128xf32> to vector<8x128xf32>
    %142 = arith.addf %140, %141 : vector<8x128xf32>
    %cst_37 = arith.constant 0.000000e+00 : f32
    %143 = vector.broadcast %cst_37 : f32 to vector<8x128xf32>
    %144 = arith.maximumf %142, %143 : vector<8x128xf32>
    %145 = arith.truncf %144 : vector<8x128xf32> to vector<8x128xbf16>
    %cst_38 = arith.constant dense<0.000000e+00> : vector<8x32xf32>
    %146 = tpu.matmul %145, %8, %cst_38 {dimension_numbers = #tpu.dot_dimension_numbers<[1], [0], [0], [1], [0, 0, 1, 1], [], []>} : vector<8x128xbf16>, vector<128x32xbf16>, vector<8x32xf32> -> vector<8x32xf32>
    %147 = vector.broadcast %9 : vector<1x32xf32> to vector<8x32xf32>
    %148 = arith.addf %146, %147 : vector<8x32xf32>
    %149 = arith.addf %138, %148 : vector<8x32xf32>
    %cst_39 = arith.constant dense<0.000000e+00> : vector<8xf32>
    %150 = vector.multi_reduction <add>, %149, %cst_39 [1] : vector<8x32xf32> to vector<8xf32>
    %151 = vector.shape_cast %150 : vector<8xf32> to vector<8x1xf32>
    %cst_40 = arith.constant 3.200000e+01 : f32
    %152 = vector.broadcast %cst_40 : f32 to vector<8x1xf32>
    %153 = arith.divf %151, %152 : vector<8x1xf32>
    %154 = vector.broadcast %153 : vector<8x1xf32> to vector<8x32xf32>
    %155 = arith.subf %149, %154 : vector<8x32xf32>
    %156 = arith.mulf %155, %155 : vector<8x32xf32>
    %cst_41 = arith.constant dense<0.000000e+00> : vector<8xf32>
    %157 = vector.multi_reduction <add>, %156, %cst_41 [1] : vector<8x32xf32> to vector<8xf32>
    %158 = vector.shape_cast %157 : vector<8xf32> to vector<8x1xf32>
    %cst_42 = arith.constant 3.200000e+01 : f32
    %159 = vector.broadcast %cst_42 : f32 to vector<8x1xf32>
    %160 = arith.divf %158, %159 : vector<8x1xf32>
    %161 = vector.broadcast %153 : vector<8x1xf32> to vector<8x32xf32>
    %162 = arith.subf %149, %161 : vector<8x32xf32>
    %cst_43 = arith.constant 9.99999974E-6 : f32
    %163 = vector.broadcast %cst_43 : f32 to vector<8x1xf32>
    %164 = arith.addf %160, %163 : vector<8x1xf32>
    %165 = math.rsqrt %164 : vector<8x1xf32>
    %166 = vector.broadcast %165 : vector<8x1xf32> to vector<8x32xf32>
    %167 = arith.mulf %162, %166 : vector<8x32xf32>
    %168 = vector.broadcast %10 : vector<1x32xf32> to vector<8x32xf32>
    %169 = arith.mulf %167, %168 : vector<8x32xf32>
    %170 = vector.broadcast %11 : vector<1x32xf32> to vector<8x32xf32>
    %171 = arith.addf %169, %170 : vector<8x32xf32>
    %172 = vector.shape_cast %171 : vector<8x32xf32> to vector<1x8x32xf32>
    %c0_44 = arith.constant 0 : index
    %c0_45 = arith.constant 0 : index
    %c0_46 = arith.constant 0 : index
    %173 = vector.load %arg14[%c0_44, %c0_45, %c0_46] : memref<1x8x32xf32, #tpu.memory_space<vmem>>, vector<1x8x32xf32>
    tpu.vector_store %arg14[%c0_44, %c0_45, %c0_46], %172 {strides = array<i32>} : memref<1x8x32xf32, #tpu.memory_space<vmem>>, vector<1x8x32xf32>,
    return
  }
  func.func @transform_0(%arg0: i32) -> (i32, i32, i32) {
    %c0_i32 = arith.constant 0 : i32
    %c0_i32_0 = arith.constant 0 : i32
    %c0_i32_1 = arith.constant 0 : i32
    return %arg0, %c0_i32, %c0_i32_0 : i32, i32, i32
  }
  func.func @transform_1(%arg0: i32) -> (i32, i32) {
    %c0_i32 = arith.constant 0 : i32
    %c0_i32_0 = arith.constant 0 : i32
    %c0_i32_1 = arith.constant 0 : i32
    return %c0_i32, %c0_i32_0 : i32, i32
  }
  func.func @transform_2(%arg0: i32) -> (i32, i32) {
    %c0_i32 = arith.constant 0 : i32
    %c0_i32_0 = arith.constant 0 : i32
    %c0_i32_1 = arith.constant 0 : i32
    return %c0_i32, %c0_i32_0 : i32, i32
  }
  func.func @transform_3(%arg0: i32) -> (i32, i32) {
    %c0_i32 = arith.constant 0 : i32
    %c0_i32_0 = arith.constant 0 : i32
    %c0_i32_1 = arith.constant 0 : i32
    return %c0_i32, %c0_i32_0 : i32, i32
  }
  func.func @transform_4(%arg0: i32) -> (i32, i32) {
    %c0_i32 = arith.constant 0 : i32
    %c0_i32_0 = arith.constant 0 : i32
    %c0_i32_1 = arith.constant 0 : i32
    return %c0_i32, %c0_i32_0 : i32, i32
  }
  func.func @transform_5(%arg0: i32) -> (i32, i32) {
    %c0_i32 = arith.constant 0 : i32
    %c0_i32_0 = arith.constant 0 : i32
    %c0_i32_1 = arith.constant 0 : i32
    return %c0_i32, %c0_i32_0 : i32, i32
  }
  func.func @transform_6(%arg0: i32) -> (i32, i32) {
    %c0_i32 = arith.constant 0 : i32
    %c0_i32_0 = arith.constant 0 : i32
    %c0_i32_1 = arith.constant 0 : i32
    return %c0_i32, %c0_i32_0 : i32, i32
  }
  func.func @transform_7(%arg0: i32) -> (i32, i32) {
    %c0_i32 = arith.constant 0 : i32
    %c0_i32_0 = arith.constant 0 : i32
    %c0_i32_1 = arith.constant 0 : i32
    return %c0_i32, %c0_i32_0 : i32, i32
  }
  func.func @transform_8(%arg0: i32) -> (i32, i32) {
    %c0_i32 = arith.constant 0 : i32
    %c0_i32_0 = arith.constant 0 : i32
    %c0_i32_1 = arith.constant 0 : i32
    return %c0_i32, %c0_i32_0 : i32, i32
  }
  func.func @transform_9(%arg0: i32) -> (i32, i32) {
    %c0_i32 = arith.constant 0 : i32
    %c0_i32_0 = arith.constant 0 : i32
    %c0_i32_1 = arith.constant 0 : i32
    return %c0_i32, %c0_i32_0 : i32, i32
  }
  func.func @transform_10(%arg0: i32) -> (i32, i32) {
    %c0_i32 = arith.constant 0 : i32
    %c0_i32_0 = arith.constant 0 : i32
    %c0_i32_1 = arith.constant 0 : i32
    return %c0_i32, %c0_i32_0 : i32, i32
  }
  func.func @transform_11(%arg0: i32) -> (i32, i32) {
    %c0_i32 = arith.constant 0 : i32
    %c0_i32_0 = arith.constant 0 : i32
    %c0_i32_1 = arith.constant 0 : i32
    return %c0_i32, %c0_i32_0 : i32, i32
  }
  func.func @transform_12(%arg0: i32) -> (i32, i32) {
    %c0_i32 = arith.constant 0 : i32
    %c0_i32_0 = arith.constant 0 : i32
    %c0_i32_1 = arith.constant 0 : i32
    return %c0_i32, %c0_i32_0 : i32, i32
  }
  func.func @transform_13(%arg0: i32) -> (i32, i32, i32) {
    %c0_i32 = arith.constant 0 : i32
    %c0_i32_0 = arith.constant 0 : i32
    %c0_i32_1 = arith.constant 0 : i32
    return %arg0, %c0_i32, %c0_i32_0 : i32, i32, i32
  }
}

</mosaic_0001>

<llo_original>
// kernel: tpu_custom_call.1
$region0: #{tpu_custom_call.1}
  #allocation0 [shape = 'u32[]', space=smem, size = 0x4, offset = 0x4, fixed_abs, tag = 'smem constant byte address 0x4 - core index']
  #allocation1 [shape = 'u32[72,128]{1,0:T(1,128)}', space=vmem, size = 0x9000, scoped, tag = 'internal scratch']
  %s0 = inlined_call_operand.vmem [shape: f32[2,8,32], index: 0, kind: input, shape index: {}]
  %s1 = inlined_call_operand.vmem [shape: bf16[32,96], index: 1, kind: input, shape index: {}]
  %s2 = inlined_call_operand.vmem [shape: f32[1,96], index: 2, kind: input, shape index: {}]
  %s3 = inlined_call_operand.vmem [shape: bf16[32,32], index: 3, kind: input, shape index: {}]
  %s4 = inlined_call_operand.vmem [shape: f32[1,32], index: 4, kind: input, shape index: {}]
  %s5 = inlined_call_operand.vmem [shape: f32[1,32], index: 5, kind: input, shape index: {}]
  %s6 = inlined_call_operand.vmem [shape: f32[1,32], index: 6, kind: input, shape index: {}]
  %s7 = inlined_call_operand.vmem [shape: bf16[32,128], index: 7, kind: input, shape index: {}]
  %s8 = inlined_call_operand.vmem [shape: f32[1,128], index: 8, kind: input, shape index: {}]
  %s9 = inlined_call_operand.vmem [shape: bf16[128,32], index: 9, kind: input, shape index: {}]
  %s10 = inlined_call_operand.vmem [shape: f32[1,32], index: 10, kind: input, shape index: {}]
  %s11 = inlined_call_operand.vmem [shape: f32[1,32], index: 11, kind: input, shape index: {}]
  %s12 = inlined_call_operand.vmem [shape: f32[1,32], index: 12, kind: input, shape index: {}]
  %s13 = inlined_call_operand.hbm [shape: f32[2,8,32], index: 13, kind: output, shape index: {}]
  %s14 = sld [smem:[#allocation0]]
  $region85: #{tpu_custom_call.1} parent=0
    _
  %s16 = ssub.s32 1, %s14
  %s17 = scalar_select 0, %s16, %s14
  $region1: #{tpu_custom_call.1} parent=0
    #allocation2 [shape = 'u8[8192]{0}', space=vmem, size = 0x2000, scoped, tag = 'output window, operand 0']
    #allocation3 [shape = 's32[2]{0}', space=sflag, size = 0x8, scoped, tag = 'scoped memory for tpu_custom_call.1']
    %18 = vsyncpa [#allocation3], 0
    %s19 = scalar_lea.sflag [#allocation3], 1
    %20 = vsyncpa %s19, 0
    loop: start=0, step=1, limit=4
    $region2: #{tpu_custom_call.1} parent=1 // loop_pre_header
      _
    $region3: #{tpu_custom_call.1} parent=1 // loop_header
      %s22 = sphi 0, %s26
      %p23 = scmp.ge.s32.totalorder %s22, 4
      %s32 = sphi 0, %s34
      %s35 = sphi 0, %s32
      %s36 = sphi 0, %s35
      %s52 = sphi 0, %s36
      %s56 = sphi 0, %s56
      %s58 = sphi 0, %s56
      %s59 = sphi 0, %s58
      %s73 = sphi 0, %s59
      %s77 = sphi 0, %s77
      %s79 = sphi 0, %s77
      %s80 = sphi 0, %s79
      %s94 = sphi 0, %s80
      %s98 = sphi 0, %s98
      %s100 = sphi 0, %s98
      %s101 = sphi 0, %s100
      %s115 = sphi 0, %s101
      %s119 = sphi 0, %s119
      %s121 = sphi 0, %s119
      %s122 = sphi 0, %s121
      %s136 = sphi 0, %s122
      %s140 = sphi 0, %s140
      %s142 = sphi 0, %s140
      %s143 = sphi 0, %s142
      %s157 = sphi 0, %s143
      %s161 = sphi 0, %s161
      %s163 = sphi 0, %s161
      %s164 = sphi 0, %s163
      %s178 = sphi 0, %s164
      %s182 = sphi 0, %s182
      %s184 = sphi 0, %s182
      %s185 = sphi 0, %s184
      %s199 = sphi 0, %s185
      %s203 = sphi 0, %s203
      %s205 = sphi 0, %s203
      %s206 = sphi 0, %s205
      %s220 = sphi 0, %s206
      %s224 = sphi 0, %s224
      %s226 = sphi 0, %s224
      %s227 = sphi 0, %s226
      %s241 = sphi 0, %s227
      %s245 = sphi 0, %s245
      %s247 = sphi 0, %s245
      %s248 = sphi 0, %s247
      %s262 = sphi 0, %s248
      %s266 = sphi 0, %s266
      %s268 = sphi 0, %s266
      %s269 = sphi 0, %s268
      %s283 = sphi 0, %s269
      %s287 = sphi 0, %s287
      %s289 = sphi 0, %s287
      %s290 = sphi 0, %s289
      %s304 = sphi 0, %s290
      %s310 = sphi 0, %s312
      %s313 = sphi 0, %s310
      %s314 = sphi 0, %s313
      %s330 = sphi 0, %s314
    $region4: #{tpu_custom_call.1} parent=1 // loop_header_branch
      %25 = sbr.rel (%p23) target = $region8
    $region5: #{tpu_custom_call.1} parent=1 // loop_body
      %s27 = ssub.s32 %s22, 1
      %s28 = ssub.s32 %s22, 2
      %s29 = sadd.s32 %s22, 1
      %s30 = ssub.s32 %s22, %s29
      %p31 = scmp.eq.s32.totalorder %s30, 0
      %s33 = sadd.s32 %s32, 1
      %s34 = scalar_select %p31, %s32, %s33
      %p37 = pneg %p31
      %p38 = scmp.eq.s32.totalorder %s22, 1
      %p39 = por %p37, %p38
      %p40 = scmp.ne.s32.totalorder %s32, %s35
      %p41 = scmp.eq.s32.totalorder %s22, 0
      %p42 = por %p40, %p41
      %p43 = scmp.ne.s32.totalorder %s32, %s35
      %p44 = scmp.eq.s32.totalorder %s27, 1
      %p45 = por %p43, %p44
      %p46 = scmp.ne.s32.totalorder %s35, %s36
      %p47 = scmp.eq.s32.totalorder %s27, 0
      %p48 = por %p46, %p47
      %p49 = scmp.ne.s32.totalorder %s35, %s36
      %p50 = scmp.eq.s32.totalorder %s28, 1
      %p51 = por %p49, %p50
      %p53 = scmp.ne.s32.totalorder %s36, %s52
      %p54 = scmp.eq.s32.totalorder %s28, 0
      %p55 = por %p53, %p54
      %s57 = sadd.s32 %s56, 1
      %p60 = scmp.eq.s32.totalorder %s22, 1
      %p61 = scmp.ne.s32.totalorder %s56, %s58
      %p62 = scmp.eq.s32.totalorder %s22, 0
      %p63 = por %p61, %p62
      %p64 = scmp.ne.s32.totalorder %s56, %s58
      %p65 = scmp.eq.s32.totalorder %s27, 1
      %p66 = por %p64, %p65
      %p67 = scmp.ne.s32.totalorder %s58, %s59
      %p68 = scmp.eq.s32.totalorder %s27, 0
      %p69 = por %p67, %p68
      %p70 = scmp.ne.s32.totalorder %s58, %s59
      %p71 = scmp.eq.s32.totalorder %s28, 1
      %p72 = por %p70, %p71
      %p74 = scmp.ne.s32.totalorder %s59, %s73
      %p75 = scmp.eq.s32.totalorder %s28, 0
      %p76 = por %p74, %p75
      %s78 = sadd.s32 %s77, 1
      %p81 = scmp.eq.s32.totalorder %s22, 1
      %p82 = scmp.ne.s32.totalorder %s77, %s79
      %p83 = scmp.eq.s32.totalorder %s22, 0
      %p84 = por %p82, %p83
      %p85 = scmp.ne.s32.totalorder %s77, %s79
      %p86 = scmp.eq.s32.totalorder %s27, 1
      %p87 = por %p85, %p86
      %p88 = scmp.ne.s32.totalorder %s79, %s80
      %p89 = scmp.eq.s32.totalorder %s27, 0
      %p90 = por %p88, %p89
      %p91 = scmp.ne.s32.totalorder %s79, %s80
      %p92 = scmp.eq.s32.totalorder %s28, 1
      %p93 = por %p91, %p92
      %p95 = scmp.ne.s32.totalorder %s80, %s94
      %p96 = scmp.eq.s32.totalorder %s28, 0
      %p97 = por %p95, %p96
      %s99 = sadd.s32 %s98, 1
      %p102 = scmp.eq.s32.totalorder %s22, 1
      %p103 = scmp.ne.s32.totalorder %s98, %s100
      %p104 = scmp.eq.s32.totalorder %s22, 0
      %p105 = por %p103, %p104
      %p106 = scmp.ne.s32.totalorder %s98, %s100
      %p107 = scmp.eq.s32.totalorder %s27, 1
      %p108 = por %p106, %p107
      %p109 = scmp.ne.s32.totalorder %s100, %s101
      %p110 = scmp.eq.s32.totalorder %s27, 0
      %p111 = por %p109, %p110
      %p112 = scmp.ne.s32.totalorder %s100, %s101
      %p113 = scmp.eq.s32.totalorder %s28, 1
      %p114 = por %p112, %p113
      %p116 = scmp.ne.s32.totalorder %s101, %s115
      %p117 = scmp.eq.s32.totalorder %s28, 0
      %p118 = por %p116, %p117
      %s120 = sadd.s32 %s119, 1
      %p123 = scmp.eq.s32.totalorder %s22, 1
      %p124 = scmp.ne.s32.totalorder %s119, %s121
      %p125 = scmp.eq.s32.totalorder %s22, 0
      %p126 = por %p124, %p125
      %p127 = scmp.ne.s32.totalorder %s119, %s121
      %p128 = scmp.eq.s32.totalorder %s27, 1
      %p129 = por %p127, %p128
      %p130 = scmp.ne.s32.totalorder %s121, %s122
      %p131 = scmp.eq.s32.totalorder %s27, 0
      %p132 = por %p130, %p131
      %p133 = scmp.ne.s32.totalorder %s121, %s122
      %p134 = scmp.eq.s32.totalorder %s28, 1
      %p135 = por %p133, %p134
      %p137 = scmp.ne.s32.totalorder %s122, %s136
      %p138 = scmp.eq.s32.totalorder %s28, 0
      %p139 = por %p137, %p138
      %s141 = sadd.s32 %s140, 1
      %p144 = scmp.eq.s32.totalorder %s22, 1
      %p145 = scmp.ne.s32.totalorder %s140, %s142
      %p146 = scmp.eq.s32.totalorder %s22, 0
      %p147 = por %p145, %p146
      %p148 = scmp.ne.s32.totalorder %s140, %s142
      %p149 = scmp.eq.s32.totalorder %s27, 1
      %p150 = por %p148, %p149
      %p151 = scmp.ne.s32.totalorder %s142, %s143
      %p152 = scmp.eq.s32.totalorder %s27, 0
      %p153 = por %p151, %p152
      %p154 = scmp.ne.s32.totalorder %s142, %s143
      %p155 = scmp.eq.s32.totalorder %s28, 1
      %p156 = por %p154, %p155
      %p158 = scmp.ne.s32.totalorder %s143, %s157
      %p159 = scmp.eq.s32.totalorder %s28, 0
      %p160 = por %p158, %p159
      %s162 = sadd.s32 %s161, 1
      %p165 = scmp.eq.s32.totalorder %s22, 1
      %p166 = scmp.ne.s32.totalorder %s161, %s163
      %p167 = scmp.eq.s32.totalorder %s22, 0
      %p168 = por %p166, %p167
      %p169 = scmp.ne.s32.totalorder %s161, %s163
      %p170 = scmp.eq.s32.totalorder %s27, 1
      %p171 = por %p169, %p170
      %p172 = scmp.ne.s32.totalorder %s163, %s164
      %p173 = scmp.eq.s32.totalorder %s27, 0
      %p174 = por %p172, %p173
      %p175 = scmp.ne.s32.totalorder %s163, %s164
      %p176 = scmp.eq.s32.totalorder %s28, 1
      %p177 = por %p175, %p176
      %p179 = scmp.ne.s32.totalorder %s164, %s178
      %p180 = scmp.eq.s32.totalorder %s28, 0
      %p181 = por %p179, %p180
      %s183 = sadd.s32 %s182, 1
      %p186 = scmp.eq.s32.totalorder %s22, 1
      %p187 = scmp.ne.s32.totalorder %s182, %s184
      %p188 = scmp.eq.s32.totalorder %s22, 0
      %p189 = por %p187, %p188
      %p190 = scmp.ne.s32.totalorder %s182, %s184
      %p191 = scmp.eq.s32.totalorder %s27, 1
      %p192 = por %p190, %p191
      %p193 = scmp.ne.s32.totalorder %s184, %s185
      %p194 = scmp.eq.s32.totalorder %s27, 0
      %p195 = por %p193, %p194
      %p196 = scmp.ne.s32.totalorder %s184, %s185
      %p197 = scmp.eq.s32.totalorder %s28, 1
      %p198 = por %p196, %p197
      %p200 = scmp.ne.s32.totalorder %s185, %s199
      %p201 = scmp.eq.s32.totalorder %s28, 0
      %p202 = por %p200, %p201
      %s204 = sadd.s32 %s203, 1
      %p207 = scmp.eq.s32.totalorder %s22, 1
      %p208 = scmp.ne.s32.totalorder %s203, %s205
      %p209 = scmp.eq.s32.totalorder %s22, 0
      %p210 = por %p208, %p209
      %p211 = scmp.ne.s32.totalorder %s203, %s205
      %p212 = scmp.eq.s32.totalorder %s27, 1
      %p213 = por %p211, %p212
      %p214 = scmp.ne.s32.totalorder %s205, %s206
      %p215 = scmp.eq.s32.totalorder %s27, 0
      %p216 = por %p214, %p215
      %p217 = scmp.ne.s32.totalorder %s205, %s206
      %p218 = scmp.eq.s32.totalorder %s28, 1
      %p219 = por %p217, %p218
      %p221 = scmp.ne.s32.totalorder %s206, %s220
      %p222 = scmp.eq.s32.totalorder %s28, 0
      %p223 = por %p221, %p222
      %s225 = sadd.s32 %s224, 1
      %p228 = scmp.eq.s32.totalorder %s22, 1
      %p229 = scmp.ne.s32.totalorder %s224, %s226
      %p230 = scmp.eq.s32.totalorder %s22, 0
      %p231 = por %p229, %p230
      %p232 = scmp.ne.s32.totalorder %s224, %s226
      %p233 = scmp.eq.s32.totalorder %s27, 1
      %p234 = por %p232, %p233
      %p235 = scmp.ne.s32.totalorder %s226, %s227
      %p236 = scmp.eq.s32.totalorder %s27, 0
      %p237 = por %p235, %p236
      %p238 = scmp.ne.s32.totalorder %s226, %s227
      %p239 = scmp.eq.s32.totalorder %s28, 1
      %p240 = por %p238, %p239
      %p242 = scmp.ne.s32.totalorder %s227, %s241
      %p243 = scmp.eq.s32.totalorder %s28, 0
      %p244 = por %p242, %p243
      %s246 = sadd.s32 %s245, 1
      %p249 = scmp.eq.s32.totalorder %s22, 1
      %p250 = scmp.ne.s32.totalorder %s245, %s247
      %p251 = scmp.eq.s32.totalorder %s22, 0
      %p252 = por %p250, %p251
      %p253 = scmp.ne.s32.totalorder %s245, %s247
      %p254 = scmp.eq.s32.totalorder %s27, 1
      %p255 = por %p253, %p254
      %p256 = scmp.ne.s32.totalorder %s247, %s248
      %p257 = scmp.eq.s32.totalorder %s27, 0
      %p258 = por %p256, %p257
      %p259 = scmp.ne.s32.totalorder %s247, %s248
      %p260 = scmp.eq.s32.totalorder %s28, 1
      %p261 = por %p259, %p260
      %p263 = scmp.ne.s32.totalorder %s248, %s262
      %p264 = scmp.eq.s32.totalorder %s28, 0
      %p265 = por %p263, %p264
      %s267 = sadd.s32 %s266, 1
      %p270 = scmp.eq.s32.totalorder %s22, 1
      %p271 = scmp.ne.s32.totalorder %s266, %s268
      %p272 = scmp.eq.s32.totalorder %s22, 0
      %p273 = por %p271, %p272
      %p274 = scmp.ne.s32.totalorder %s266, %s268
      %p275 = scmp.eq.s32.totalorder %s27, 1
      %p276 = por %p274, %p275
      %p277 = scmp.ne.s32.totalorder %s268, %s269
      %p278 = scmp.eq.s32.totalorder %s27, 0
      %p279 = por %p277, %p278
      %p280 = scmp.ne.s32.totalorder %s268, %s269
      %p281 = scmp.eq.s32.totalorder %s28, 1
      %p282 = por %p280, %p281
      %p284 = scmp.ne.s32.totalorder %s269, %s283
      %p285 = scmp.eq.s32.totalorder %s28, 0
      %p286 = por %p284, %p285
      %s288 = sadd.s32 %s287, 1
      %p291 = scmp.eq.s32.totalorder %s22, 1
      %p292 = scmp.ne.s32.totalorder %s287, %s289
      %p293 = scmp.eq.s32.totalorder %s22, 0
      %p294 = por %p292, %p293
      %p295 = scmp.ne.s32.totalorder %s287, %s289
      %p296 = scmp.eq.s32.totalorder %s27, 1
      %p297 = por %p295, %p296
      %p298 = scmp.ne.s32.totalorder %s289, %s290
      %p299 = scmp.eq.s32.totalorder %s27, 0
      %p300 = por %p298, %p299
      %p301 = scmp.ne.s32.totalorder %s289, %s290
      %p302 = scmp.eq.s32.totalorder %s28, 1
      %p303 = por %p301, %p302
      %p305 = scmp.ne.s32.totalorder %s290, %s304
      %p306 = scmp.eq.s32.totalorder %s28, 0
      %p307 = por %p305, %p306
      %s308 = ssub.s32 %s22, %s29
      %p309 = scmp.eq.s32.totalorder %s308, 0
      %s311 = sadd.s32 %s310, 1
      %s312 = scalar_select %p309, %s310, %s311
      %p315 = pneg %p309
      %p316 = scmp.eq.s32.totalorder %s22, 1
      %p317 = por %p315, %p316
      %p318 = scmp.ne.s32.totalorder %s310, %s313
      %p319 = scmp.eq.s32.totalorder %s22, 0
      %p320 = por %p318, %p319
      %p321 = scmp.ne.s32.totalorder %s310, %s313
      %p322 = scmp.eq.s32.totalorder %s27, 1
      %p323 = por %p321, %p322
      %p324 = scmp.ne.s32.totalorder %s313, %s314
      %p325 = scmp.eq.s32.totalorder %s27, 0
      %p326 = por %p324, %p325
      %p327 = scmp.ne.s32.totalorder %s313, %s314
      %p328 = scmp.eq.s32.totalorder %s28, 1
      %p329 = por %p327, %p328
      %p331 = scmp.ne.s32.totalorder %s314, %s330
      %p332 = scmp.eq.s32.totalorder %s28, 0
      %p333 = por %p331, %p332
      %p334 = scmp.le.s32.totalorder 1, %s22
      %p335 = scmp.lt.s32.totalorder %s22, 3
      %p336 = pnand %p334, %p335
      %p337 = pneg %p336
      // Predicated region
      $region9: #{tpu_custom_call.1} parent=5 // pred_check
        _
      $region10: #{tpu_custom_call.1} parent=5 // pred_check_branch
        %339 = sbr.rel (%p336) target = $region12
      $region11: #{tpu_custom_call.1} parent=5 // pred_region
        %s340 = ssub.s32 %s22, 1
        // Predicated region
        $region13: #{tpu_custom_call.1} parent=11 // pred_check
          %p341 = pneg %p69
        $region14: #{tpu_custom_call.1} parent=11 // pred_check_branch
          %343 = sbr.rel (%p341) target = $region16
        $region15: #{tpu_custom_call.1} parent=11 // pred_region
          _
        $region16: #{tpu_custom_call.1} parent=11 // pred_fallthru
          _
        // Predicated region
        $region17: #{tpu_custom_call.1} parent=11 // pred_check
          %p344 = pneg %p90
        $region18: #{tpu_custom_call.1} parent=11 // pred_check_branch
          %346 = sbr.rel (%p344) target = $region20
        $region19: #{tpu_custom_call.1} parent=11 // pred_region
          _
        $region20: #{tpu_custom_call.1} parent=11 // pred_fallthru
          _
        // Predicated region
        $region21: #{tpu_custom_call.1} parent=11 // pred_check
          %p347 = pneg %p111
        $region22: #{tpu_custom_call.1} parent=11 // pred_check_branch
          %349 = sbr.rel (%p347) target = $region24
        $region23: #{tpu_custom_call.1} parent=11 // pred_region
          _
        $region24: #{tpu_custom_call.1} parent=11 // pred_fallthru
          _
        // Predicated region
        $region25: #{tpu_custom_call.1} parent=11 // pred_check
          %p350 = pneg %p132
        $region26: #{tpu_custom_call.1} parent=11 // pred_check_branch
          %352 = sbr.rel (%p350) target = $region28
        $region27: #{tpu_custom_call.1} parent=11 // pred_region
          _
        $region28: #{tpu_custom_call.1} parent=11 // pred_fallthru
          _
        // Predicated region
        $region29: #{tpu_custom_call.1} parent=11 // pred_check
          %p353 = pneg %p153
        $region30: #{tpu_custom_call.1} parent=11 // pred_check_branch
          %355 = sbr.rel (%p353) target = $region32
        $region31: #{tpu_custom_call.1} parent=11 // pred_region
          _
        $region32: #{tpu_custom_call.1} parent=11 // pred_fallthru
          _
        // Predicated region
        $region33: #{tpu_custom_call.1} parent=11 // pred_check
          %p356 = pneg %p174
        $region34: #{tpu_custom_call.1} parent=11 // pred_check_branch
          %358 = sbr.rel (%p356) target = $region36
        $region35: #{tpu_custom_call.1} parent=11 // pred_region
          _
        $region36: #{tpu_custom_call.1} parent=11 // pred_fallthru
          _
        // Predicated region
        $region37: #{tpu_custom_call.1} parent=11 // pred_check
          %p359 = pneg %p195
        $region38: #{tpu_custom_call.1} parent=11 // pred_check_branch
          %361 = sbr.rel (%p359) target = $region40
        $region39: #{tpu_custom_call.1} parent=11 // pred_region
          _
        $region40: #{tpu_custom_call.1} parent=11 // pred_fallthru
          _
        // Predicated region
        $region41: #{tpu_custom_call.1} parent=11 // pred_check
          %p362 = pneg %p216
        $region42: #{tpu_custom_call.1} parent=11 // pred_check_branch
          %364 = sbr.rel (%p362) target = $region44
        $region43: #{tpu_custom_call.1} parent=11 // pred_region
          _
        $region44: #{tpu_custom_call.1} parent=11 // pred_fallthru
          _
        // Predicated region
        $region45: #{tpu_custom_call.1} parent=11 // pred_check
          %p365 = pneg %p237
        $region46: #{tpu_custom_call.1} parent=11 // pred_check_branch
          %367 = sbr.rel (%p365) target = $region48
        $region47: #{tpu_custom_call.1} parent=11 // pred_region
          _
        $region48: #{tpu_custom_call.1} parent=11 // pred_fallthru
          _
        // Predicated region
        $region49: #{tpu_custom_call.1} parent=11 // pred_check
          %p368 = pneg %p258
        $region50: #{tpu_custom_call.1} parent=11 // pred_check_branch
          %370 = sbr.rel (%p368) target = $region52
        $region51: #{tpu_custom_call.1} parent=11 // pred_region
          _
        $region52: #{tpu_custom_call.1} parent=11 // pred_fallthru
          _
        // Predicated region
        $region53: #{tpu_custom_call.1} parent=11 // pred_check
          %p371 = pneg %p279
        $region54: #{tpu_custom_call.1} parent=11 // pred_check_branch
          %373 = sbr.rel (%p371) target = $region56
        $region55: #{tpu_custom_call.1} parent=11 // pred_region
          _
        $region56: #{tpu_custom_call.1} parent=11 // pred_fallthru
          _
        // Predicated region
        $region57: #{tpu_custom_call.1} parent=11 // pred_check
          %p374 = pneg %p300
        $region58: #{tpu_custom_call.1} parent=11 // pred_check_branch
          %376 = sbr.rel (%p374) target = $region60
        $region59: #{tpu_custom_call.1} parent=11 // pred_region
          _
        $region60: #{tpu_custom_call.1} parent=11 // pred_fallthru
          _
      $region12: #{tpu_custom_call.1} parent=5 // pred_fallthru
        _
      %p377 = scmp.lt.s32.totalorder %s22, 2
      // Predicated region
      $region61: #{tpu_custom_call.1} parent=5 // pred_check
        %p378 = pneg %p377
      $region62: #{tpu_custom_call.1} parent=5 // pred_check_branch
        %380 = sbr.rel (%p378) target = $region64
      $region63: #{tpu_custom_call.1} parent=5 // pred_region
        // Predicated region
        $region65: #{tpu_custom_call.1} parent=63 // pred_check
          %p381 = pneg %p42
        $region66: #{tpu_custom_call.1} parent=63 // pred_check_branch
          %383 = sbr.rel (%p381) target = $region68
        $region67: #{tpu_custom_call.1} parent=63 // pred_region
          %p384 = scmp.lt.s32.totalorder %s22, 1
          %s385 = scalar_select %p384, %s22, 1
          %s386 = smul.addr %s385, 8
          %s387 = scalar_lea.vmem %s0, %s386
        $region68: #{tpu_custom_call.1} parent=63 // pred_fallthru
          _
      $region64: #{tpu_custom_call.1} parent=5 // pred_fallthru
        _
      %p388 = scmp.le.s32.totalorder 1, %s22
      %p389 = scmp.lt.s32.totalorder %s22, 3
      %p390 = pnand %p388, %p389
      %p391 = pneg %p390
      // Predicated region
      $region69: #{tpu_custom_call.1} parent=5 // pred_check
        _
      $region70: #{tpu_custom_call.1} parent=5 // pred_check_branch
        %393 = sbr.rel (%p390) target = $region72
      $region71: #{tpu_custom_call.1} parent=5 // pred_region
        %s394 = ssub.s32 %s22, 1
        %p395 = scmp.lt.s32.totalorder %s27, 1
        %s396 = scalar_select %p395, %s27, 1
        %s397 = smul.addr %s396, 8
        %s398 = scalar_lea.vmem %s0, %s397
        %p399 = pneg %p48
        %p400 = pneg %p45
        %p401 = pneg %p69
        %p402 = pneg %p66
        %p403 = pneg %p90
        %p404 = pneg %p87
        %p405 = pneg %p111
        %p406 = pneg %p108
        %p407 = pneg %p132
        %p408 = pneg %p129
        %p409 = pneg %p153
        %p410 = pneg %p150
        %p411 = pneg %p174
        %p412 = pneg %p171
        %p413 = pneg %p195
        %p414 = pneg %p192
        %p415 = pneg %p216
        %p416 = pneg %p213
        %p417 = pneg %p237
        %p418 = pneg %p234
        %p419 = pneg %p258
        %p420 = pneg %p255
        %p421 = pneg %p279
        %p422 = pneg %p276
        %p423 = pneg %p300
        %p424 = pneg %p297
        %p425 = pneg %p326
        %p426 = pneg %p323
        %s427 = sand.u32 %s313, 1
        %s428 = scalar_lea.sflag [#allocation3], %s427
        %s429 = sand.u32 %s313, 1
        %s430 = smul.addr %s429, 8
        %s431 = scalar_lea.vmem [#allocation2], %s430
        %p432 = scmp.lt.s32.totalorder %s27, 1
        %s433 = scalar_select %p432, %s27, 1
        %s434 = smul.addr %s433, 8
        %s435 = scalar_lea.vmem %s0, %s434
        %v437 = vld [vmem:[%s1] sm:$0xf]
        %v438 = vld [vmem:[%s1 + $0x4] sm:$0xf]
        %v439 = vld [vmem:[%s1 + $0x8] sm:$0xf]
        %v440 = vld [vmem:[%s1 + $0xc] sm:$0xf]
        %v441 = vld [vmem:[%s2] sm:$0x1]
        %v442 = vld [vmem:[%s3] sm:$0xf]
        %v443 = vld [vmem:[%s3 + $0x4] sm:$0xf]
        %v444 = vld [vmem:[%s3 + $0x8] sm:$0xf]
        %v445 = vld [vmem:[%s3 + $0xc] sm:$0xf]
        %v446 = vld [vmem:[%s4] sm:$0x1]
        %v447 = vld [vmem:[%s5] sm:$0x1]
        %v448 = vld [vmem:[%s6] sm:$0x1]
        %v449 = vld [vmem:[%s7] sm:$0xf]
        %v450 = vld [vmem:[%s7 + $0x4] sm:$0xf]
        %v451 = vld [vmem:[%s7 + $0x8] sm:$0xf]
        %v452 = vld [vmem:[%s7 + $0xc] sm:$0xf]
        %v453 = vld [vmem:[%s8] sm:$0x1]
        %v454 = vld [vmem:[%s9] sm:$0xf]
        %v455 = vld [vmem:[%s9 + $0x4] sm:$0xf]
        %v456 = vld [vmem:[%s9 + $0x8] sm:$0xf]
        %v457 = vld [vmem:[%s9 + $0xc] sm:$0xf]
        %v458 = vld [vmem:[%s9 + $0x10] sm:$0xf]
        %v459 = vld [vmem:[%s9 + $0x14] sm:$0xf]
        %v460 = vld [vmem:[%s9 + $0x18] sm:$0xf]
        %v461 = vld [vmem:[%s9 + $0x1c] sm:$0xf]
        %v462 = vld [vmem:[%s9 + $0x20] sm:$0xf]
        %v463 = vld [vmem:[%s9 + $0x24] sm:$0xf]
        %v464 = vld [vmem:[%s9 + $0x28] sm:$0xf]
        %v465 = vld [vmem:[%s9 + $0x2c] sm:$0xf]
        %v466 = vld [vmem:[%s9 + $0x30] sm:$0xf]
        %v467 = vld [vmem:[%s9 + $0x34] sm:$0xf]
        %v468 = vld [vmem:[%s9 + $0x38] sm:$0xf]
        %v469 = vld [vmem:[%s9 + $0x3c] sm:$0xf]
        %v470 = vld [vmem:[%s10] sm:$0x1]
        %v471 = vld [vmem:[%s11] sm:$0x1]
        %v472 = vld [vmem:[%s12] sm:$0x1]
        %v473 = vld [vmem:[%s435] sm:$0xff]
        %v474 = vpack.c.bf16 %v473, %v473
        %v476 = vperm.slane %v441, 0
        %v482 = vunpack.c.l.b16 %v437
        %v483 = vunpack.c.l.b16 %v438
        %v484 = vunpack.c.l.b16 %v439
        %v485 = vunpack.c.l.b16 %v440
        %v486 = vpack.c.b16 %v483, %v482
        %v487 = vpack.c.b16 %v485, %v484
        %vm490 = vcmask 261120
        %v492 = vsel %vm490, %v474, 0
        %494 = vmatpush.bf16.msra.mxu0 0
        %495 = vmatpush.bf16.msra.mxu0 0
        %496 = vmatpush.bf16.msra.mxu0 0
        %497 = vmatpush.bf16.msra.mxu0 0
        %498 = vmatpush.bf16.msra.mxu0 0
        %499 = vmatpush.bf16.msra.mxu0 0
        %500 = vmatpush.bf16.msra.mxu0 %v487
        %501 = vmatpush.bf16.msra.mxu0 %v486
        %502 = vmatmul.bf16.gmra.mxu0 %v492
        %v503 = vpop.f32.mrf.mxu0
        %v504 = vadd.f32 %v476, %v503
        %v505 = vpop.f32.mrf.mxu0
        %506 = vdwg.mxu0
        %v507 = vpack.c.bf16 %v504, %v504
        %509 = vrot.lane.b32.xlu0 %v507, 124
        %v510 = vpop.permute.xlu0 %509
        %511 = vrot.lane.b32.xlu0 %v507, 120
        %v512 = vpop.permute.xlu0 %511
        %513 = vrot.lane.b32.xlu0 %v507, 116
        %v514 = vpop.permute.xlu0 %513
        %515 = vrot.lane.b32.xlu0 %v507, 112
        %v516 = vpop.permute.xlu0 %515
        %517 = vrot.lane.b32.xlu0 %v507, 108
        %v518 = vpop.permute.xlu0 %517
        %519 = vrot.lane.b32.xlu0 %v507, 104
        %v520 = vpop.permute.xlu0 %519
        %521 = vrot.lane.b32.xlu0 %v507, 100
        %v522 = vpop.permute.xlu0 %521
        %v523 = vunpack.c.l.b16 %v507
        %v524 = vpack.c.b16 %v523, %v523
        %525 = vrot.lane.b32.xlu0 %v524, 96
        %v526 = vpop.permute.xlu0 %525
        %vm527 = vcmask 31744
        %v529 = vsel %vm527, %v507, 0
        %v532 = vsel %vm527, %v526, 0
        %534 = vmatpush.bf16.xpose.msra.mxu0 0
        %535 = vmatpush.bf16.xpose.msra.mxu0 0
        %536 = vmatpush.bf16.xpose.msra.mxu0 0
        %537 = vmatpush.bf16.xpose.msra.mxu0 0
        %538 = vmatpush.bf16.xpose.msra.mxu0 0
        %539 = vmatpush.bf16.xpose.msra.mxu0 0
        %540 = vmatpush.bf16.xpose.msra.mxu0 0
        %541 = vmatpush.bf16.xpose.msra.mxu0 %v532
        %542 = vmatmul.bf16.gmra.mxu0 %v529
        %v543 = vpop.f32.mrf.mxu0
        %v544 = vadd.f32 0.0, %v543
        %v545 = vpop.f32.mrf.mxu0
        %546 = vdwg.mxu0
        %v547 = vunpack.c.l.b16 %v510
        %v548 = vpack.c.b16 %v547, %v547
        %549 = vrot.lane.b32.xlu0 %v548, 96
        %v550 = vpop.permute.xlu0 %549
        %v552 = vsel %vm527, %v510, 0
        %v555 = vsel %vm527, %v550, 0
        %557 = vmatpush.bf16.xpose.msra.mxu0 0
        %558 = vmatpush.bf16.xpose.msra.mxu0 0
        %559 = vmatpush.bf16.xpose.msra.mxu0 0
        %560 = vmatpush.bf16.xpose.msra.mxu0 0
        %561 = vmatpush.bf16.xpose.msra.mxu0 0
        %562 = vmatpush.bf16.xpose.msra.mxu0 0
        %563 = vmatpush.bf16.xpose.msra.mxu0 0
        %564 = vmatpush.bf16.xpose.msra.mxu0 %v555
        %565 = vmatmul.bf16.gmra.mxu0 %v552
        %v566 = vpop.f32.mrf.mxu0
        %v567 = vadd.f32 0.0, %v566
        %v568 = vpop.f32.mrf.mxu0
        %569 = vdwg.mxu0
        %v570 = vunpack.c.l.b16 %v512
        %v571 = vpack.c.b16 %v570, %v570
        %572 = vrot.lane.b32.xlu0 %v571, 96
        %v573 = vpop.permute.xlu0 %572
        %v575 = vsel %vm527, %v512, 0
        %v578 = vsel %vm527, %v573, 0
        %580 = vmatpush.bf16.xpose.msra.mxu0 0
        %581 = vmatpush.bf16.xpose.msra.mxu0 0
        %582 = vmatpush.bf16.xpose.msra.mxu0 0
        %583 = vmatpush.bf16.xpose.msra.mxu0 0
        %584 = vmatpush.bf16.xpose.msra.mxu0 0
        %585 = vmatpush.bf16.xpose.msra.mxu0 0
        %586 = vmatpush.bf16.xpose.msra.mxu0 0
        %587 = vmatpush.bf16.xpose.msra.mxu0 %v578
        %588 = vmatmul.bf16.gmra.mxu0 %v575
        %v589 = vpop.f32.mrf.mxu0
        %v590 = vadd.f32 0.0, %v589
        %v591 = vpop.f32.mrf.mxu0
        %592 = vdwg.mxu0
        %v593 = vunpack.c.l.b16 %v514
        %v594 = vpack.c.b16 %v593, %v593
        %595 = vrot.lane.b32.xlu0 %v594, 96
        %v596 = vpop.permute.xlu0 %595
        %v598 = vsel %vm527, %v514, 0
        %v601 = vsel %vm527, %v596, 0
        %603 = vmatpush.bf16.xpose.msra.mxu0 0
        %604 = vmatpush.bf16.xpose.msra.mxu0 0
        %605 = vmatpush.bf16.xpose.msra.mxu0 0
        %606 = vmatpush.bf16.xpose.msra.mxu0 0
        %607 = vmatpush.bf16.xpose.msra.mxu0 0
        %608 = vmatpush.bf16.xpose.msra.mxu0 0
        %609 = vmatpush.bf16.xpose.msra.mxu0 0
        %610 = vmatpush.bf16.xpose.msra.mxu0 %v601
        %611 = vmatmul.bf16.gmra.mxu0 %v598
        %v612 = vpop.f32.mrf.mxu0
        %v613 = vadd.f32 0.0, %v612
        %v614 = vpop.f32.mrf.mxu0
        %615 = vdwg.mxu0
        %v616 = vunpack.c.l.b16 %v516
        %v617 = vpack.c.b16 %v616, %v616
        %618 = vrot.lane.b32.xlu0 %v617, 96
        %v619 = vpop.permute.xlu0 %618
        %v621 = vsel %vm527, %v516, 0
        %v624 = vsel %vm527, %v619, 0
        %626 = vmatpush.bf16.xpose.msra.mxu0 0
        %627 = vmatpush.bf16.xpose.msra.mxu0 0
        %628 = vmatpush.bf16.xpose.msra.mxu0 0
        %629 = vmatpush.bf16.xpose.msra.mxu0 0
        %630 = vmatpush.bf16.xpose.msra.mxu0 0
        %631 = vmatpush.bf16.xpose.msra.mxu0 0
        %632 = vmatpush.bf16.xpose.msra.mxu0 0
        %633 = vmatpush.bf16.xpose.msra.mxu0 %v624
        %634 = vmatmul.bf16.gmra.mxu0 %v621
        %v635 = vpop.f32.mrf.mxu0
        %v636 = vadd.f32 0.0, %v635
        %v637 = vpop.f32.mrf.mxu0
        %638 = vdwg.mxu0
        %v639 = vunpack.c.l.b16 %v518
        %v640 = vpack.c.b16 %v639, %v639
        %641 = vrot.lane.b32.xlu0 %v640, 96
        %v642 = vpop.permute.xlu0 %641
        %v644 = vsel %vm527, %v518, 0
        %v647 = vsel %vm527, %v642, 0
        %649 = vmatpush.bf16.xpose.msra.mxu0 0
        %650 = vmatpush.bf16.xpose.msra.mxu0 0
        %651 = vmatpush.bf16.xpose.msra.mxu0 0
        %652 = vmatpush.bf16.xpose.msra.mxu0 0
        %653 = vmatpush.bf16.xpose.msra.mxu0 0
        %654 = vmatpush.bf16.xpose.msra.mxu0 0
        %655 = vmatpush.bf16.xpose.msra.mxu0 0
        %656 = vmatpush.bf16.xpose.msra.mxu0 %v647
        %657 = vmatmul.bf16.gmra.mxu0 %v644
        %v658 = vpop.f32.mrf.mxu0
        %v659 = vadd.f32 0.0, %v658
        %v660 = vpop.f32.mrf.mxu0
        %661 = vdwg.mxu0
        %v662 = vunpack.c.l.b16 %v520
        %v663 = vpack.c.b16 %v662, %v662
        %664 = vrot.lane.b32.xlu0 %v663, 96
        %v665 = vpop.permute.xlu0 %664
        %v667 = vsel %vm527, %v520, 0
        %v670 = vsel %vm527, %v665, 0
        %672 = vmatpush.bf16.xpose.msra.mxu0 0
        %673 = vmatpush.bf16.xpose.msra.mxu0 0
        %674 = vmatpush.bf16.xpose.msra.mxu0 0
        %675 = vmatpush.bf16.xpose.msra.mxu0 0
        %676 = vmatpush.bf16.xpose.msra.mxu0 0
        %677 = vmatpush.bf16.xpose.msra.mxu0 0
        %678 = vmatpush.bf16.xpose.msra.mxu0 0
        %679 = vmatpush.bf16.xpose.msra.mxu0 %v670
        %680 = vmatmul.bf16.gmra.mxu0 %v667
        %v681 = vpop.f32.mrf.mxu0
        %v682 = vadd.f32 0.0, %v681
        %v683 = vpop.f32.mrf.mxu0
        %684 = vdwg.mxu0
        %v685 = vunpack.c.l.b16 %v522
        %v686 = vpack.c.b16 %v685, %v685
        %687 = vrot.lane.b32.xlu0 %v686, 96
        %v688 = vpop.permute.xlu0 %687
        %v690 = vsel %vm527, %v522, 0
        %v693 = vsel %vm527, %v688, 0
        %695 = vmatpush.bf16.xpose.msra.mxu0 0
        %696 = vmatpush.bf16.xpose.msra.mxu0 0
        %697 = vmatpush.bf16.xpose.msra.mxu0 0
        %698 = vmatpush.bf16.xpose.msra.mxu0 0
        %699 = vmatpush.bf16.xpose.msra.mxu0 0
        %700 = vmatpush.bf16.xpose.msra.mxu0 0
        %701 = vmatpush.bf16.xpose.msra.mxu0 0
        %702 = vmatpush.bf16.xpose.msra.mxu0 %v693
        %703 = vmatmul.bf16.gmra.mxu0 %v690
        %v704 = vpop.f32.mrf.mxu0
        %v705 = vadd.f32 0.0, %v704
        %v706 = vpop.f32.mrf.mxu0
        %707 = vdwg.mxu0
        %vm708 = vcmask 64512
        %v709 = vsel %vm708, %v544, -inf
        %710 = vmax.xlane.f32.xlu0 %v709
        %v711 = vpop.xlane.xlu0 %710
        %v712 = vsel %vm708, %v567, -inf
        %713 = vmax.xlane.f32.xlu0 %v712
        %v714 = vpop.xlane.xlu0 %713
        %v715 = vsel %vm708, %v590, -inf
        %716 = vmax.xlane.f32.xlu0 %v715
        %v717 = vpop.xlane.xlu0 %716
        %v718 = vsel %vm708, %v613, -inf
        %719 = vmax.xlane.f32.xlu0 %v718
        %v720 = vpop.xlane.xlu0 %719
        %v721 = vsel %vm708, %v636, -inf
        %722 = vmax.xlane.f32.xlu0 %v721
        %v723 = vpop.xlane.xlu0 %722
        %v724 = vsel %vm708, %v659, -inf
        %725 = vmax.xlane.f32.xlu0 %v724
        %v726 = vpop.xlane.xlu0 %725
        %v727 = vsel %vm708, %v682, -inf
        %728 = vmax.xlane.f32.xlu0 %v727
        %v729 = vpop.xlane.xlu0 %728
        %v730 = vsel %vm708, %v705, -inf
        %731 = vmax.xlane.f32.xlu0 %v730
        %v732 = vpop.xlane.xlu0 %731
        %v733 = vsub.f32 %v544, %v711
        %v734 = vsub.f32 %v567, %v714
        %v735 = vsub.f32 %v590, %v717
        %v736 = vsub.f32 %v613, %v720
        %v737 = vsub.f32 %v636, %v723
        %v738 = vsub.f32 %v659, %v726
        %v739 = vsub.f32 %v682, %v729
        %v740 = vsub.f32 %v705, %v732
        %v741 = vmul.f32 %v733, 1.442695
        %v742 = vpow.pop %v741
        %v743 = vmul.f32 %v734, 1.442695
        %v744 = vpow.pop %v743
        %v745 = vmul.f32 %v735, 1.442695
        %v746 = vpow.pop %v745
        %v747 = vmul.f32 %v736, 1.442695
        %v748 = vpow.pop %v747
        %v749 = vmul.f32 %v737, 1.442695
        %v750 = vpow.pop %v749
        %v751 = vmul.f32 %v738, 1.442695
        %v752 = vpow.pop %v751
        %v753 = vmul.f32 %v739, 1.442695
        %v754 = vpow.pop %v753
        %v755 = vmul.f32 %v740, 1.442695
        %v756 = vpow.pop %v755
        %v757 = vsel %vm708, %v742, 0.0
        %758 = vadd.xlane.f32.xlu0 %v757
        %v759 = vpop.xlane.xlu0 %758
        %v760 = vsel %vm708, %v744, 0.0
        %761 = vadd.xlane.f32.xlu0 %v760
        %v762 = vpop.xlane.xlu0 %761
        %v763 = vsel %vm708, %v746, 0.0
        %764 = vadd.xlane.f32.xlu0 %v763
        %v765 = vpop.xlane.xlu0 %764
        %v766 = vsel %vm708, %v748, 0.0
        %767 = vadd.xlane.f32.xlu0 %v766
        %v768 = vpop.xlane.xlu0 %767
        %v769 = vsel %vm708, %v750, 0.0
        %770 = vadd.xlane.f32.xlu0 %v769
        %v771 = vpop.xlane.xlu0 %770
        %v772 = vsel %vm708, %v752, 0.0
        %773 = vadd.xlane.f32.xlu0 %v772
        %v774 = vpop.xlane.xlu0 %773
        %v775 = vsel %vm708, %v754, 0.0
        %776 = vadd.xlane.f32.xlu0 %v775
        %v777 = vpop.xlane.xlu0 %776
        %v778 = vsel %vm708, %v756, 0.0
        %779 = vadd.xlane.f32.xlu0 %v778
        %v780 = vpop.xlane.xlu0 %779
        %v781 = vrcp.pop %v759
        %v782 = vrcp.pop %v762
        %v783 = vrcp.pop %v765
        %v784 = vrcp.pop %v768
        %v785 = vrcp.pop %v771
        %v786 = vrcp.pop %v774
        %v787 = vrcp.pop %v777
        %v788 = vrcp.pop %v780
        %v789 = vmul.f32 %v742, %v781
        %v790 = vmul.f32 %v744, %v782
        %v791 = vmul.f32 %v746, %v783
        %v792 = vmul.f32 %v748, %v784
        %v793 = vmul.f32 %v750, %v785
        %v794 = vmul.f32 %v752, %v786
        %v795 = vmul.f32 %v754, %v787
        %v796 = vmul.f32 %v756, %v788
        %v797 = vpack.c.bf16 %v789, %v789
        %v798 = vpack.c.bf16 %v790, %v790
        %v799 = vpack.c.bf16 %v791, %v791
        %v800 = vpack.c.bf16 %v792, %v792
        %v801 = vpack.c.bf16 %v793, %v793
        %v802 = vpack.c.bf16 %v794, %v794
        %v803 = vpack.c.bf16 %v795, %v795
        %v804 = vpack.c.bf16 %v796, %v796
        %805 = vrot.lane.b32.xlu0 %v524, 64
        %v806 = vpop.permute.xlu0 %805
        %v808 = vsel %vm708, %v797, 0
        %vm810 = vcmask 1043456
        %v812 = vsel %vm810, %v806, 0
        %814 = vmatpush.bf16.msra.mxu0 0
        %815 = vmatpush.bf16.msra.mxu0 0
        %816 = vmatpush.bf16.msra.mxu0 0
        %817 = vmatpush.bf16.msra.mxu0 0
        %818 = vmatpush.bf16.msra.mxu0 0
        %819 = vmatpush.bf16.msra.mxu0 0
        %820 = vmatpush.bf16.msra.mxu0 0
        %821 = vmatpush.bf16.msra.mxu0 %v812
        %822 = vmatmul.bf16.gmra.mxu0 %v808
        %v823 = vpop.f32.mrf.mxu0
        %v824 = vadd.f32 0.0, %v823
        %v825 = vpop.f32.mrf.mxu0
        %826 = vdwg.mxu0
        %827 = vrot.lane.b32.xlu0 %v548, 64
        %v828 = vpop.permute.xlu0 %827
        %v830 = vsel %vm708, %v798, 0
        %v833 = vsel %vm810, %v828, 0
        %835 = vmatpush.bf16.msra.mxu0 0
        %836 = vmatpush.bf16.msra.mxu0 0
        %837 = vmatpush.bf16.msra.mxu0 0
        %838 = vmatpush.bf16.msra.mxu0 0
        %839 = vmatpush.bf16.msra.mxu0 0
        %840 = vmatpush.bf16.msra.mxu0 0
        %841 = vmatpush.bf16.msra.mxu0 0
        %842 = vmatpush.bf16.msra.mxu0 %v833
        %843 = vmatmul.bf16.gmra.mxu0 %v830
        %v844 = vpop.f32.mrf.mxu0
        %v845 = vadd.f32 0.0, %v844
        %v846 = vpop.f32.mrf.mxu0
        %847 = vdwg.mxu0
        %848 = vrot.lane.b32.xlu0 %v571, 64
        %v849 = vpop.permute.xlu0 %848
        %v851 = vsel %vm708, %v799, 0
        %v854 = vsel %vm810, %v849, 0
        %856 = vmatpush.bf16.msra.mxu0 0
        %857 = vmatpush.bf16.msra.mxu0 0
        %858 = vmatpush.bf16.msra.mxu0 0
        %859 = vmatpush.bf16.msra.mxu0 0
        %860 = vmatpush.bf16.msra.mxu0 0
        %861 = vmatpush.bf16.msra.mxu0 0
        %862 = vmatpush.bf16.msra.mxu0 0
        %863 = vmatpush.bf16.msra.mxu0 %v854
        %864 = vmatmul.bf16.gmra.mxu0 %v851
        %v865 = vpop.f32.mrf.mxu0
        %v866 = vadd.f32 0.0, %v865
        %v867 = vpop.f32.mrf.mxu0
        %868 = vdwg.mxu0
        %869 = vrot.lane.b32.xlu0 %v594, 64
        %v870 = vpop.permute.xlu0 %869
        %v872 = vsel %vm708, %v800, 0
        %v875 = vsel %vm810, %v870, 0
        %877 = vmatpush.bf16.msra.mxu0 0
        %878 = vmatpush.bf16.msra.mxu0 0
        %879 = vmatpush.bf16.msra.mxu0 0
        %880 = vmatpush.bf16.msra.mxu0 0
        %881 = vmatpush.bf16.msra.mxu0 0
        %882 = vmatpush.bf16.msra.mxu0 0
        %883 = vmatpush.bf16.msra.mxu0 0
        %884 = vmatpush.bf16.msra.mxu0 %v875
        %885 = vmatmul.bf16.gmra.mxu0 %v872
        %v886 = vpop.f32.mrf.mxu0
        %v887 = vadd.f32 0.0, %v886
        %v888 = vpop.f32.mrf.mxu0
        %889 = vdwg.mxu0
        %890 = vrot.lane.b32.xlu0 %v617, 64
        %v891 = vpop.permute.xlu0 %890
        %v893 = vsel %vm708, %v801, 0
        %v896 = vsel %vm810, %v891, 0
        %898 = vmatpush.bf16.msra.mxu0 0
        %899 = vmatpush.bf16.msra.mxu0 0
        %900 = vmatpush.bf16.msra.mxu0 0
        %901 = vmatpush.bf16.msra.mxu0 0
        %902 = vmatpush.bf16.msra.mxu0 0
        %903 = vmatpush.bf16.msra.mxu0 0
        %904 = vmatpush.bf16.msra.mxu0 0
        %905 = vmatpush.bf16.msra.mxu0 %v896
        %906 = vmatmul.bf16.gmra.mxu0 %v893
        %v907 = vpop.f32.mrf.mxu0
        %v908 = vadd.f32 0.0, %v907
        %v909 = vpop.f32.mrf.mxu0
        %910 = vdwg.mxu0
        %911 = vrot.lane.b32.xlu0 %v640, 64
        %v912 = vpop.permute.xlu0 %911
        %v914 = vsel %vm708, %v802, 0
        %v917 = vsel %vm810, %v912, 0
        %919 = vmatpush.bf16.msra.mxu0 0
        %920 = vmatpush.bf16.msra.mxu0 0
        %921 = vmatpush.bf16.msra.mxu0 0
        %922 = vmatpush.bf16.msra.mxu0 0
        %923 = vmatpush.bf16.msra.mxu0 0
        %924 = vmatpush.bf16.msra.mxu0 0
        %925 = vmatpush.bf16.msra.mxu0 0
        %926 = vmatpush.bf16.msra.mxu0 %v917
        %927 = vmatmul.bf16.gmra.mxu0 %v914
        %v928 = vpop.f32.mrf.mxu0
        %v929 = vadd.f32 0.0, %v928
        %v930 = vpop.f32.mrf.mxu0
        %931 = vdwg.mxu0
        %932 = vrot.lane.b32.xlu0 %v663, 64
        %v933 = vpop.permute.xlu0 %932
        %v935 = vsel %vm708, %v803, 0
        %v938 = vsel %vm810, %v933, 0
        %940 = vmatpush.bf16.msra.mxu0 0
        %941 = vmatpush.bf16.msra.mxu0 0
        %942 = vmatpush.bf16.msra.mxu0 0
        %943 = vmatpush.bf16.msra.mxu0 0
        %944 = vmatpush.bf16.msra.mxu0 0
        %945 = vmatpush.bf16.msra.mxu0 0
        %946 = vmatpush.bf16.msra.mxu0 0
        %947 = vmatpush.bf16.msra.mxu0 %v938
        %948 = vmatmul.bf16.gmra.mxu0 %v935
        %v949 = vpop.f32.mrf.mxu0
        %v950 = vadd.f32 0.0, %v949
        %v951 = vpop.f32.mrf.mxu0
        %952 = vdwg.mxu0
        %953 = vrot.lane.b32.xlu0 %v686, 64
        %v954 = vpop.permute.xlu0 %953
        %v956 = vsel %vm708, %v804, 0
        %v959 = vsel %vm810, %v954, 0
        %961 = vmatpush.bf16.msra.mxu0 0
        %962 = vmatpush.bf16.msra.mxu0 0
        %963 = vmatpush.bf16.msra.mxu0 0
        %964 = vmatpush.bf16.msra.mxu0 0
        %965 = vmatpush.bf16.msra.mxu0 0
        %966 = vmatpush.bf16.msra.mxu0 0
        %967 = vmatpush.bf16.msra.mxu0 0
        %968 = vmatpush.bf16.msra.mxu0 %v959
        %969 = vmatmul.bf16.gmra.mxu0 %v956
        %v970 = vpop.f32.mrf.mxu0
        %v971 = vadd.f32 0.0, %v970
        %v972 = vpop.f32.mrf.mxu0
        %973 = vdwg.mxu0
        %v974 = vpack.c.bf16 %v824, %v824
        %v975 = vpack.c.bf16 %v845, %v845
        %v976 = vpack.c.bf16 %v866, %v866
        %v977 = vpack.c.bf16 %v887, %v887
        %v978 = vpack.c.bf16 %v908, %v908
        %v979 = vpack.c.bf16 %v929, %v929
        %v980 = vpack.c.bf16 %v950, %v950
        %v981 = vpack.c.bf16 %v971, %v971
        %v983 = vunpack.c.l.b16 %v975
        %v984 = vpack.c.b16 %v983, %v983
        %985 = vrot.lane.b32.xlu0 %v984, 4
        %v986 = vpop.permute.xlu0 %985
        %v988 = vunpack.c.l.b16 %v976
        %v989 = vpack.c.b16 %v988, %v988
        %990 = vrot.lane.b32.xlu0 %v989, 8
        %v991 = vpop.permute.xlu0 %990
        %v993 = vunpack.c.l.b16 %v977
        %v994 = vpack.c.b16 %v993, %v993
        %995 = vrot.lane.b32.xlu0 %v994, 12
        %v996 = vpop.permute.xlu0 %995
        %v998 = vunpack.c.l.b16 %v978
        %v999 = vpack.c.b16 %v998, %v998
        %1000 = vrot.lane.b32.xlu0 %v999, 16
        %v1001 = vpop.permute.xlu0 %1000
        %v1003 = vunpack.c.l.b16 %v979
        %v1004 = vpack.c.b16 %v1003, %v1003
        %1005 = vrot.lane.b32.xlu0 %v1004, 20
        %v1006 = vpop.permute.xlu0 %1005
        %v1008 = vunpack.c.l.b16 %v980
        %v1009 = vpack.c.b16 %v1008, %v1008
        %1010 = vrot.lane.b32.xlu0 %v1009, 24
        %v1011 = vpop.permute.xlu0 %1010
        %v1013 = vunpack.c.l.b16 %v981
        %v1014 = vpack.c.b16 %v1013, %v1013
        %1015 = vrot.lane.b32.xlu0 %v1014, 28
        %v1016 = vpop.permute.xlu0 %1015
        %v1019 = vsel %vm527, %v974, %v986
        %v1021 = vsel %vm708, %v1019, %v991
        %vm1022 = vcmask 97280
        %v1024 = vsel %vm1022, %v1021, %v996
        %vm1025 = vcmask 130048
        %v1027 = vsel %vm1025, %v1024, %v1001
        %vm1028 = vcmask 162816
        %v1030 = vsel %vm1028, %v1027, %v1006
        %vm1031 = vcmask 195584
        %v1033 = vsel %vm1031, %v1030, %v1011
        %vm1034 = vcmask 228352
        %v1036 = vsel %vm1034, %v1033, %v1016
        %v1038 = vperm.slane %v446, 0
        %v1044 = vunpack.c.l.b16 %v442
        %v1045 = vunpack.c.l.b16 %v443
        %v1046 = vunpack.c.l.b16 %v444
        %v1047 = vunpack.c.l.b16 %v445
        %v1048 = vpack.c.b16 %v1045, %v1044
        %v1049 = vpack.c.b16 %v1047, %v1046
        %v1052 = vsel %vm490, %v1036, 0
        %1054 = vmatpush.bf16.msra.mxu0 0
        %1055 = vmatpush.bf16.msra.mxu0 0
        %1056 = vmatpush.bf16.msra.mxu0 0
        %1057 = vmatpush.bf16.msra.mxu0 0
        %1058 = vmatpush.bf16.msra.mxu0 0
        %1059 = vmatpush.bf16.msra.mxu0 0
        %1060 = vmatpush.bf16.msra.mxu0 %v1049
        %1061 = vmatpush.bf16.msra.mxu0 %v1048
        %1062 = vmatmul.bf16.gmra.mxu0 %v1052
        %v1063 = vpop.f32.mrf.mxu0
        %v1064 = vadd.f32 %v1038, %v1063
        %v1065 = vpop.f32.mrf.mxu0
        %1066 = vdwg.mxu0
        %v1067 = vadd.f32 %v473, %v1064
        %v1068 = vsel %vm490, %v1067, 0.0
        %1069 = vadd.xlane.f32.xlu0 %v1068
        %v1070 = vpop.xlane.xlu0 %1069
        %v1071 = vrcp.pop 32.0
        %v1072 = vmul.f32 32.0, %v1071
        %v1073 = vsub.f32 1.0, %v1072
        %v1074 = vmul.f32 %v1071, %v1073
        %v1075 = vadd.f32 %v1071, %v1074
        %vm1076 = vweird.f32 %v1071
        %v1077 = vsel %vm1076, %v1071, %v1075
        %v1078 = vmul.f32 %v1070, %v1077
        %v1079 = vsub.f32 %v1067, %v1078
        %v1080 = vmul.f32 %v1079, %v1079
        %v1081 = vsel %vm490, %v1080, 0.0
        %1082 = vadd.xlane.f32.xlu0 %v1081
        %v1083 = vpop.xlane.xlu0 %1082
        %v1084 = vmul.f32 %v1083, %v1077
        %v1085 = vadd.f32 %v1084, 1e-05
        %v1086 = vrsqrt.pop %v1085
        %v1087 = vmul.f32 %v1086, %v1085
        %v1088 = vmul.f32 %v1087, %v1086
        %v1089 = vmul.f32 0.5, %v1088
        %v1090 = vsub.f32 1.5, %v1089
        %v1091 = vmul.f32 %v1086, %v1090
        %vm1092 = vweird.f32 %v1085
        %vm1093 = vweird.f32 %v1086
        %vm1094 = vmor %vm1092, %vm1093
        %v1095 = vsel %vm1094, %v1086, %v1091
        %v1096 = vmul.f32 %v1079, %v1095
        %v1098 = vperm.slane %v447, 0
        %v1100 = vmul.f32 %v1096, %v1098
        %v1102 = vperm.slane %v448, 0
        %v1104 = vadd.f32 %v1100, %v1102
        %v1105 = vpack.c.bf16 %v1104, %v1104
        %v1107 = vperm.slane %v453, 0
        %v1113 = vunpack.c.l.b16 %v449
        %v1114 = vunpack.c.l.b16 %v450
        %v1115 = vunpack.c.l.b16 %v451
        %v1116 = vunpack.c.l.b16 %v452
        %v1117 = vpack.c.b16 %v1114, %v1113
        %v1118 = vpack.c.b16 %v1116, %v1115
        %v1122 = vsel %vm490, %v1105, 0
        %1124 = vmatpush.bf16.msra.mxu0 0
        %1125 = vmatpush.bf16.msra.mxu0 0
        %1126 = vmatpush.bf16.msra.mxu0 0
        %1127 = vmatpush.bf16.msra.mxu0 0
        %1128 = vmatpush.bf16.msra.mxu0 0
        %1129 = vmatpush.bf16.msra.mxu0 0
        %1130 = vmatpush.bf16.msra.mxu0 %v1118
        %1131 = vmatpush.bf16.msra.mxu0 %v1117
        %1132 = vmatmul.bf16.gmra.mxu0 %v1122
        %v1133 = vpop.f32.mrf.mxu0
        %v1134 = vadd.f32 %v1107, %v1133
        %v1135 = vpop.f32.mrf.mxu0
        %1136 = vdwg.mxu0
        %v1137 = vmax.f32 %v1134, 0.0
        %v1138 = vpack.c.bf16 %v1137, %v1137
        %v1140 = vperm.slane %v470, 0
        %v1158 = vunpack.c.l.b16 %v454
        %v1159 = vunpack.c.l.b16 %v455
        %v1160 = vunpack.c.l.b16 %v456
        %v1161 = vunpack.c.l.b16 %v457
        %v1162 = vunpack.c.l.b16 %v458
        %v1163 = vunpack.c.l.b16 %v459
        %v1164 = vunpack.c.l.b16 %v460
        %v1165 = vunpack.c.l.b16 %v461
        %v1166 = vunpack.c.l.b16 %v462
        %v1167 = vunpack.c.l.b16 %v463
        %v1168 = vunpack.c.l.b16 %v464
        %v1169 = vunpack.c.l.b16 %v465
        %v1170 = vunpack.c.l.b16 %v466
        %v1171 = vunpack.c.l.b16 %v467
        %v1172 = vunpack.c.l.b16 %v468
        %v1173 = vunpack.c.l.b16 %v469
        %v1174 = vpack.c.b16 %v1159, %v1158
        %v1175 = vpack.c.b16 %v1161, %v1160
        %v1176 = vpack.c.b16 %v1163, %v1162
        %v1177 = vpack.c.b16 %v1165, %v1164
        %v1178 = vpack.c.b16 %v1167, %v1166
        %v1179 = vpack.c.b16 %v1169, %v1168
        %v1180 = vpack.c.b16 %v1171, %v1170
        %v1181 = vpack.c.b16 %v1173, %v1172
        %1190 = vmatpush.bf16.msra.mxu0 %v1181
        %1191 = vmatpush.bf16.msra.mxu0 %v1180
        %1192 = vmatpush.bf16.msra.mxu0 %v1179
        %1193 = vmatpush.bf16.msra.mxu0 %v1178
        %1194 = vmatpush.bf16.msra.mxu0 %v1177
        %1195 = vmatpush.bf16.msra.mxu0 %v1176
        %1196 = vmatpush.bf16.msra.mxu0 %v1175
        %1197 = vmatpush.bf16.msra.mxu0 %v1174
        %1198 = vmatmul.bf16.gmra.mxu0 %v1138
        %v1199 = vpop.f32.mrf.mxu0
        %v1200 = vadd.f32 %v1140, %v1199
        %v1201 = vpop.f32.mrf.mxu0
        %1202 = vdwg.mxu0
        %v1203 = vadd.f32 %v1104, %v1200
        %v1204 = vsel %vm490, %v1203, 0.0
        %1205 = vadd.xlane.f32.xlu0 %v1204
        %v1206 = vpop.xlane.xlu0 %1205
        %v1207 = vmul.f32 %v1206, %v1077
        %v1208 = vsub.f32 %v1203, %v1207
        %v1209 = vmul.f32 %v1208, %v1208
        %v1210 = vsel %vm490, %v1209, 0.0
        %1211 = vadd.xlane.f32.xlu0 %v1210
        %v1212 = vpop.xlane.xlu0 %1211
        %v1213 = vmul.f32 %v1212, %v1077
        %v1214 = vadd.f32 %v1213, 1e-05
        %v1215 = vrsqrt.pop %v1214
        %v1216 = vmul.f32 %v1215, %v1214
        %v1217 = vmul.f32 %v1216, %v1215
        %v1218 = vmul.f32 0.5, %v1217
        %v1219 = vsub.f32 1.5, %v1218
        %v1220 = vmul.f32 %v1215, %v1219
        %vm1221 = vweird.f32 %v1214
        %vm1222 = vweird.f32 %v1215
        %vm1223 = vmor %vm1221, %vm1222
        %v1224 = vsel %vm1223, %v1215, %v1220
        %v1225 = vmul.f32 %v1208, %v1224
        %v1227 = vperm.slane %v471, 0
        %v1229 = vmul.f32 %v1225, %v1227
        %v1231 = vperm.slane %v472, 0
        %v1233 = vadd.f32 %v1229, %v1231
        %1234 = vst.msk [vmem:[%s431] sm:$0xff] %vm490, %v1233
        %s1235 = sand.u32 %s313, 1
        %s1236 = scalar_lea.sflag [#allocation3], %s1235
        %s1237 = sand.u32 %s313, 1
        %s1238 = smul.addr %s1237, 8
        %s1239 = scalar_lea.vmem [#allocation2], %s1238
        // Predicated region
        $region73: #{tpu_custom_call.1} parent=71 // pred_check
          %p1240 = pneg %p323
        $region74: #{tpu_custom_call.1} parent=71 // pred_check_branch
          %1242 = sbr.rel (%p1240) target = $region76
        $region75: #{tpu_custom_call.1} parent=71 // pred_region
          %1244 = vsyncadd %s1236, 0
          %s1245 = smul.addr %s27, 8
          %s1246 = scalar_lea.hbm %s13, %s1245
          %s1248 = sshll.u32 %s1239, 4
          %s1249 = int_to_ptr.vmem [resolvable:$true] %s1248
          %s1250 = sshll.u32 %s1246, 4
          %s1251 = int_to_ptr.hbm [resolvable:$true] %s1250
          %1253 = dma.vmem_to_hbm [thread:$0]  %s1249, 128, %s1251, %s1236
        $region76: #{tpu_custom_call.1} parent=71 // pred_fallthru
          _
      $region72: #{tpu_custom_call.1} parent=5 // pred_fallthru
        _
      %p1254 = scmp.le.s32.totalorder 2, %s22
      // Predicated region
      $region77: #{tpu_custom_call.1} parent=5 // pred_check
        %p1255 = pneg %p1254
      $region78: #{tpu_custom_call.1} parent=5 // pred_check_branch
        %1257 = sbr.rel (%p1255) target = $region80
      $region79: #{tpu_custom_call.1} parent=5 // pred_region
        %s1258 = ssub.s32 %s22, 2
        // Predicated region
        $region81: #{tpu_custom_call.1} parent=79 // pred_check
          %p1259 = pneg %p329
        $region82: #{tpu_custom_call.1} parent=79 // pred_check_branch
          %1261 = sbr.rel (%p1259) target = $region84
        $region83: #{tpu_custom_call.1} parent=79 // pred_region
          %s1262 = sand.u32 %s314, 1
          %s1263 = scalar_lea.sflag [#allocation3], %s1262
          %s1264 = sand.u32 %s314, 1
          %s1265 = smul.addr %s1264, 8
          %s1266 = scalar_lea.vmem [#allocation2], %s1265
          %1268 = dma.done %s1263, 128
        $region84: #{tpu_custom_call.1} parent=79 // pred_fallthru
          _
      $region80: #{tpu_custom_call.1} parent=5 // pred_fallthru
        _
    $region6: #{tpu_custom_call.1} parent=1 // loop_footer
      %s26 = sadd.s32 1, %s22
    $region7: #{tpu_custom_call.1} parent=1 // loop_footer_branch
      %21 = sbr.rel target = $region3
    $region8: #{tpu_custom_call.1} parent=1 // loop_exit
      _
    %1269 = vsyncpa [#allocation3], 1
    %s1270 = scalar_lea.sflag [#allocation3], 1
    %1271 = vsyncpa %s1270, 1

// kernel: tpu_custom_call.1
$region0: #{tpu_custom_call.1}
  #allocation0 [shape = 'u32[]', space=smem, size = 0x4, offset = 0x4, fixed_abs, tag = 'smem constant byte address 0x4 - core index']
  #allocation1 [shape = 'u32[72,128]{1,0:T(1,128)}', space=vmem, size = 0x9000, scoped, tag = 'internal scratch']
  %s0 = inlined_call_operand.vmem [shape: f32[2,8,32], index: 0, kind: input, shape index: {}]
  %s1 = inlined_call_operand.vmem [shape: bf16[32,96], index: 1, kind: input, shape index: {}]
  %s2 = inlined_call_operand.vmem [shape: f32[1,96], index: 2, kind: input, shape index: {}]
  %s3 = inlined_call_operand.vmem [shape: bf16[32,32], index: 3, kind: input, shape index: {}]
  %s4 = inlined_call_operand.vmem [shape: f32[1,32], index: 4, kind: input, shape index: {}]
  %s5 = inlined_call_operand.vmem [shape: f32[1,32], index: 5, kind: input, shape index: {}]
  %s6 = inlined_call_operand.vmem [shape: f32[1,32], index: 6, kind: input, shape index: {}]
  %s7 = inlined_call_operand.vmem [shape: bf16[32,128], index: 7, kind: input, shape index: {}]
  %s8 = inlined_call_operand.vmem [shape: f32[1,128], index: 8, kind: input, shape index: {}]
  %s9 = inlined_call_operand.vmem [shape: bf16[128,32], index: 9, kind: input, shape index: {}]
  %s10 = inlined_call_operand.vmem [shape: f32[1,32], index: 10, kind: input, shape index: {}]
  %s11 = inlined_call_operand.vmem [shape: f32[1,32], index: 11, kind: input, shape index: {}]
  %s12 = inlined_call_operand.vmem [shape: f32[1,32], index: 12, kind: input, shape index: {}]
  %s13 = inlined_call_operand.hbm [shape: f32[2,8,32], index: 13, kind: output, shape index: {}]
  %s14 = sld [smem:[#allocation0]]
  $region85: #{tpu_custom_call.1} parent=0
    _
  %s16 = ssub.s32 1, %s14
  %s17 = scalar_select 0, %s16, %s14
  $region1: #{tpu_custom_call.1} parent=0
    #allocation2 [shape = 'u8[8192]{0}', space=vmem, size = 0x2000, scoped, tag = 'output window, operand 0']
    #allocation3 [shape = 's32[2]{0}', space=sflag, size = 0x8, scoped, tag = 'scoped memory for tpu_custom_call.1']
    %18 = vsyncpa [#allocation3], 0
    %s19 = scalar_lea.sflag [#allocation3], 1
    %20 = vsyncpa %s19, 0
    loop: start=0, step=1, limit=4
    $region2: #{tpu_custom_call.1} parent=1 // loop_pre_header
      _
    $region3: #{tpu_custom_call.1} parent=1 // loop_header
      %s22 = sphi 0, %s26
      %p23 = scmp.ge.s32.totalorder %s22, 4
      %s32 = sphi 0, %s34
      %s35 = sphi 0, %s32
      %s36 = sphi 0, %s35
      %s52 = sphi 0, %s36
      %s56 = sphi 0, %s56
      %s58 = sphi 0, %s56
      %s59 = sphi 0, %s58
      %s73 = sphi 0, %s59
      %s77 = sphi 0, %s77
      %s79 = sphi 0, %s77
      %s80 = sphi 0, %s79
      %s94 = sphi 0, %s80
      %s98 = sphi 0, %s98
      %s100 = sphi 0, %s98
      %s101 = sphi 0, %s100
      %s115 = sphi 0, %s101
      %s119 = sphi 0, %s119
      %s121 = sphi 0, %s119
      %s122 = sphi 0, %s121
      %s136 = sphi 0, %s122
      %s140 = sphi 0, %s140
      %s142 = sphi 0, %s140
      %s143 = sphi 0, %s142
      %s157 = sphi 0, %s143
      %s161 = sphi 0, %s161
      %s163 = sphi 0, %s161
      %s164 = sphi 0, %s163
      %s178 = sphi 0, %s164
      %s182 = sphi 0, %s182
      %s184 = sphi 0, %s182
      %s185 = sphi 0, %s184
      %s199 = sphi 0, %s185
      %s203 = sphi 0, %s203
      %s205 = sphi 0, %s203
      %s206 = sphi 0, %s205
      %s220 = sphi 0, %s206
      %s224 = sphi 0, %s224
      %s226 = sphi 0, %s224
      %s227 = sphi 0, %s226
      %s241 = sphi 0, %s227
      %s245 = sphi 0, %s245
      %s247 = sphi 0, %s245
      %s248 = sphi 0, %s247
      %s262 = sphi 0, %s248
      %s266 = sphi 0, %s266
      %s268 = sphi 0, %s266
      %s269 = sphi 0, %s268
      %s283 = sphi 0, %s269
      %s287 = sphi 0, %s287
      %s289 = sphi 0, %s287
      %s290 = sphi 0, %s289
      %s304 = sphi 0, %s290
      %s310 = sphi 0, %s312
      %s313 = sphi 0, %s310
      %s314 = sphi 0, %s313
      %s330 = sphi 0, %s314
    $region4: #{tpu_custom_call.1} parent=1 // loop_header_branch
      %25 = sbr.rel (%p23) target = $region8
    $region5: #{tpu_custom_call.1} parent=1 // loop_body
      %s27 = ssub.s32 %s22, 1
      %s28 = ssub.s32 %s22, 2
      %s29 = sadd.s32 %s22, 1
      %s30 = ssub.s32 %s22, %s29
      %p31 = scmp.eq.s32.totalorder %s30, 0
      %s33 = sadd.s32 %s32, 1
      %s34 = scalar_select %p31, %s32, %s33
      %p37 = pneg %p31
      %p38 = scmp.eq.s32.totalorder %s22, 1
      %p39 = por %p37, %p38
      %p40 = scmp.ne.s32.totalorder %s32, %s35
      %p41 = scmp.eq.s32.totalorder %s22, 0
      %p42 = por %p40, %p41
      %p43 = scmp.ne.s32.totalorder %s32, %s35
      %p44 = scmp.eq.s32.totalorder %s27, 1
      %p45 = por %p43, %p44
      %p46 = scmp.ne.s32.totalorder %s35, %s36
      %p47 = scmp.eq.s32.totalorder %s27, 0
      %p48 = por %p46, %p47
      %p49 = scmp.ne.s32.totalorder %s35, %s36
      %p50 = scmp.eq.s32.totalorder %s28, 1
      %p51 = por %p49, %p50
      %p53 = scmp.ne.s32.totalorder %s36, %s52
      %p54 = scmp.eq.s32.totalorder %s28, 0
      %p55 = por %p53, %p54
      %s57 = sadd.s32 %s56, 1
      %p60 = scmp.eq.s32.totalorder %s22, 1
      %p61 = scmp.ne.s32.totalorder %s56, %s58
      %p62 = scmp.eq.s32.totalorder %s22, 0
      %p63 = por %p61, %p62
      %p64 = scmp.ne.s32.totalorder %s56, %s58
      %p65 = scmp.eq.s32.totalorder %s27, 1
      %p66 = por %p64, %p65
      %p67 = scmp.ne.s32.totalorder %s58, %s59
      %p68 = scmp.eq.s32.totalorder %s27, 0
      %p69 = por %p67, %p68
      %p70 = scmp.ne.s32.totalorder %s58, %s59
      %p71 = scmp.eq.s32.totalorder %s28, 1
      %p72 = por %p70, %p71
      %p74 = scmp.ne.s32.totalorder %s59, %s73
      %p75 = scmp.eq.s32.totalorder %s28, 0
      %p76 = por %p74, %p75
      %s78 = sadd.s32 %s77, 1
      %p81 = scmp.eq.s32.totalorder %s22, 1
      %p82 = scmp.ne.s32.totalorder %s77, %s79
      %p83 = scmp.eq.s32.totalorder %s22, 0
      %p84 = por %p82, %p83
      %p85 = scmp.ne.s32.totalorder %s77, %s79
      %p86 = scmp.eq.s32.totalorder %s27, 1
      %p87 = por %p85, %p86
      %p88 = scmp.ne.s32.totalorder %s79, %s80
      %p89 = scmp.eq.s32.totalorder %s27, 0
      %p90 = por %p88, %p89
      %p91 = scmp.ne.s32.totalorder %s79, %s80
      %p92 = scmp.eq.s32.totalorder %s28, 1
      %p93 = por %p91, %p92
      %p95 = scmp.ne.s32.totalorder %s80, %s94
      %p96 = scmp.eq.s32.totalorder %s28, 0
      %p97 = por %p95, %p96
      %s99 = sadd.s32 %s98, 1
      %p102 = scmp.eq.s32.totalorder %s22, 1
      %p103 = scmp.ne.s32.totalorder %s98, %s100
      %p104 = scmp.eq.s32.totalorder %s22, 0
      %p105 = por %p103, %p104
      %p106 = scmp.ne.s32.totalorder %s98, %s100
      %p107 = scmp.eq.s32.totalorder %s27, 1
      %p108 = por %p106, %p107
      %p109 = scmp.ne.s32.totalorder %s100, %s101
      %p110 = scmp.eq.s32.totalorder %s27, 0
      %p111 = por %p109, %p110
      %p112 = scmp.ne.s32.totalorder %s100, %s101
      %p113 = scmp.eq.s32.totalorder %s28, 1
      %p114 = por %p112, %p113
      %p116 = scmp.ne.s32.totalorder %s101, %s115
      %p117 = scmp.eq.s32.totalorder %s28, 0
      %p118 = por %p116, %p117
      %s120 = sadd.s32 %s119, 1
      %p123 = scmp.eq.s32.totalorder %s22, 1
      %p124 = scmp.ne.s32.totalorder %s119, %s121
      %p125 = scmp.eq.s32.totalorder %s22, 0
      %p126 = por %p124, %p125
      %p127 = scmp.ne.s32.totalorder %s119, %s121
      %p128 = scmp.eq.s32.totalorder %s27, 1
      %p129 = por %p127, %p128
      %p130 = scmp.ne.s32.totalorder %s121, %s122
      %p131 = scmp.eq.s32.totalorder %s27, 0
      %p132 = por %p130, %p131
      %p133 = scmp.ne.s32.totalorder %s121, %s122
      %p134 = scmp.eq.s32.totalorder %s28, 1
      %p135 = por %p133, %p134
      %p137 = scmp.ne.s32.totalorder %s122, %s136
      %p138 = scmp.eq.s32.totalorder %s28, 0
      %p139 = por %p137, %p138
      %s141 = sadd.s32 %s140, 1
      %p144 = scmp.eq.s32.totalorder %s22, 1
      %p145 = scmp.ne.s32.totalorder %s140, %s142
      %p146 = scmp.eq.s32.totalorder %s22, 0
      %p147 = por %p145, %p146
      %p148 = scmp.ne.s32.totalorder %s140, %s142
      %p149 = scmp.eq.s32.totalorder %s27, 1
      %p150 = por %p148, %p149
      %p151 = scmp.ne.s32.totalorder %s142, %s143
      %p152 = scmp.eq.s32.totalorder %s27, 0
      %p153 = por %p151, %p152
      %p154 = scmp.ne.s32.totalorder %s142, %s143
      %p155 = scmp.eq.s32.totalorder %s28, 1
      %p156 = por %p154, %p155
      %p158 = scmp.ne.s32.totalorder %s143, %s157
      %p159 = scmp.eq.s32.totalorder %s28, 0
      %p160 = por %p158, %p159
      %s162 = sadd.s32 %s161, 1
      %p165 = scmp.eq.s32.totalorder %s22, 1
      %p166 = scmp.ne.s32.totalorder %s161, %s163
      %p167 = scmp.eq.s32.totalorder %s22, 0
      %p168 = por %p166, %p167
      %p169 = scmp.ne.s32.totalorder %s161, %s163
      %p170 = scmp.eq.s32.totalorder %s27, 1
      %p171 = por %p169, %p170
      %p172 = scmp.ne.s32.totalorder %s163, %s164
      %p173 = scmp.eq.s32.totalorder %s27, 0
      %p174 = por %p172, %p173
      %p175 = scmp.ne.s32.totalorder %s163, %s164
      %p176 = scmp.eq.s32.totalorder %s28, 1
      %p177 = por %p175, %p176
      %p179 = scmp.ne.s32.totalorder %s164, %s178
      %p180 = scmp.eq.s32.totalorder %s28, 0
      %p181 = por %p179, %p180
      %s183 = sadd.s32 %s182, 1
      %p186 = scmp.eq.s32.totalorder %s22, 1
      %p187 = scmp.ne.s32.totalorder %s182, %s184
      %p188 = scmp.eq.s32.totalorder %s22, 0
      %p189 = por %p187, %p188
      %p190 = scmp.ne.s32.totalorder %s182, %s184
      %p191 = scmp.eq.s32.totalorder %s27, 1
      %p192 = por %p190, %p191
      %p193 = scmp.ne.s32.totalorder %s184, %s185
      %p194 = scmp.eq.s32.totalorder %s27, 0
      %p195 = por %p193, %p194
      %p196 = scmp.ne.s32.totalorder %s184, %s185
      %p197 = scmp.eq.s32.totalorder %s28, 1
      %p198 = por %p196, %p197
      %p200 = scmp.ne.s32.totalorder %s185, %s199
      %p201 = scmp.eq.s32.totalorder %s28, 0
      %p202 = por %p200, %p201
      %s204 = sadd.s32 %s203, 1
      %p207 = scmp.eq.s32.totalorder %s22, 1
      %p208 = scmp.ne.s32.totalorder %s203, %s205
      %p209 = scmp.eq.s32.totalorder %s22, 0
      %p210 = por %p208, %p209
      %p211 = scmp.ne.s32.totalorder %s203, %s205
      %p212 = scmp.eq.s32.totalorder %s27, 1
      %p213 = por %p211, %p212
      %p214 = scmp.ne.s32.totalorder %s205, %s206
      %p215 = scmp.eq.s32.totalorder %s27, 0
      %p216 = por %p214, %p215
      %p217 = scmp.ne.s32.totalorder %s205, %s206
      %p218 = scmp.eq.s32.totalorder %s28, 1
      %p219 = por %p217, %p218
      %p221 = scmp.ne.s32.totalorder %s206, %s220
      %p222 = scmp.eq.s32.totalorder %s28, 0
      %p223 = por %p221, %p222
      %s225 = sadd.s32 %s224, 1
      %p228 = scmp.eq.s32.totalorder %s22, 1
      %p229 = scmp.ne.s32.totalorder %s224, %s226
      %p230 = scmp.eq.s32.totalorder %s22, 0
      %p231 = por %p229, %p230
      %p232 = scmp.ne.s32.totalorder %s224, %s226
      %p233 = scmp.eq.s32.totalorder %s27, 1
      %p234 = por %p232, %p233
      %p235 = scmp.ne.s32.totalorder %s226, %s227
      %p236 = scmp.eq.s32.totalorder %s27, 0
      %p237 = por %p235, %p236
      %p238 = scmp.ne.s32.totalorder %s226, %s227
      %p239 = scmp.eq.s32.totalorder %s28, 1
      %p240 = por %p238, %p239
      %p242 = scmp.ne.s32.totalorder %s227, %s241
      %p243 = scmp.eq.s32.totalorder %s28, 0
      %p244 = por %p242, %p243
      %s246 = sadd.s32 %s245, 1
      %p249 = scmp.eq.s32.totalorder %s22, 1
      %p250 = scmp.ne.s32.totalorder %s245, %s247
      %p251 = scmp.eq.s32.totalorder %s22, 0
      %p252 = por %p250, %p251
      %p253 = scmp.ne.s32.totalorder %s245, %s247
      %p254 = scmp.eq.s32.totalorder %s27, 1
      %p255 = por %p253, %p254
      %p256 = scmp.ne.s32.totalorder %s247, %s248
      %p257 = scmp.eq.s32.totalorder %s27, 0
      %p258 = por %p256, %p257
      %p259 = scmp.ne.s32.totalorder %s247, %s248
      %p260 = scmp.eq.s32.totalorder %s28, 1
      %p261 = por %p259, %p260
      %p263 = scmp.ne.s32.totalorder %s248, %s262
      %p264 = scmp.eq.s32.totalorder %s28, 0
      %p265 = por %p263, %p264
      %s267 = sadd.s32 %s266, 1
      %p270 = scmp.eq.s32.totalorder %s22, 1
      %p271 = scmp.ne.s32.totalorder %s266, %s268
      %p272 = scmp.eq.s32.totalorder %s22, 0
      %p273 = por %p271, %p272
      %p274 = scmp.ne.s32.totalorder %s266, %s268
      %p275 = scmp.eq.s32.totalorder %s27, 1
      %p276 = por %p274, %p275
      %p277 = scmp.ne.s32.totalorder %s268, %s269
      %p278 = scmp.eq.s32.totalorder %s27, 0
      %p279 = por %p277, %p278
      %p280 = scmp.ne.s32.totalorder %s268, %s269
      %p281 = scmp.eq.s32.totalorder %s28, 1
      %p282 = por %p280, %p281
      %p284 = scmp.ne.s32.totalorder %s269, %s283
      %p285 = scmp.eq.s32.totalorder %s28, 0
      %p286 = por %p284, %p285
      %s288 = sadd.s32 %s287, 1
      %p291 = scmp.eq.s32.totalorder %s22, 1
      %p292 = scmp.ne.s32.totalorder %s287, %s289
      %p293 = scmp.eq.s32.totalorder %s22, 0
      %p294 = por %p292, %p293
      %p295 = scmp.ne.s32.totalorder %s287, %s289
      %p296 = scmp.eq.s32.totalorder %s27, 1
      %p297 = por %p295, %p296
      %p298 = scmp.ne.s32.totalorder %s289, %s290
      %p299 = scmp.eq.s32.totalorder %s27, 0
      %p300 = por %p298, %p299
      %p301 = scmp.ne.s32.totalorder %s289, %s290
      %p302 = scmp.eq.s32.totalorder %s28, 1
      %p303 = por %p301, %p302
      %p305 = scmp.ne.s32.totalorder %s290, %s304
      %p306 = scmp.eq.s32.totalorder %s28, 0
      %p307 = por %p305, %p306
      %s308 = ssub.s32 %s22, %s29
      %p309 = scmp.eq.s32.totalorder %s308, 0
      %s311 = sadd.s32 %s310, 1
      %s312 = scalar_select %p309, %s310, %s311
      %p315 = pneg %p309
      %p316 = scmp.eq.s32.totalorder %s22, 1
      %p317 = por %p315, %p316
      %p318 = scmp.ne.s32.totalorder %s310, %s313
      %p319 = scmp.eq.s32.totalorder %s22, 0
      %p320 = por %p318, %p319
      %p321 = scmp.ne.s32.totalorder %s310, %s313
      %p322 = scmp.eq.s32.totalorder %s27, 1
      %p323 = por %p321, %p322
      %p324 = scmp.ne.s32.totalorder %s313, %s314
      %p325 = scmp.eq.s32.totalorder %s27, 0
      %p326 = por %p324, %p325
      %p327 = scmp.ne.s32.totalorder %s313, %s314
      %p328 = scmp.eq.s32.totalorder %s28, 1
      %p329 = por %p327, %p328
      %p331 = scmp.ne.s32.totalorder %s314, %s330
      %p332 = scmp.eq.s32.totalorder %s28, 0
      %p333 = por %p331, %p332
      %p334 = scmp.le.s32.totalorder 1, %s22
      %p335 = scmp.lt.s32.totalorder %s22, 3
      %p336 = pnand %p334, %p335
      %p337 = pneg %p336
      // Predicated region
      $region9: #{tpu_custom_call.1} parent=5 // pred_check
        _
      $region10: #{tpu_custom_call.1} parent=5 // pred_check_branch
        %339 = sbr.rel (%p336) target = $region12
      $region11: #{tpu_custom_call.1} parent=5 // pred_region
        %s340 = ssub.s32 %s22, 1
        // Predicated region
        $region13: #{tpu_custom_call.1} parent=11 // pred_check
          %p341 = pneg %p69
        $region14: #{tpu_custom_call.1} parent=11 // pred_check_branch
          %343 = sbr.rel (%p341) target = $region16
        $region15: #{tpu_custom_call.1} parent=11 // pred_region
          _
        $region16: #{tpu_custom_call.1} parent=11 // pred_fallthru
          _
        // Predicated region
        $region17: #{tpu_custom_call.1} parent=11 // pred_check
          %p344 = pneg %p90
        $region18: #{tpu_custom_call.1} parent=11 // pred_check_branch
          %346 = sbr.rel (%p344) target = $region20
        $region19: #{tpu_custom_call.1} parent=11 // pred_region
          _
        $region20: #{tpu_custom_call.1} parent=11 // pred_fallthru
          _
        // Predicated region
        $region21: #{tpu_custom_call.1} parent=11 // pred_check
          %p347 = pneg %p111
        $region22: #{tpu_custom_call.1} parent=11 // pred_check_branch
          %349 = sbr.rel (%p347) target = $region24
        $region23: #{tpu_custom_call.1} parent=11 // pred_region
          _
        $region24: #{tpu_custom_call.1} parent=11 // pred_fallthru
          _
        // Predicated region
        $region25: #{tpu_custom_call.1} parent=11 // pred_check
          %p350 = pneg %p132
        $region26: #{tpu_custom_call.1} parent=11 // pred_check_branch
          %352 = sbr.rel (%p350) target = $region28
        $region27: #{tpu_custom_call.1} parent=11 // pred_region
          _
        $region28: #{tpu_custom_call.1} parent=11 // pred_fallthru
          _
        // Predicated region
        $region29: #{tpu_custom_call.1} parent=11 // pred_check
          %p353 = pneg %p153
        $region30: #{tpu_custom_call.1} parent=11 // pred_check_branch
          %355 = sbr.rel (%p353) target = $region32
        $region31: #{tpu_custom_call.1} parent=11 // pred_region
          _
        $region32: #{tpu_custom_call.1} parent=11 // pred_fallthru
          _
        // Predicated region
        $region33: #{tpu_custom_call.1} parent=11 // pred_check
          %p356 = pneg %p174
        $region34: #{tpu_custom_call.1} parent=11 // pred_check_branch
          %358 = sbr.rel (%p356) target = $region36
        $region35: #{tpu_custom_call.1} parent=11 // pred_region
          _
        $region36: #{tpu_custom_call.1} parent=11 // pred_fallthru
          _
        // Predicated region
        $region37: #{tpu_custom_call.1} parent=11 // pred_check
          %p359 = pneg %p195
        $region38: #{tpu_custom_call.1} parent=11 // pred_check_branch
          %361 = sbr.rel (%p359) target = $region40
        $region39: #{tpu_custom_call.1} parent=11 // pred_region
          _
        $region40: #{tpu_custom_call.1} parent=11 // pred_fallthru
          _
        // Predicated region
        $region41: #{tpu_custom_call.1} parent=11 // pred_check
          %p362 = pneg %p216
        $region42: #{tpu_custom_call.1} parent=11 // pred_check_branch
          %364 = sbr.rel (%p362) target = $region44
        $region43: #{tpu_custom_call.1} parent=11 // pred_region
          _
        $region44: #{tpu_custom_call.1} parent=11 // pred_fallthru
          _
        // Predicated region
        $region45: #{tpu_custom_call.1} parent=11 // pred_check
          %p365 = pneg %p237
        $region46: #{tpu_custom_call.1} parent=11 // pred_check_branch
          %367 = sbr.rel (%p365) target = $region48
        $region47: #{tpu_custom_call.1} parent=11 // pred_region
          _
        $region48: #{tpu_custom_call.1} parent=11 // pred_fallthru
          _
        // Predicated region
        $region49: #{tpu_custom_call.1} parent=11 // pred_check
          %p368 = pneg %p258
        $region50: #{tpu_custom_call.1} parent=11 // pred_check_branch
          %370 = sbr.rel (%p368) target = $region52
        $region51: #{tpu_custom_call.1} parent=11 // pred_region
          _
        $region52: #{tpu_custom_call.1} parent=11 // pred_fallthru
          _
        // Predicated region
        $region53: #{tpu_custom_call.1} parent=11 // pred_check
          %p371 = pneg %p279
        $region54: #{tpu_custom_call.1} parent=11 // pred_check_branch
          %373 = sbr.rel (%p371) target = $region56
        $region55: #{tpu_custom_call.1} parent=11 // pred_region
          _
        $region56: #{tpu_custom_call.1} parent=11 // pred_fallthru
          _
        // Predicated region
        $region57: #{tpu_custom_call.1} parent=11 // pred_check
          %p374 = pneg %p300
        $region58: #{tpu_custom_call.1} parent=11 // pred_check_branch
          %376 = sbr.rel (%p374) target = $region60
        $region59: #{tpu_custom_call.1} parent=11 // pred_region
          _
        $region60: #{tpu_custom_call.1} parent=11 // pred_fallthru
          _
      $region12: #{tpu_custom_call.1} parent=5 // pred_fallthru
        _
      %p377 = scmp.lt.s32.totalorder %s22, 2
      // Predicated region
      $region61: #{tpu_custom_call.1} parent=5 // pred_check
        %p378 = pneg %p377
      $region62: #{tpu_custom_call.1} parent=5 // pred_check_branch
        %380 = sbr.rel (%p378) target = $region64
      $region63: #{tpu_custom_call.1} parent=5 // pred_region
        // Predicated region
        $region65: #{tpu_custom_call.1} parent=63 // pred_check
          %p381 = pneg %p42
        $region66: #{tpu_custom_call.1} parent=63 // pred_check_branch
          %383 = sbr.rel (%p381) target = $region68
        $region67: #{tpu_custom_call.1} parent=63 // pred_region
          %p384 = scmp.lt.s32.totalorder %s22, 1
          %s385 = scalar_select %p384, %s22, 1
          %s386 = smul.addr %s385, 8
          %s387 = scalar_lea.vmem %s0, %s386
        $region68: #{tpu_custom_call.1} parent=63 // pred_fallthru
          _
      $region64: #{tpu_custom_call.1} parent=5 // pred_fallthru
        _
      %p388 = scmp.le.s32.totalorder 1, %s22
      %p389 = scmp.lt.s32.totalorder %s22, 3
      %p390 = pnand %p388, %p389
      %p391 = pneg %p390
      // Predicated region
      $region69: #{tpu_custom_call.1} parent=5 // pred_check
        _
      $region70: #{tpu_custom_call.1} parent=5 // pred_check_branch
        %393 = sbr.rel (%p390) target = $region72
      $region71: #{tpu_custom_call.1} parent=5 // pred_region
        %s394 = ssub.s32 %s22, 1
        %p395 = scmp.lt.s32.totalorder %s27, 1
        %s396 = scalar_select %p395, %s27, 1
        %s397 = smul.addr %s396, 8
        %s398 = scalar_lea.vmem %s0, %s397
        %p399 = pneg %p48
        %p400 = pneg %p45
        %p401 = pneg %p69
        %p402 = pneg %p66
        %p403 = pneg %p90
        %p404 = pneg %p87
        %p405 = pneg %p111
        %p406 = pneg %p108
        %p407 = pneg %p132
        %p408 = pneg %p129
        %p409 = pneg %p153
        %p410 = pneg %p150
        %p411 = pneg %p174
        %p412 = pneg %p171
        %p413 = pneg %p195
        %p414 = pneg %p192
        %p415 = pneg %p216
        %p416 = pneg %p213
        %p417 = pneg %p237
        %p418 = pneg %p234
        %p419 = pneg %p258
        %p420 = pneg %p255
        %p421 = pneg %p279
        %p422 = pneg %p276
        %p423 = pneg %p300
        %p424 = pneg %p297
        %p425 = pneg %p326
        %p426 = pneg %p323
        %s427 = sand.u32 %s313, 1
        %s428 = scalar_lea.sflag [#allocation3], %s427
        %s429 = sand.u32 %s313, 1
        %s430 = smul.addr %s429, 8
        %s431 = scalar_lea.vmem [#allocation2], %s430
        %p432 = scmp.lt.s32.totalorder %s27, 1
        %s433 = scalar_select %p432, %s27, 1
        %s434 = smul.addr %s433, 8
        %s435 = scalar_lea.vmem %s0, %s434
        %v437 = vld [vmem:[%s1] sm:$0xf]
        %v438 = vld [vmem:[%s1 + $0x4] sm:$0xf]
        %v439 = vld [vmem:[%s1 + $0x8] sm:$0xf]
        %v440 = vld [vmem:[%s1 + $0xc] sm:$0xf]
        %v441 = vld [vmem:[%s2] sm:$0x1]
        %v442 = vld [vmem:[%s3] sm:$0xf]
        %v443 = vld [vmem:[%s3 + $0x4] sm:$0xf]
        %v444 = vld [vmem:[%s3 + $0x8] sm:$0xf]
        %v445 = vld [vmem:[%s3 + $0xc] sm:$0xf]
        %v446 = vld [vmem:[%s4] sm:$0x1]
        %v447 = vld [vmem:[%s5] sm:$0x1]
        %v448 = vld [vmem:[%s6] sm:$0x1]
        %v449 = vld [vmem:[%s7] sm:$0xf]
        %v450 = vld [vmem:[%s7 + $0x4] sm:$0xf]
        %v451 = vld [vmem:[%s7 + $0x8] sm:$0xf]
        %v452 = vld [vmem:[%s7 + $0xc] sm:$0xf]
        %v453 = vld [vmem:[%s8] sm:$0x1]
        %v454 = vld [vmem:[%s9] sm:$0xf]
        %v455 = vld [vmem:[%s9 + $0x4] sm:$0xf]
        %v456 = vld [vmem:[%s9 + $0x8] sm:$0xf]
        %v457 = vld [vmem:[%s9 + $0xc] sm:$0xf]
        %v458 = vld [vmem:[%s9 + $0x10] sm:$0xf]
        %v459 = vld [vmem:[%s9 + $0x14] sm:$0xf]
        %v460 = vld [vmem:[%s9 + $0x18] sm:$0xf]
        %v461 = vld [vmem:[%s9 + $0x1c] sm:$0xf]
        %v462 = vld [vmem:[%s9 + $0x20] sm:$0xf]
        %v463 = vld [vmem:[%s9 + $0x24] sm:$0xf]
        %v464 = vld [vmem:[%s9 + $0x28] sm:$0xf]
        %v465 = vld [vmem:[%s9 + $0x2c] sm:$0xf]
        %v466 = vld [vmem:[%s9 + $0x30] sm:$0xf]
        %v467 = vld [vmem:[%s9 + $0x34] sm:$0xf]
        %v468 = vld [vmem:[%s9 + $0x38] sm:$0xf]
        %v469 = vld [vmem:[%s9 + $0x3c] sm:$0xf]
        %v470 = vld [vmem:[%s10] sm:$0x1]
        %v471 = vld [vmem:[%s11] sm:$0x1]
        %v472 = vld [vmem:[%s12] sm:$0x1]
        %v473 = vld [vmem:[%s435] sm:$0xff]
        %v474 = vpack.c.bf16 %v473, %v473
        %v476 = vperm.slane %v441, 0
        %v482 = vunpack.c.l.b16 %v437
        %v483 = vunpack.c.l.b16 %v438
        %v484 = vunpack.c.l.b16 %v439
        %v485 = vunpack.c.l.b16 %v440
        %v486 = vpack.c.b16 %v483, %v482
        %v487 = vpack.c.b16 %v485, %v484
        %vm490 = vcmask 261120
        %v492 = vsel %vm490, %v474, 0
        %494 = vmatpush.bf16.msra.mxu0 0
        %495 = vmatpush.bf16.msra.mxu0 0
        %496 = vmatpush.bf16.msra.mxu0 0
        %497 = vmatpush.bf16.msra.mxu0 0
        %498 = vmatpush.bf16.msra.mxu0 0
        %499 = vmatpush.bf16.msra.mxu0 0
        %500 = vmatpush.bf16.msra.mxu0 %v487
        %501 = vmatpush.bf16.msra.mxu0 %v486
        %502 = vmatmul.bf16.gmra.mxu0 %v492
        %v503 = vpop.f32.mrf.mxu0
        %v504 = vadd.f32 %v476, %v503
        %v505 = vpop.f32.mrf.mxu0
        %506 = vdwg.mxu0
        %v507 = vpack.c.bf16 %v504, %v504
        %509 = vrot.lane.b32.xlu0 %v507, 124
        %v510 = vpop.permute.xlu0 %509
        %511 = vrot.lane.b32.xlu0 %v507, 120
        %v512 = vpop.permute.xlu0 %511
        %513 = vrot.lane.b32.xlu0 %v507, 116
        %v514 = vpop.permute.xlu0 %513
        %515 = vrot.lane.b32.xlu0 %v507, 112
        %v516 = vpop.permute.xlu0 %515
        %517 = vrot.lane.b32.xlu0 %v507, 108
        %v518 = vpop.permute.xlu0 %517
        %519 = vrot.lane.b32.xlu0 %v507, 104
        %v520 = vpop.permute.xlu0 %519
        %521 = vrot.lane.b32.xlu0 %v507, 100
        %v522 = vpop.permute.xlu0 %521
        %v523 = vunpack.c.l.b16 %v507
        %v524 = vpack.c.b16 %v523, %v523
        %525 = vrot.lane.b32.xlu0 %v524, 96
        %v526 = vpop.permute.xlu0 %525
        %vm527 = vcmask 31744
        %v529 = vsel %vm527, %v507, 0
        %v532 = vsel %vm527, %v526, 0
        %534 = vmatpush.bf16.xpose.msra.mxu0 0
        %535 = vmatpush.bf16.xpose.msra.mxu0 0
        %536 = vmatpush.bf16.xpose.msra.mxu0 0
        %537 = vmatpush.bf16.xpose.msra.mxu0 0
        %538 = vmatpush.bf16.xpose.msra.mxu0 0
        %539 = vmatpush.bf16.xpose.msra.mxu0 0
        %540 = vmatpush.bf16.xpose.msra.mxu0 0
        %541 = vmatpush.bf16.xpose.msra.mxu0 %v532
        %542 = vmatmul.bf16.gmra.mxu0 %v529
        %v543 = vpop.f32.mrf.mxu0
        %v544 = vadd.f32 0.0, %v543
        %v545 = vpop.f32.mrf.mxu0
        %546 = vdwg.mxu0
        %v547 = vunpack.c.l.b16 %v510
        %v548 = vpack.c.b16 %v547, %v547
        %549 = vrot.lane.b32.xlu0 %v548, 96
        %v550 = vpop.permute.xlu0 %549
        %v552 = vsel %vm527, %v510, 0
        %v555 = vsel %vm527, %v550, 0
        %557 = vmatpush.bf16.xpose.msra.mxu0 0
        %558 = vmatpush.bf16.xpose.msra.mxu0 0
        %559 = vmatpush.bf16.xpose.msra.mxu0 0
        %560 = vmatpush.bf16.xpose.msra.mxu0 0
        %561 = vmatpush.bf16.xpose.msra.mxu0 0
        %562 = vmatpush.bf16.xpose.msra.mxu0 0
        %563 = vmatpush.bf16.xpose.msra.mxu0 0
        %564 = vmatpush.bf16.xpose.msra.mxu0 %v555
        %565 = vmatmul.bf16.gmra.mxu0 %v552
        %v566 = vpop.f32.mrf.mxu0
        %v567 = vadd.f32 0.0, %v566
        %v568 = vpop.f32.mrf.mxu0
        %569 = vdwg.mxu0
        %v570 = vunpack.c.l.b16 %v512
        %v571 = vpack.c.b16 %v570, %v570
        %572 = vrot.lane.b32.xlu0 %v571, 96
        %v573 = vpop.permute.xlu0 %572
        %v575 = vsel %vm527, %v512, 0
        %v578 = vsel %vm527, %v573, 0
        %580 = vmatpush.bf16.xpose.msra.mxu0 0
        %581 = vmatpush.bf16.xpose.msra.mxu0 0
        %582 = vmatpush.bf16.xpose.msra.mxu0 0
        %583 = vmatpush.bf16.xpose.msra.mxu0 0
        %584 = vmatpush.bf16.xpose.msra.mxu0 0
        %585 = vmatpush.bf16.xpose.msra.mxu0 0
        %586 = vmatpush.bf16.xpose.msra.mxu0 0
        %587 = vmatpush.bf16.xpose.msra.mxu0 %v578
        %588 = vmatmul.bf16.gmra.mxu0 %v575
        %v589 = vpop.f32.mrf.mxu0
        %v590 = vadd.f32 0.0, %v589
        %v591 = vpop.f32.mrf.mxu0
        %592 = vdwg.mxu0
        %v593 = vunpack.c.l.b16 %v514
        %v594 = vpack.c.b16 %v593, %v593
        %595 = vrot.lane.b32.xlu0 %v594, 96
        %v596 = vpop.permute.xlu0 %595
        %v598 = vsel %vm527, %v514, 0
        %v601 = vsel %vm527, %v596, 0
        %603 = vmatpush.bf16.xpose.msra.mxu0 0
        %604 = vmatpush.bf16.xpose.msra.mxu0 0
        %605 = vmatpush.bf16.xpose.msra.mxu0 0
        %606 = vmatpush.bf16.xpose.msra.mxu0 0
        %607 = vmatpush.bf16.xpose.msra.mxu0 0
        %608 = vmatpush.bf16.xpose.msra.mxu0 0
        %609 = vmatpush.bf16.xpose.msra.mxu0 0
        %610 = vmatpush.bf16.xpose.msra.mxu0 %v601
        %611 = vmatmul.bf16.gmra.mxu0 %v598
        %v612 = vpop.f32.mrf.mxu0
        %v613 = vadd.f32 0.0, %v612
        %v614 = vpop.f32.mrf.mxu0
        %615 = vdwg.mxu0
        %v616 = vunpack.c.l.b16 %v516
        %v617 = vpack.c.b16 %v616, %v616
        %618 = vrot.lane.b32.xlu0 %v617, 96
        %v619 = vpop.permute.xlu0 %618
        %v621 = vsel %vm527, %v516, 0
        %v624 = vsel %vm527, %v619, 0
        %626 = vmatpush.bf16.xpose.msra.mxu0 0
        %627 = vmatpush.bf16.xpose.msra.mxu0 0
        %628 = vmatpush.bf16.xpose.msra.mxu0 0
        %629 = vmatpush.bf16.xpose.msra.mxu0 0
        %630 = vmatpush.bf16.xpose.msra.mxu0 0
        %631 = vmatpush.bf16.xpose.msra.mxu0 0
        %632 = vmatpush.bf16.xpose.msra.mxu0 0
        %633 = vmatpush.bf16.xpose.msra.mxu0 %v624
        %634 = vmatmul.bf16.gmra.mxu0 %v621
        %v635 = vpop.f32.mrf.mxu0
        %v636 = vadd.f32 0.0, %v635
        %v637 = vpop.f32.mrf.mxu0
        %638 = vdwg.mxu0
        %v639 = vunpack.c.l.b16 %v518
        %v640 = vpack.c.b16 %v639, %v639
        %641 = vrot.lane.b32.xlu0 %v640, 96
        %v642 = vpop.permute.xlu0 %641
        %v644 = vsel %vm527, %v518, 0
        %v647 = vsel %vm527, %v642, 0
        %649 = vmatpush.bf16.xpose.msra.mxu0 0
        %650 = vmatpush.bf16.xpose.msra.mxu0 0
        %651 = vmatpush.bf16.xpose.msra.mxu0 0
        %652 = vmatpush.bf16.xpose.msra.mxu0 0
        %653 = vmatpush.bf16.xpose.msra.mxu0 0
        %654 = vmatpush.bf16.xpose.msra.mxu0 0
        %655 = vmatpush.bf16.xpose.msra.mxu0 0
        %656 = vmatpush.bf16.xpose.msra.mxu0 %v647
        %657 = vmatmul.bf16.gmra.mxu0 %v644
        %v658 = vpop.f32.mrf.mxu0
        %v659 = vadd.f32 0.0, %v658
        %v660 = vpop.f32.mrf.mxu0
        %661 = vdwg.mxu0
        %v662 = vunpack.c.l.b16 %v520
        %v663 = vpack.c.b16 %v662, %v662
        %664 = vrot.lane.b32.xlu0 %v663, 96
        %v665 = vpop.permute.xlu0 %664
        %v667 = vsel %vm527, %v520, 0
        %v670 = vsel %vm527, %v665, 0
        %672 = vmatpush.bf16.xpose.msra.mxu0 0
        %673 = vmatpush.bf16.xpose.msra.mxu0 0
        %674 = vmatpush.bf16.xpose.msra.mxu0 0
        %675 = vmatpush.bf16.xpose.msra.mxu0 0
        %676 = vmatpush.bf16.xpose.msra.mxu0 0
        %677 = vmatpush.bf16.xpose.msra.mxu0 0
        %678 = vmatpush.bf16.xpose.msra.mxu0 0
        %679 = vmatpush.bf16.xpose.msra.mxu0 %v670
        %680 = vmatmul.bf16.gmra.mxu0 %v667
        %v681 = vpop.f32.mrf.mxu0
        %v682 = vadd.f32 0.0, %v681
        %v683 = vpop.f32.mrf.mxu0
        %684 = vdwg.mxu0
        %v685 = vunpack.c.l.b16 %v522
        %v686 = vpack.c.b16 %v685, %v685
        %687 = vrot.lane.b32.xlu0 %v686, 96
        %v688 = vpop.permute.xlu0 %687
        %v690 = vsel %vm527, %v522, 0
        %v693 = vsel %vm527, %v688, 0
        %695 = vmatpush.bf16.xpose.msra.mxu0 0
        %696 = vmatpush.bf16.xpose.msra.mxu0 0
        %697 = vmatpush.bf16.xpose.msra.mxu0 0
        %698 = vmatpush.bf16.xpose.msra.mxu0 0
        %699 = vmatpush.bf16.xpose.msra.mxu0 0
        %700 = vmatpush.bf16.xpose.msra.mxu0 0
        %701 = vmatpush.bf16.xpose.msra.mxu0 0
        %702 = vmatpush.bf16.xpose.msra.mxu0 %v693
        %703 = vmatmul.bf16.gmra.mxu0 %v690
        %v704 = vpop.f32.mrf.mxu0
        %v705 = vadd.f32 0.0, %v704
        %v706 = vpop.f32.mrf.mxu0
        %707 = vdwg.mxu0
        %vm708 = vcmask 64512
        %v709 = vsel %vm708, %v544, -inf
        %710 = vmax.xlane.f32.xlu0 %v709
        %v711 = vpop.xlane.xlu0 %710
        %v712 = vsel %vm708, %v567, -inf
        %713 = vmax.xlane.f32.xlu0 %v712
        %v714 = vpop.xlane.xlu0 %713
        %v715 = vsel %vm708, %v590, -inf
        %716 = vmax.xlane.f32.xlu0 %v715
        %v717 = vpop.xlane.xlu0 %716
        %v718 = vsel %vm708, %v613, -inf
        %719 = vmax.xlane.f32.xlu0 %v718
        %v720 = vpop.xlane.xlu0 %719
        %v721 = vsel %vm708, %v636, -inf
        %722 = vmax.xlane.f32.xlu0 %v721
        %v723 = vpop.xlane.xlu0 %722
        %v724 = vsel %vm708, %v659, -inf
        %725 = vmax.xlane.f32.xlu0 %v724
        %v726 = vpop.xlane.xlu0 %725
        %v727 = vsel %vm708, %v682, -inf
        %728 = vmax.xlane.f32.xlu0 %v727
        %v729 = vpop.xlane.xlu0 %728
        %v730 = vsel %vm708, %v705, -inf
        %731 = vmax.xlane.f32.xlu0 %v730
        %v732 = vpop.xlane.xlu0 %731
        %v733 = vsub.f32 %v544, %v711
        %v734 = vsub.f32 %v567, %v714
        %v735 = vsub.f32 %v590, %v717
        %v736 = vsub.f32 %v613, %v720
        %v737 = vsub.f32 %v636, %v723
        %v738 = vsub.f32 %v659, %v726
        %v739 = vsub.f32 %v682, %v729
        %v740 = vsub.f32 %v705, %v732
        %v741 = vmul.f32 %v733, 1.442695
        %v742 = vpow.pop %v741
        %v743 = vmul.f32 %v734, 1.442695
        %v744 = vpow.pop %v743
        %v745 = vmul.f32 %v735, 1.442695
        %v746 = vpow.pop %v745
        %v747 = vmul.f32 %v736, 1.442695
        %v748 = vpow.pop %v747
        %v749 = vmul.f32 %v737, 1.442695
        %v750 = vpow.pop %v749
        %v751 = vmul.f32 %v738, 1.442695
        %v752 = vpow.pop %v751
        %v753 = vmul.f32 %v739, 1.442695
        %v754 = vpow.pop %v753
        %v755 = vmul.f32 %v740, 1.442695
        %v756 = vpow.pop %v755
        %v757 = vsel %vm708, %v742, 0.0
        %758 = vadd.xlane.f32.xlu0 %v757
        %v759 = vpop.xlane.xlu0 %758
        %v760 = vsel %vm708, %v744, 0.0
        %761 = vadd.xlane.f32.xlu0 %v760
        %v762 = vpop.xlane.xlu0 %761
        %v763 = vsel %vm708, %v746, 0.0
        %764 = vadd.xlane.f32.xlu0 %v763
        %v765 = vpop.xlane.xlu0 %764
        %v766 = vsel %vm708, %v748, 0.0
        %767 = vadd.xlane.f32.xlu0 %v766
        %v768 = vpop.xlane.xlu0 %767
        %v769 = vsel %vm708, %v750, 0.0
        %770 = vadd.xlane.f32.xlu0 %v769
        %v771 = vpop.xlane.xlu0 %770
        %v772 = vsel %vm708, %v752, 0.0
        %773 = vadd.xlane.f32.xlu0 %v772
        %v774 = vpop.xlane.xlu0 %773
        %v775 = vsel %vm708, %v754, 0.0
        %776 = vadd.xlane.f32.xlu0 %v775
        %v777 = vpop.xlane.xlu0 %776
        %v778 = vsel %vm708, %v756, 0.0
        %779 = vadd.xlane.f32.xlu0 %v778
        %v780 = vpop.xlane.xlu0 %779
        %v781 = vrcp.pop %v759
        %v782 = vrcp.pop %v762
        %v783 = vrcp.pop %v765
        %v784 = vrcp.pop %v768
        %v785 = vrcp.pop %v771
        %v786 = vrcp.pop %v774
        %v787 = vrcp.pop %v777
        %v788 = vrcp.pop %v780
        %v789 = vmul.f32 %v742, %v781
        %v790 = vmul.f32 %v744, %v782
        %v791 = vmul.f32 %v746, %v783
        %v792 = vmul.f32 %v748, %v784
        %v793 = vmul.f32 %v750, %v785
        %v794 = vmul.f32 %v752, %v786
        %v795 = vmul.f32 %v754, %v787
        %v796 = vmul.f32 %v756, %v788
        %v797 = vpack.c.bf16 %v789, %v789
        %v798 = vpack.c.bf16 %v790, %v790
        %v799 = vpack.c.bf16 %v791, %v791
        %v800 = vpack.c.bf16 %v792, %v792
        %v801 = vpack.c.bf16 %v793, %v793
        %v802 = vpack.c.bf16 %v794, %v794
        %v803 = vpack.c.bf16 %v795, %v795
        %v804 = vpack.c.bf16 %v796, %v796
        %805 = vrot.lane.b32.xlu0 %v524, 64
        %v806 = vpop.permute.xlu0 %805
        %v808 = vsel %vm708, %v797, 0
        %vm810 = vcmask 1043456
        %v812 = vsel %vm810, %v806, 0
        %814 = vmatpush.bf16.msra.mxu0 0
        %815 = vmatpush.bf16.msra.mxu0 0
        %816 = vmatpush.bf16.msra.mxu0 0
        %817 = vmatpush.bf16.msra.mxu0 0
        %818 = vmatpush.bf16.msra.mxu0 0
        %819 = vmatpush.bf16.msra.mxu0 0
        %820 = vmatpush.bf16.msra.mxu0 0
        %821 = vmatpush.bf16.msra.mxu0 %v812
        %822 = vmatmul.bf16.gmra.mxu0 %v808
        %v823 = vpop.f32.mrf.mxu0
        %v824 = vadd.f32 0.0, %v823
        %v825 = vpop.f32.mrf.mxu0
        %826 = vdwg.mxu0
        %827 = vrot.lane.b32.xlu0 %v548, 64
        %v828 = vpop.permute.xlu0 %827
        %v830 = vsel %vm708, %v798, 0
        %v833 = vsel %vm810, %v828, 0
        %835 = vmatpush.bf16.msra.mxu0 0
        %836 = vmatpush.bf16.msra.mxu0 0
        %837 = vmatpush.bf16.msra.mxu0 0
        %838 = vmatpush.bf16.msra.mxu0 0
        %839 = vmatpush.bf16.msra.mxu0 0
        %840 = vmatpush.bf16.msra.mxu0 0
        %841 = vmatpush.bf16.msra.mxu0 0
        %842 = vmatpush.bf16.msra.mxu0 %v833
        %843 = vmatmul.bf16.gmra.mxu0 %v830
        %v844 = vpop.f32.mrf.mxu0
        %v845 = vadd.f32 0.0, %v844
        %v846 = vpop.f32.mrf.mxu0
        %847 = vdwg.mxu0
        %848 = vrot.lane.b32.xlu0 %v571, 64
        %v849 = vpop.permute.xlu0 %848
        %v851 = vsel %vm708, %v799, 0
        %v854 = vsel %vm810, %v849, 0
        %856 = vmatpush.bf16.msra.mxu0 0
        %857 = vmatpush.bf16.msra.mxu0 0
        %858 = vmatpush.bf16.msra.mxu0 0
        %859 = vmatpush.bf16.msra.mxu0 0
        %860 = vmatpush.bf16.msra.mxu0 0
        %861 = vmatpush.bf16.msra.mxu0 0
        %862 = vmatpush.bf16.msra.mxu0 0
        %863 = vmatpush.bf16.msra.mxu0 %v854
        %864 = vmatmul.bf16.gmra.mxu0 %v851
        %v865 = vpop.f32.mrf.mxu0
        %v866 = vadd.f32 0.0, %v865
        %v867 = vpop.f32.mrf.mxu0
        %868 = vdwg.mxu0
        %869 = vrot.lane.b32.xlu0 %v594, 64
        %v870 = vpop.permute.xlu0 %869
        %v872 = vsel %vm708, %v800, 0
        %v875 = vsel %vm810, %v870, 0
        %877 = vmatpush.bf16.msra.mxu0 0
        %878 = vmatpush.bf16.msra.mxu0 0
        %879 = vmatpush.bf16.msra.mxu0 0
        %880 = vmatpush.bf16.msra.mxu0 0
        %881 = vmatpush.bf16.msra.mxu0 0
        %882 = vmatpush.bf16.msra.mxu0 0
        %883 = vmatpush.bf16.msra.mxu0 0
        %884 = vmatpush.bf16.msra.mxu0 %v875
        %885 = vmatmul.bf16.gmra.mxu0 %v872
        %v886 = vpop.f32.mrf.mxu0
        %v887 = vadd.f32 0.0, %v886
        %v888 = vpop.f32.mrf.mxu0
        %889 = vdwg.mxu0
        %890 = vrot.lane.b32.xlu0 %v617, 64
        %v891 = vpop.permute.xlu0 %890
        %v893 = vsel %vm708, %v801, 0
        %v896 = vsel %vm810, %v891, 0
        %898 = vmatpush.bf16.msra.mxu0 0
        %899 = vmatpush.bf16.msra.mxu0 0
        %900 = vmatpush.bf16.msra.mxu0 0
        %901 = vmatpush.bf16.msra.mxu0 0
        %902 = vmatpush.bf16.msra.mxu0 0
        %903 = vmatpush.bf16.msra.mxu0 0
        %904 = vmatpush.bf16.msra.mxu0 0
        %905 = vmatpush.bf16.msra.mxu0 %v896
        %906 = vmatmul.bf16.gmra.mxu0 %v893
        %v907 = vpop.f32.mrf.mxu0
        %v908 = vadd.f32 0.0, %v907
        %v909 = vpop.f32.mrf.mxu0
        %910 = vdwg.mxu0
        %911 = vrot.lane.b32.xlu0 %v640, 64
        %v912 = vpop.permute.xlu0 %911
        %v914 = vsel %vm708, %v802, 0
        %v917 = vsel %vm810, %v912, 0
        %919 = vmatpush.bf16.msra.mxu0 0
        %920 = vmatpush.bf16.msra.mxu0 0
        %921 = vmatpush.bf16.msra.mxu0 0
        %922 = vmatpush.bf16.msra.mxu0 0
        %923 = vmatpush.bf16.msra.mxu0 0
        %924 = vmatpush.bf16.msra.mxu0 0
        %925 = vmatpush.bf16.msra.mxu0 0
        %926 = vmatpush.bf16.msra.mxu0 %v917
        %927 = vmatmul.bf16.gmra.mxu0 %v914
        %v928 = vpop.f32.mrf.mxu0
        %v929 = vadd.f32 0.0, %v928
        %v930 = vpop.f32.mrf.mxu0
        %931 = vdwg.mxu0
        %932 = vrot.lane.b32.xlu0 %v663, 64
        %v933 = vpop.permute.xlu0 %932
        %v935 = vsel %vm708, %v803, 0
        %v938 = vsel %vm810, %v933, 0
        %940 = vmatpush.bf16.msra.mxu0 0
        %941 = vmatpush.bf16.msra.mxu0 0
        %942 = vmatpush.bf16.msra.mxu0 0
        %943 = vmatpush.bf16.msra.mxu0 0
        %944 = vmatpush.bf16.msra.mxu0 0
        %945 = vmatpush.bf16.msra.mxu0 0
        %946 = vmatpush.bf16.msra.mxu0 0
        %947 = vmatpush.bf16.msra.mxu0 %v938
        %948 = vmatmul.bf16.gmra.mxu0 %v935
        %v949 = vpop.f32.mrf.mxu0
        %v950 = vadd.f32 0.0, %v949
        %v951 = vpop.f32.mrf.mxu0
        %952 = vdwg.mxu0
        %953 = vrot.lane.b32.xlu0 %v686, 64
        %v954 = vpop.permute.xlu0 %953
        %v956 = vsel %vm708, %v804, 0
        %v959 = vsel %vm810, %v954, 0
        %961 = vmatpush.bf16.msra.mxu0 0
        %962 = vmatpush.bf16.msra.mxu0 0
        %963 = vmatpush.bf16.msra.mxu0 0
        %964 = vmatpush.bf16.msra.mxu0 0
        %965 = vmatpush.bf16.msra.mxu0 0
        %966 = vmatpush.bf16.msra.mxu0 0
        %967 = vmatpush.bf16.msra.mxu0 0
        %968 = vmatpush.bf16.msra.mxu0 %v959
        %969 = vmatmul.bf16.gmra.mxu0 %v956
        %v970 = vpop.f32.mrf.mxu0
        %v971 = vadd.f32 0.0, %v970
        %v972 = vpop.f32.mrf.mxu0
        %973 = vdwg.mxu0
        %v974 = vpack.c.bf16 %v824, %v824
        %v975 = vpack.c.bf16 %v845, %v845
        %v976 = vpack.c.bf16 %v866, %v866
        %v977 = vpack.c.bf16 %v887, %v887
        %v978 = vpack.c.bf16 %v908, %v908
        %v979 = vpack.c.bf16 %v929, %v929
        %v980 = vpack.c.bf16 %v950, %v950
        %v981 = vpack.c.bf16 %v971, %v971
        %v983 = vunpack.c.l.b16 %v975
        %v984 = vpack.c.b16 %v983, %v983
        %985 = vrot.lane.b32.xlu0 %v984, 4
        %v986 = vpop.permute.xlu0 %985
        %v988 = vunpack.c.l.b16 %v976
        %v989 = vpack.c.b16 %v988, %v988
        %990 = vrot.lane.b32.xlu0 %v989, 8
        %v991 = vpop.permute.xlu0 %990
        %v993 = vunpack.c.l.b16 %v977
        %v994 = vpack.c.b16 %v993, %v993
        %995 = vrot.lane.b32.xlu0 %v994, 12
        %v996 = vpop.permute.xlu0 %995
        %v998 = vunpack.c.l.b16 %v978
        %v999 = vpack.c.b16 %v998, %v998
        %1000 = vrot.lane.b32.xlu0 %v999, 16
        %v1001 = vpop.permute.xlu0 %1000
        %v1003 = vunpack.c.l.b16 %v979
        %v1004 = vpack.c.b16 %v1003, %v1003
        %1005 = vrot.lane.b32.xlu0 %v1004, 20
        %v1006 = vpop.permute.xlu0 %1005
        %v1008 = vunpack.c.l.b16 %v980
        %v1009 = vpack.c.b16 %v1008, %v1008
        %1010 = vrot.lane.b32.xlu0 %v1009, 24
        %v1011 = vpop.permute.xlu0 %1010
        %v1013 = vunpack.c.l.b16 %v981
        %v1014 = vpack.c.b16 %v1013, %v1013
        %1015 = vrot.lane.b32.xlu0 %v1014, 28
        %v1016 = vpop.permute.xlu0 %1015
        %v1019 = vsel %vm527, %v974, %v986
        %v1021 = vsel %vm708, %v1019, %v991
        %vm1022 = vcmask 97280
        %v1024 = vsel %vm1022, %v1021, %v996
        %vm1025 = vcmask 130048
        %v1027 = vsel %vm1025, %v1024, %v1001
        %vm1028 = vcmask 162816
        %v1030 = vsel %vm1028, %v1027, %v1006
        %vm1031 = vcmask 195584
        %v1033 = vsel %vm1031, %v1030, %v1011
        %vm1034 = vcmask 228352
        %v1036 = vsel %vm1034, %v1033, %v1016
        %v1038 = vperm.slane %v446, 0
        %v1044 = vunpack.c.l.b16 %v442
        %v1045 = vunpack.c.l.b16 %v443
        %v1046 = vunpack.c.l.b16 %v444
        %v1047 = vunpack.c.l.b16 %v445
        %v1048 = vpack.c.b16 %v1045, %v1044
        %v1049 = vpack.c.b16 %v1047, %v1046
        %v1052 = vsel %vm490, %v1036, 0
        %1054 = vmatpush.bf16.msra.mxu0 0
        %1055 = vmatpush.bf16.msra.mxu0 0
        %1056 = vmatpush.bf16.msra.mxu0 0
        %1057 = vmatpush.bf16.msra.mxu0 0
        %1058 = vmatpush.bf16.msra.mxu0 0
        %1059 = vmatpush.bf16.msra.mxu0 0
        %1060 = vmatpush.bf16.msra.mxu0 %v1049
        %1061 = vmatpush.bf16.msra.mxu0 %v1048
        %1062 = vmatmul.bf16.gmra.mxu0 %v1052
        %v1063 = vpop.f32.mrf.mxu0
        %v1064 = vadd.f32 %v1038, %v1063
        %v1065 = vpop.f32.mrf.mxu0
        %1066 = vdwg.mxu0
        %v1067 = vadd.f32 %v473, %v1064
        %v1068 = vsel %vm490, %v1067, 0.0
        %1069 = vadd.xlane.f32.xlu0 %v1068
        %v1070 = vpop.xlane.xlu0 %1069
        %v1071 = vrcp.pop 32.0
        %v1072 = vmul.f32 32.0, %v1071
        %v1073 = vsub.f32 1.0, %v1072
        %v1074 = vmul.f32 %v1071, %v1073
        %v1075 = vadd.f32 %v1071, %v1074
        %vm1076 = vweird.f32 %v1071
        %v1077 = vsel %vm1076, %v1071, %v1075
        %v1078 = vmul.f32 %v1070, %v1077
        %v1079 = vsub.f32 %v1067, %v1078
        %v1080 = vmul.f32 %v1079, %v1079
        %v1081 = vsel %vm490, %v1080, 0.0
        %1082 = vadd.xlane.f32.xlu0 %v1081
        %v1083 = vpop.xlane.xlu0 %1082
        %v1084 = vmul.f32 %v1083, %v1077
        %v1085 = vadd.f32 %v1084, 1e-05
        %v1086 = vrsqrt.pop %v1085
        %v1087 = vmul.f32 %v1086, %v1085
        %v1088 = vmul.f32 %v1087, %v1086
        %v1089 = vmul.f32 0.5, %v1088
        %v1090 = vsub.f32 1.5, %v1089
        %v1091 = vmul.f32 %v1086, %v1090
        %vm1092 = vweird.f32 %v1085
        %vm1093 = vweird.f32 %v1086
        %vm1094 = vmor %vm1092, %vm1093
        %v1095 = vsel %vm1094, %v1086, %v1091
        %v1096 = vmul.f32 %v1079, %v1095
        %v1098 = vperm.slane %v447, 0
        %v1100 = vmul.f32 %v1096, %v1098
        %v1102 = vperm.slane %v448, 0
        %v1104 = vadd.f32 %v1100, %v1102
        %v1105 = vpack.c.bf16 %v1104, %v1104
        %v1107 = vperm.slane %v453, 0
        %v1113 = vunpack.c.l.b16 %v449
        %v1114 = vunpack.c.l.b16 %v450
        %v1115 = vunpack.c.l.b16 %v451
        %v1116 = vunpack.c.l.b16 %v452
        %v1117 = vpack.c.b16 %v1114, %v1113
        %v1118 = vpack.c.b16 %v1116, %v1115
        %v1122 = vsel %vm490, %v1105, 0
        %1124 = vmatpush.bf16.msra.mxu0 0
        %1125 = vmatpush.bf16.msra.mxu0 0
        %1126 = vmatpush.bf16.msra.mxu0 0
        %1127 = vmatpush.bf16.msra.mxu0 0
        %1128 = vmatpush.bf16.msra.mxu0 0
        %1129 = vmatpush.bf16.msra.mxu0 0
        %1130 = vmatpush.bf16.msra.mxu0 %v1118
        %1131 = vmatpush.bf16.msra.mxu0 %v1117
        %1132 = vmatmul.bf16.gmra.mxu0 %v1122
        %v1133 = vpop.f32.mrf.mxu0
        %v1134 = vadd.f32 %v1107, %v1133
        %v1135 = vpop.f32.mrf.mxu0
        %1136 = vdwg.mxu0
        %v1137 = vmax.f32 %v1134, 0.0
        %v1138 = vpack.c.bf16 %v1137, %v1137
        %v1140 = vperm.slane %v470, 0
        %v1158 = vunpack.c.l.b16 %v454
        %v1159 = vunpack.c.l.b16 %v455
        %v1160 = vunpack.c.l.b16 %v456
        %v1161 = vunpack.c.l.b16 %v457
        %v1162 = vunpack.c.l.b16 %v458
        %v1163 = vunpack.c.l.b16 %v459
        %v1164 = vunpack.c.l.b16 %v460
        %v1165 = vunpack.c.l.b16 %v461
        %v1166 = vunpack.c.l.b16 %v462
        %v1167 = vunpack.c.l.b16 %v463
        %v1168 = vunpack.c.l.b16 %v464
        %v1169 = vunpack.c.l.b16 %v465
        %v1170 = vunpack.c.l.b16 %v466
        %v1171 = vunpack.c.l.b16 %v467
        %v1172 = vunpack.c.l.b16 %v468
        %v1173 = vunpack.c.l.b16 %v469
        %v1174 = vpack.c.b16 %v1159, %v1158
        %v1175 = vpack.c.b16 %v1161, %v1160
        %v1176 = vpack.c.b16 %v1163, %v1162
        %v1177 = vpack.c.b16 %v1165, %v1164
        %v1178 = vpack.c.b16 %v1167, %v1166
        %v1179 = vpack.c.b16 %v1169, %v1168
        %v1180 = vpack.c.b16 %v1171, %v1170
        %v1181 = vpack.c.b16 %v1173, %v1172
        %1190 = vmatpush.bf16.msra.mxu0 %v1181
        %1191 = vmatpush.bf16.msra.mxu0 %v1180
        %1192 = vmatpush.bf16.msra.mxu0 %v1179
        %1193 = vmatpush.bf16.msra.mxu0 %v1178
        %1194 = vmatpush.bf16.msra.mxu0 %v1177
        %1195 = vmatpush.bf16.msra.mxu0 %v1176
        %1196 = vmatpush.bf16.msra.mxu0 %v1175
        %1197 = vmatpush.bf16.msra.mxu0 %v1174
        %1198 = vmatmul.bf16.gmra.mxu0 %v1138
        %v1199 = vpop.f32.mrf.mxu0
        %v1200 = vadd.f32 %v1140, %v1199
        %v1201 = vpop.f32.mrf.mxu0
        %1202 = vdwg.mxu0
        %v1203 = vadd.f32 %v1104, %v1200
        %v1204 = vsel %vm490, %v1203, 0.0
        %1205 = vadd.xlane.f32.xlu0 %v1204
        %v1206 = vpop.xlane.xlu0 %1205
        %v1207 = vmul.f32 %v1206, %v1077
        %v1208 = vsub.f32 %v1203, %v1207
        %v1209 = vmul.f32 %v1208, %v1208
        %v1210 = vsel %vm490, %v1209, 0.0
        %1211 = vadd.xlane.f32.xlu0 %v1210
        %v1212 = vpop.xlane.xlu0 %1211
        %v1213 = vmul.f32 %v1212, %v1077
        %v1214 = vadd.f32 %v1213, 1e-05
        %v1215 = vrsqrt.pop %v1214
        %v1216 = vmul.f32 %v1215, %v1214
        %v1217 = vmul.f32 %v1216, %v1215
        %v1218 = vmul.f32 0.5, %v1217
        %v1219 = vsub.f32 1.5, %v1218
        %v1220 = vmul.f32 %v1215, %v1219
        %vm1221 = vweird.f32 %v1214
        %vm1222 = vweird.f32 %v1215
        %vm1223 = vmor %vm1221, %vm1222
        %v1224 = vsel %vm1223, %v1215, %v1220
        %v1225 = vmul.f32 %v1208, %v1224
        %v1227 = vperm.slane %v471, 0
        %v1229 = vmul.f32 %v1225, %v1227
        %v1231 = vperm.slane %v472, 0
        %v1233 = vadd.f32 %v1229, %v1231
        %1234 = vst.msk [vmem:[%s431] sm:$0xff] %vm490, %v1233
        %s1235 = sand.u32 %s313, 1
        %s1236 = scalar_lea.sflag [#allocation3], %s1235
        %s1237 = sand.u32 %s313, 1
        %s1238 = smul.addr %s1237, 8
        %s1239 = scalar_lea.vmem [#allocation2], %s1238
        // Predicated region
        $region73: #{tpu_custom_call.1} parent=71 // pred_check
          %p1240 = pneg %p323
        $region74: #{tpu_custom_call.1} parent=71 // pred_check_branch
          %1242 = sbr.rel (%p1240) target = $region76
        $region75: #{tpu_custom_call.1} parent=71 // pred_region
          %1244 = vsyncadd %s1236, 0
          %s1245 = smul.addr %s27, 8
          %s1246 = scalar_lea.hbm %s13, %s1245
          %s1248 = sshll.u32 %s1239, 4
          %s1249 = int_to_ptr.vmem [resolvable:$true] %s1248
          %s1250 = sshll.u32 %s1246, 4
          %s1251 = int_to_ptr.hbm [resolvable:$true] %s1250
          %1253 = dma.vmem_to_hbm [thread:$0]  %s1249, 128, %s1251, %s1236
        $region76: #{tpu_custom_call.1} parent=71 // pred_fallthru
          _
      $region72: #{tpu_custom_call.1} parent=5 // pred_fallthru
        _
      %p1254 = scmp.le.s32.totalorder 2, %s22
      // Predicated region
      $region77: #{tpu_custom_call.1} parent=5 // pred_check
        %p1255 = pneg %p1254
      $region78: #{tpu_custom_call.1} parent=5 // pred_check_branch
        %1257 = sbr.rel (%p1255) target = $region80
      $region79: #{tpu_custom_call.1} parent=5 // pred_region
        %s1258 = ssub.s32 %s22, 2
        // Predicated region
        $region81: #{tpu_custom_call.1} parent=79 // pred_check
          %p1259 = pneg %p329
        $region82: #{tpu_custom_call.1} parent=79 // pred_check_branch
          %1261 = sbr.rel (%p1259) target = $region84
        $region83: #{tpu_custom_call.1} parent=79 // pred_region
          %s1262 = sand.u32 %s314, 1
          %s1263 = scalar_lea.sflag [#allocation3], %s1262
          %s1264 = sand.u32 %s314, 1
          %s1265 = smul.addr %s1264, 8
          %s1266 = scalar_lea.vmem [#allocation2], %s1265
          %1268 = dma.done %s1263, 128
        $region84: #{tpu_custom_call.1} parent=79 // pred_fallthru
          _
      $region80: #{tpu_custom_call.1} parent=5 // pred_fallthru
        _
    $region6: #{tpu_custom_call.1} parent=1 // loop_footer
      %s26 = sadd.s32 1, %s22
    $region7: #{tpu_custom_call.1} parent=1 // loop_footer_branch
      %21 = sbr.rel target = $region3
    $region8: #{tpu_custom_call.1} parent=1 // loop_exit
      _
    %1269 = vsyncpa [#allocation3], 1
    %s1270 = scalar_lea.sflag [#allocation3], 1
    %1271 = vsyncpa %s1270, 1

</llo_original>
